<compile_context>
chip_gen: v7x
topology: tpu7x:2x2x1
jax: 0.10.0
libtpu: 0.0.40
codegen_flags: <defaults>
</compile_context>

<pallas_src>
import functools

import jax
import jax.numpy as jnp
from jax import lax
from jax.experimental import pallas as pl
from jax.experimental.pallas import tpu as pltpu

_BN_EPS = 1e-5


# ----------------------------------------------------------------------------
# Fused conv kernel: out = [relu]( W @ P + bias [+ residual] )
# ----------------------------------------------------------------------------
def _fused_conv_kernel(*refs, relu: bool, add_residual: bool):
    """Blocks (all VMEM):
      W: (Cout, K)    BN-scale-folded conv weights, K = 27 * Cin
      P: (K, tm)      im2col patches for this tile of output positions
      b: (Cout, 1)    folded BN bias
      R: (Cout, tm)   optional skip connection, added BEFORE the ReLU
      O: (Cout, tm)   lane-dense output tile
    """
    if add_residual:
        w_ref, p_ref, b_ref, r_ref, o_ref = refs
    else:
        w_ref, p_ref, b_ref, o_ref = refs
        r_ref = None

    acc = jnp.dot(w_ref[...], p_ref[...], preferred_element_type=jnp.float32)
    out = acc + b_ref[...]
    if add_residual:
        out = out + r_ref[...]
    if relu:
        out = jnp.maximum(out, 0.0)
    o_ref[...] = out.astype(o_ref.dtype)


def _pick_tile_m(m):
    # Prefer >= 2 lane-aligned grid steps (v7x: 2 TensorCores); otherwise one
    # whole-M block (tiny layers are overhead-dominated anyway).
    for tm in (1024, 512, 256, 128):
        if m % tm == 0 and m // tm >= 2:
            return tm
    return m


def _fused_matmul_call(w2, patches, bias, residual, *, relu):
    cout, k = w2.shape
    k2, m = patches.shape
    assert k == k2
    tm = _pick_tile_m(m)
    grid = (m // tm,)
    add_residual = residual is not None

    in_specs = [
        pl.BlockSpec((cout, k), lambda i: (0, 0)),
        pl.BlockSpec((k, tm), lambda i: (0, i)),
        pl.BlockSpec((cout, 1), lambda i: (0, 0)),
    ]
    args = [w2, patches, bias]
    if add_residual:
        in_specs.append(pl.BlockSpec((cout, tm), lambda i: (0, i)))
        args.append(residual)

    kernel = functools.partial(_fused_conv_kernel, relu=relu,
                               add_residual=add_residual)
    return pl.pallas_call(
        kernel,
        out_shape=jax.ShapeDtypeStruct((cout, m), jnp.float32),
        grid_spec=pltpu.PrefetchScalarGridSpec(
            num_scalar_prefetch=0,
            grid=grid,
            in_specs=in_specs,
            out_specs=pl.BlockSpec((cout, tm), lambda i: (0, i)),
        ),
        compiler_params=pltpu.CompilerParams(
            dimension_semantics=("parallel",)),
    )(*args)


# ----------------------------------------------------------------------------
# XLA-side im2col + BN folding (recommended by the perf review)
# ----------------------------------------------------------------------------
def _im2col_3d(x, *, stride, pad):
    """x: (N, C, D, H, W) -> patches (C*27, N*Do*Ho*Wo), plus (Do, Ho, Wo).

    K ordering is (Cin, kd, kh, kw) flat, matching w.reshape(Cout, Cin*27).
    M ordering is (N, Do, Ho, Wo) flat.
    """
    n, c, d, h, w = x.shape
    if pad:
        x = jnp.pad(x, ((0, 0), (0, 0), (pad, pad), (pad, pad), (pad, pad)))
    do = (d + 2 * pad - 3) // stride + 1
    ho = (h + 2 * pad - 3) // stride + 1
    wo = (w + 2 * pad - 3) // stride + 1
    cols = []
    for kd in range(3):
        for kh in range(3):
            for kw in range(3):
                cols.append(x[:, :,
                              kd:kd + (do - 1) * stride + 1:stride,
                              kh:kh + (ho - 1) * stride + 1:stride,
                              kw:kw + (wo - 1) * stride + 1:stride])
    p = jnp.stack(cols, axis=2)            # (N, C, 27, Do, Ho, Wo)
    p = p.transpose(1, 2, 0, 3, 4, 5)      # (C, 27, N, Do, Ho, Wo)
    return p.reshape(c * 27, n * do * ho * wo), (do, ho, wo)


def _fold_bn(bn):
    scale = bn["gamma"] * lax.rsqrt(bn["var"] + _BN_EPS)
    bias = bn["beta"] - bn["mean"] * scale
    return scale, bias


def _run_conv(x, w_oidhw, bn, *, stride, pad, relu, residual=None):
    """Conv3d(k=3, stride, pad, bias=False) + BN [+ residual] [+ ReLU]."""
    n = x.shape[0]
    cout = w_oidhw.shape[0]
    scale, bias = _fold_bn(bn)
    w2 = (w_oidhw * scale[:, None, None, None, None]).reshape(cout, -1)
    w2 = w2.astype(jnp.float32)
    bias2 = bias.reshape(cout, 1).astype(jnp.float32)

    patches, (do, ho, wo) = _im2col_3d(x.astype(jnp.float32),
                                       stride=stride, pad=pad)
    res2 = None
    if residual is not None:
        res2 = residual.astype(jnp.float32).transpose(1, 0, 2, 3, 4).reshape(
            cout, n * do * ho * wo)

    out = _fused_matmul_call(w2, patches, bias2, res2, relu=relu)
    return out.reshape(cout, n, do, ho, wo).transpose(1, 0, 2, 3, 4)


def _run_deconv(x, w_t, bn, *, relu, residual=None):
    """ConvTranspose3d(k=3, stride=2, pad=1, output_padding=1, bias=False) + BN
    [+ residual] [+ ReLU], via the equivalent zero-dilated stride-1 conv with a
    spatially-flipped, channel-swapped kernel (PyTorch semantics)."""
    n, c, d, h, w = x.shape
    # zero-dilate by 2, pad (k-1-pad, k-1-pad+output_padding) = (1, 2)
    xz = jnp.zeros((n, c, 2 * d - 1, 2 * h - 1, 2 * w - 1), x.dtype)
    xz = xz.at[:, :, ::2, ::2, ::2].set(x)
    xz = jnp.pad(xz, ((0, 0), (0, 0), (1, 2), (1, 2), (1, 2)))
    # ConvTranspose weight (Cin, Cout, 3,3,3) -> equivalent conv (Cout, Cin, 3,3,3)
    w_eq = jnp.flip(w_t, axis=(2, 3, 4)).transpose(1, 0, 2, 3, 4)
    return _run_conv(xz, w_eq, bn, stride=1, pad=0, relu=relu,
                     residual=residual)


# ----------------------------------------------------------------------------
# hourglass.forward
# ----------------------------------------------------------------------------
def hourglass_forward(x, params, presqu=None, postsqu=None):
    """Pallas implementation of hourglass.forward(x, presqu, postsqu)."""
    out = _run_conv(x, params["w1"], params["bn1"], stride=2, pad=1, relu=True)
    # pre = relu(conv2(out) [+ postsqu])
    pre = _run_conv(out, params["w2"], params["bn2"], stride=1, pad=1,
                    relu=True, residual=postsqu)
    out = _run_conv(pre, params["w3"], params["bn3"], stride=2, pad=1, relu=True)
    out = _run_conv(out, params["w4"], params["bn4"], stride=1, pad=1, relu=True)
    # post = relu(conv5(out) + (presqu if presqu is not None else pre))
    post = _run_deconv(out, params["w5"], params["bn5"], relu=True,
                       residual=presqu if presqu is not None else pre)
    # out = conv6(post)      (BN, no ReLU, no skip)
    out = _run_deconv(post, params["w6"], params["bn6"], relu=False)
    return out, pre, post


# ----------------------------------------------------------------------------
# Pure-JAX reference (lax convs, HIGHEST precision) mirroring PyTorch forward
# ----------------------------------------------------------------------------
def _reference_forward(x, params, presqu=None, postsqu=None):
    def bn(y, p):
        s = p["gamma"] / jnp.sqrt(p["var"] + _BN_EPS)
        b = p["beta"] - p["mean"] * s
        return y * s[None, :, None, None, None] + b[None, :, None, None, None]

    def conv(z, w, stride):
        return lax.conv_general_dilated(
            z, w, window_strides=(stride,) * 3, padding=((1, 1),) * 3,
            dimension_numbers=("NCDHW", "OIDHW", "NCDHW"),
            precision=lax.Precision.HIGHEST)

    def deconv(z, w_t):
        w_eq = jnp.flip(w_t, axis=(2, 3, 4)).transpose(1, 0, 2, 3, 4)
        return lax.conv_general_dilated(
            z, w_eq, window_strides=(1, 1, 1), padding=((1, 2),) * 3,
            lhs_dilation=(2, 2, 2),
            dimension_numbers=("NCDHW", "OIDHW", "NCDHW"),
            precision=lax.Precision.HIGHEST)

    out = jax.nn.relu(bn(conv(x, params["w1"], 2), params["bn1"]))
    pre = bn(conv(out, params["w2"], 1), params["bn2"])
    pre = jax.nn.relu(pre + postsqu) if postsqu is not None else jax.nn.relu(pre)
    out = jax.nn.relu(bn(conv(pre, params["w3"], 2), params["bn3"]))
    out = jax.nn.relu(bn(conv(out, params["w4"], 1), params["bn4"]))
    p5 = bn(deconv(out, params["w5"]), params["bn5"])
    post = jax.nn.relu(p5 + (presqu if presqu is not None else pre))
    out = bn(deconv(post, params["w6"]), params["bn6"])
    return out, pre, post


if __name__ == "__main__":
    N, C = 2, 4                # inplanes = 4  -> inplanes*2 = 8
    D = H = W = 16
    C2 = 2 * C

    key = jax.random.PRNGKey(0)
    ks = iter(jax.random.split(key, 32))

    def bn_params(c):
        return {
            "gamma": 1.0 + 0.1 * jax.random.normal(next(ks), (c,), jnp.float32),
            "beta": 0.1 * jax.random.normal(next(ks), (c,), jnp.float32),
            "mean": 0.05 * jax.random.normal(next(ks), (c,), jnp.float32),
            "var": jnp.abs(1.0 + 0.1 * jax.random.normal(next(ks), (c,),
                                                         jnp.float32)),
        }

    x = jax.random.normal(next(ks), (N, C, D, H, W), jnp.float32)
    params = {
        # Conv3d weights: (Cout, Cin, 3, 3, 3)
        "w1": 0.1 * jax.random.normal(next(ks), (C2, C, 3, 3, 3), jnp.float32),
        "w2": 0.1 * jax.random.normal(next(ks), (C2, C2, 3, 3, 3), jnp.float32),
        "w3": 0.1 * jax.random.normal(next(ks), (C2, C2, 3, 3, 3), jnp.float32),
        "w4": 0.1 * jax.random.normal(next(ks), (C2, C2, 3, 3, 3), jnp.float32),
        # ConvTranspose3d weights: (Cin, Cout, 3, 3, 3)
        "w5": 0.1 * jax.random.normal(next(ks), (C2, C2, 3, 3, 3), jnp.float32),
        "w6": 0.1 * jax.random.normal(next(ks), (C2, C, 3, 3, 3), jnp.float32),
        "bn1": bn_params(C2), "bn2": bn_params(C2), "bn3": bn_params(C2),
        "bn4": bn_params(C2), "bn5": bn_params(C2), "bn6": bn_params(C),
    }

    # forward(x, presqu=None, postsqu=None) — first-stage hourglass call.
    out, pre, post = jax.block_until_ready(jax.jit(hourglass_forward)(x, params))
    ref_out, ref_pre, ref_post = jax.block_until_ready(
        jax.jit(_reference_forward)(x, params))

    assert out.shape == (N, C, D, H, W)
    assert pre.shape == (N, C2, D // 2, H // 2, W // 2)
    assert post.shape == (N, C2, D // 2, H // 2, W // 2)
    for got, ref, name in ((out, ref_out, "out"), (pre, ref_pre, "pre"),
                           (post, ref_post, "post")):
        assert jnp.allclose(got, ref, atol=5e-3, rtol=5e-3), f"mismatch: {name}"
    print("KERNEL_OK")
</pallas_src>

<mosaic_0001>
module attributes {stable_mosaic.version = 11 : i64} {
  func.func @_fused_conv_kernel(%arg0: i32, %arg1: memref<8x108xf32, #tpu.memory_space<vmem>>, %arg2: memref<108x512xf32, #tpu.memory_space<vmem>>, %arg3: memref<8x1xf32, #tpu.memory_space<vmem>>, %arg4: memref<8x512xf32, #tpu.memory_space<vmem>>) attributes {dimension_semantics = [#tpu.dimension_semantics<parallel>], iteration_bounds = array<i64: 2>, scalar_prefetch = 0 : i64, scratch_operands = 0 : i64, tpu.core_type = #tpu.core_type<tc>, window_params = [{pipeline_mode = #tpu.pipeline_mode<synchronous>, transform_indices = @transform_0, window_bounds = array<i64: 8, 108>}, {transform_indices = @transform_1, window_bounds = array<i64: 108, 512>}, {pipeline_mode = #tpu.pipeline_mode<synchronous>, transform_indices = @transform_2, window_bounds = array<i64: 8, 1>}, {transform_indices = @transform_3, window_bounds = array<i64: 8, 512>}]} {
    %c0 = arith.constant 0 : index
    %c0_0 = arith.constant 0 : index
    %0 = vector.load %arg1[%c0, %c0_0] : memref<8x108xf32, #tpu.memory_space<vmem>>, vector<8x108xf32>
    %c0_1 = arith.constant 0 : index
    %c0_2 = arith.constant 0 : index
    %1 = vector.load %arg2[%c0_1, %c0_2] : memref<108x512xf32, #tpu.memory_space<vmem>>, vector<108x512xf32>
    %cst = arith.constant dense<0.000000e+00> : vector<8x512xf32>
    %2 = tpu.matmul %0, %1, %cst {dimension_numbers = #tpu.dot_dimension_numbers<[1], [0], [0], [1], [0, 0, 1, 1], [], []>} : vector<8x108xf32>, vector<108x512xf32>, vector<8x512xf32> -> vector<8x512xf32>
    %c0_3 = arith.constant 0 : index
    %c0_4 = arith.constant 0 : index
    %3 = vector.load %arg3[%c0_3, %c0_4] : memref<8x1xf32, #tpu.memory_space<vmem>>, vector<8x1xf32>
    %4 = vector.broadcast %3 : vector<8x1xf32> to vector<8x512xf32>
    %5 = arith.addf %2, %4 : vector<8x512xf32>
    %cst_5 = arith.constant 0.000000e+00 : f32
    %6 = vector.broadcast %cst_5 : f32 to vector<8x512xf32>
    %7 = arith.maximumf %5, %6 : vector<8x512xf32>
    %c0_6 = arith.constant 0 : index
    %c0_7 = arith.constant 0 : index
    %8 = vector.load %arg4[%c0_6, %c0_7] : memref<8x512xf32, #tpu.memory_space<vmem>>, vector<8x512xf32>
    tpu.vector_store %arg4[%c0_6, %c0_7], %7 {strides = array<i32>} : memref<8x512xf32, #tpu.memory_space<vmem>>, vector<8x512xf32>,
    return
  }
  func.func @transform_0(%arg0: i32) -> (i32, i32) {
    %c0_i32 = arith.constant 0 : i32
    %c0_i32_0 = arith.constant 0 : i32
    %c0_i32_1 = arith.constant 0 : i32
    return %c0_i32, %c0_i32_0 : i32, i32
  }
  func.func @transform_1(%arg0: i32) -> (i32, i32) {
    %c0_i32 = arith.constant 0 : i32
    %c0_i32_0 = arith.constant 0 : i32
    return %c0_i32, %arg0 : i32, i32
  }
  func.func @transform_2(%arg0: i32) -> (i32, i32) {
    %c0_i32 = arith.constant 0 : i32
    %c0_i32_0 = arith.constant 0 : i32
    %c0_i32_1 = arith.constant 0 : i32
    return %c0_i32, %c0_i32_0 : i32, i32
  }
  func.func @transform_3(%arg0: i32) -> (i32, i32) {
    %c0_i32 = arith.constant 0 : i32
    %c0_i32_0 = arith.constant 0 : i32
    return %c0_i32, %arg0 : i32, i32
  }
}

module attributes {stable_mosaic.version = 11 : i64} {
  func.func @_fused_conv_kernel(%arg0: i32, %arg1: memref<8x216xf32, #tpu.memory_space<vmem>>, %arg2: memref<216x512xf32, #tpu.memory_space<vmem>>, %arg3: memref<8x1xf32, #tpu.memory_space<vmem>>, %arg4: memref<8x512xf32, #tpu.memory_space<vmem>>) attributes {dimension_semantics = [#tpu.dimension_semantics<parallel>], iteration_bounds = array<i64: 2>, scalar_prefetch = 0 : i64, scratch_operands = 0 : i64, tpu.core_type = #tpu.core_type<tc>, window_params = [{pipeline_mode = #tpu.pipeline_mode<synchronous>, transform_indices = @transform_0, window_bounds = array<i64: 8, 216>}, {transform_indices = @transform_1, window_bounds = array<i64: 216, 512>}, {pipeline_mode = #tpu.pipeline_mode<synchronous>, transform_indices = @transform_2, window_bounds = array<i64: 8, 1>}, {transform_indices = @transform_3, window_bounds = array<i64: 8, 512>}]} {
    %c0 = arith.constant 0 : index
    %c0_0 = arith.constant 0 : index
    %0 = vector.load %arg1[%c0, %c0_0] : memref<8x216xf32, #tpu.memory_space<vmem>>, vector<8x216xf32>
    %c0_1 = arith.constant 0 : index
    %c0_2 = arith.constant 0 : index
    %1 = vector.load %arg2[%c0_1, %c0_2] : memref<216x512xf32, #tpu.memory_space<vmem>>, vector<216x512xf32>
    %cst = arith.constant dense<0.000000e+00> : vector<8x512xf32>
    %2 = tpu.matmul %0, %1, %cst {dimension_numbers = #tpu.dot_dimension_numbers<[1], [0], [0], [1], [0, 0, 1, 1], [], []>} : vector<8x216xf32>, vector<216x512xf32>, vector<8x512xf32> -> vector<8x512xf32>
    %c0_3 = arith.constant 0 : index
    %c0_4 = arith.constant 0 : index
    %3 = vector.load %arg3[%c0_3, %c0_4] : memref<8x1xf32, #tpu.memory_space<vmem>>, vector<8x1xf32>
    %4 = vector.broadcast %3 : vector<8x1xf32> to vector<8x512xf32>
    %5 = arith.addf %2, %4 : vector<8x512xf32>
    %cst_5 = arith.constant 0.000000e+00 : f32
    %6 = vector.broadcast %cst_5 : f32 to vector<8x512xf32>
    %7 = arith.maximumf %5, %6 : vector<8x512xf32>
    %c0_6 = arith.constant 0 : index
    %c0_7 = arith.constant 0 : index
    %8 = vector.load %arg4[%c0_6, %c0_7] : memref<8x512xf32, #tpu.memory_space<vmem>>, vector<8x512xf32>
    tpu.vector_store %arg4[%c0_6, %c0_7], %7 {strides = array<i32>} : memref<8x512xf32, #tpu.memory_space<vmem>>, vector<8x512xf32>,
    return
  }
  func.func @transform_0(%arg0: i32) -> (i32, i32) {
    %c0_i32 = arith.constant 0 : i32
    %c0_i32_0 = arith.constant 0 : i32
    %c0_i32_1 = arith.constant 0 : i32
    return %c0_i32, %c0_i32_0 : i32, i32
  }
  func.func @transform_1(%arg0: i32) -> (i32, i32) {
    %c0_i32 = arith.constant 0 : i32
    %c0_i32_0 = arith.constant 0 : i32
    return %c0_i32, %arg0 : i32, i32
  }
  func.func @transform_2(%arg0: i32) -> (i32, i32) {
    %c0_i32 = arith.constant 0 : i32
    %c0_i32_0 = arith.constant 0 : i32
    %c0_i32_1 = arith.constant 0 : i32
    return %c0_i32, %c0_i32_0 : i32, i32
  }
  func.func @transform_3(%arg0: i32) -> (i32, i32) {
    %c0_i32 = arith.constant 0 : i32
    %c0_i32_0 = arith.constant 0 : i32
    return %c0_i32, %arg0 : i32, i32
  }
}

module attributes {stable_mosaic.version = 11 : i64} {
  func.func @_fused_conv_kernel(%arg0: i32, %arg1: memref<8x216xf32, #tpu.memory_space<vmem>>, %arg2: memref<216x128xf32, #tpu.memory_space<vmem>>, %arg3: memref<8x1xf32, #tpu.memory_space<vmem>>, %arg4: memref<8x128xf32, #tpu.memory_space<vmem>>) attributes {dimension_semantics = [#tpu.dimension_semantics<parallel>], iteration_bounds = array<i64: 1>, scalar_prefetch = 0 : i64, scratch_operands = 0 : i64, tpu.core_type = #tpu.core_type<tc>, window_params = [{pipeline_mode = #tpu.pipeline_mode<synchronous>, transform_indices = @transform_0, window_bounds = array<i64: 8, 216>}, {transform_indices = @transform_1, window_bounds = array<i64: 216, 128>}, {pipeline_mode = #tpu.pipeline_mode<synchronous>, transform_indices = @transform_2, window_bounds = array<i64: 8, 1>}, {transform_indices = @transform_3, window_bounds = array<i64: 8, 128>}]} {
    %c0 = arith.constant 0 : index
    %c0_0 = arith.constant 0 : index
    %0 = vector.load %arg1[%c0, %c0_0] : memref<8x216xf32, #tpu.memory_space<vmem>>, vector<8x216xf32>
    %c0_1 = arith.constant 0 : index
    %c0_2 = arith.constant 0 : index
    %1 = vector.load %arg2[%c0_1, %c0_2] : memref<216x128xf32, #tpu.memory_space<vmem>>, vector<216x128xf32>
    %cst = arith.constant dense<0.000000e+00> : vector<8x128xf32>
    %2 = tpu.matmul %0, %1, %cst {dimension_numbers = #tpu.dot_dimension_numbers<[1], [0], [0], [1], [0, 0, 1, 1], [], []>} : vector<8x216xf32>, vector<216x128xf32>, vector<8x128xf32> -> vector<8x128xf32>
    %c0_3 = arith.constant 0 : index
    %c0_4 = arith.constant 0 : index
    %3 = vector.load %arg3[%c0_3, %c0_4] : memref<8x1xf32, #tpu.memory_space<vmem>>, vector<8x1xf32>
    %4 = vector.broadcast %3 : vector<8x1xf32> to vector<8x128xf32>
    %5 = arith.addf %2, %4 : vector<8x128xf32>
    %cst_5 = arith.constant 0.000000e+00 : f32
    %6 = vector.broadcast %cst_5 : f32 to vector<8x128xf32>
    %7 = arith.maximumf %5, %6 : vector<8x128xf32>
    %c0_6 = arith.constant 0 : index
    %c0_7 = arith.constant 0 : index
    %8 = vector.load %arg4[%c0_6, %c0_7] : memref<8x128xf32, #tpu.memory_space<vmem>>, vector<8x128xf32>
    tpu.vector_store %arg4[%c0_6, %c0_7], %7 {strides = array<i32>} : memref<8x128xf32, #tpu.memory_space<vmem>>, vector<8x128xf32>,
    return
  }
  func.func @transform_0(%arg0: i32) -> (i32, i32) {
    %c0_i32 = arith.constant 0 : i32
    %c0_i32_0 = arith.constant 0 : i32
    %c0_i32_1 = arith.constant 0 : i32
    return %c0_i32, %c0_i32_0 : i32, i32
  }
  func.func @transform_1(%arg0: i32) -> (i32, i32) {
    %c0_i32 = arith.constant 0 : i32
    %c0_i32_0 = arith.constant 0 : i32
    return %c0_i32, %arg0 : i32, i32
  }
  func.func @transform_2(%arg0: i32) -> (i32, i32) {
    %c0_i32 = arith.constant 0 : i32
    %c0_i32_0 = arith.constant 0 : i32
    %c0_i32_1 = arith.constant 0 : i32
    return %c0_i32, %c0_i32_0 : i32, i32
  }
  func.func @transform_3(%arg0: i32) -> (i32, i32) {
    %c0_i32 = arith.constant 0 : i32
    %c0_i32_0 = arith.constant 0 : i32
    return %c0_i32, %arg0 : i32, i32
  }
}

module attributes {stable_mosaic.version = 11 : i64} {
  func.func @_fused_conv_kernel(%arg0: i32, %arg1: memref<8x216xf32, #tpu.memory_space<vmem>>, %arg2: memref<216x512xf32, #tpu.memory_space<vmem>>, %arg3: memref<8x1xf32, #tpu.memory_space<vmem>>, %arg4: memref<8x512xf32, #tpu.memory_space<vmem>>, %arg5: memref<8x512xf32, #tpu.memory_space<vmem>>) attributes {dimension_semantics = [#tpu.dimension_semantics<parallel>], iteration_bounds = array<i64: 2>, scalar_prefetch = 0 : i64, scratch_operands = 0 : i64, tpu.core_type = #tpu.core_type<tc>, window_params = [{pipeline_mode = #tpu.pipeline_mode<synchronous>, transform_indices = @transform_0, window_bounds = array<i64: 8, 216>}, {transform_indices = @transform_1, window_bounds = array<i64: 216, 512>}, {pipeline_mode = #tpu.pipeline_mode<synchronous>, transform_indices = @transform_2, window_bounds = array<i64: 8, 1>}, {transform_indices = @transform_3, window_bounds = array<i64: 8, 512>}, {transform_indices = @transform_4, window_bounds = array<i64: 8, 512>}]} {
    %c0 = arith.constant 0 : index
    %c0_0 = arith.constant 0 : index
    %0 = vector.load %arg1[%c0, %c0_0] : memref<8x216xf32, #tpu.memory_space<vmem>>, vector<8x216xf32>
    %c0_1 = arith.constant 0 : index
    %c0_2 = arith.constant 0 : index
    %1 = vector.load %arg2[%c0_1, %c0_2] : memref<216x512xf32, #tpu.memory_space<vmem>>, vector<216x512xf32>
    %cst = arith.constant dense<0.000000e+00> : vector<8x512xf32>
    %2 = tpu.matmul %0, %1, %cst {dimension_numbers = #tpu.dot_dimension_numbers<[1], [0], [0], [1], [0, 0, 1, 1], [], []>} : vector<8x216xf32>, vector<216x512xf32>, vector<8x512xf32> -> vector<8x512xf32>
    %c0_3 = arith.constant 0 : index
    %c0_4 = arith.constant 0 : index
    %3 = vector.load %arg3[%c0_3, %c0_4] : memref<8x1xf32, #tpu.memory_space<vmem>>, vector<8x1xf32>
    %4 = vector.broadcast %3 : vector<8x1xf32> to vector<8x512xf32>
    %5 = arith.addf %2, %4 : vector<8x512xf32>
    %c0_5 = arith.constant 0 : index
    %c0_6 = arith.constant 0 : index
    %6 = vector.load %arg4[%c0_5, %c0_6] : memref<8x512xf32, #tpu.memory_space<vmem>>, vector<8x512xf32>
    %7 = arith.addf %5, %6 : vector<8x512xf32>
    %cst_7 = arith.constant 0.000000e+00 : f32
    %8 = vector.broadcast %cst_7 : f32 to vector<8x512xf32>
    %9 = arith.maximumf %7, %8 : vector<8x512xf32>
    %c0_8 = arith.constant 0 : index
    %c0_9 = arith.constant 0 : index
    %10 = vector.load %arg5[%c0_8, %c0_9] : memref<8x512xf32, #tpu.memory_space<vmem>>, vector<8x512xf32>
    tpu.vector_store %arg5[%c0_8, %c0_9], %9 {strides = array<i32>} : memref<8x512xf32, #tpu.memory_space<vmem>>, vector<8x512xf32>,
    return
  }
  func.func @transform_0(%arg0: i32) -> (i32, i32) {
    %c0_i32 = arith.constant 0 : i32
    %c0_i32_0 = arith.constant 0 : i32
    %c0_i32_1 = arith.constant 0 : i32
    return %c0_i32, %c0_i32_0 : i32, i32
  }
  func.func @transform_1(%arg0: i32) -> (i32, i32) {
    %c0_i32 = arith.constant 0 : i32
    %c0_i32_0 = arith.constant 0 : i32
    return %c0_i32, %arg0 : i32, i32
  }
  func.func @transform_2(%arg0: i32) -> (i32, i32) {
    %c0_i32 = arith.constant 0 : i32
    %c0_i32_0 = arith.constant 0 : i32
    %c0_i32_1 = arith.constant 0 : i32
    return %c0_i32, %c0_i32_0 : i32, i32
  }
  func.func @transform_3(%arg0: i32) -> (i32, i32) {
    %c0_i32 = arith.constant 0 : i32
    %c0_i32_0 = arith.constant 0 : i32
    return %c0_i32, %arg0 : i32, i32
  }
  func.func @transform_4(%arg0: i32) -> (i32, i32) {
    %c0_i32 = arith.constant 0 : i32
    %c0_i32_0 = arith.constant 0 : i32
    return %c0_i32, %arg0 : i32, i32
  }
}

module attributes {stable_mosaic.version = 11 : i64} {
  func.func @_fused_conv_kernel(%arg0: i32, %arg1: memref<4x216xf32, #tpu.memory_space<vmem>>, %arg2: memref<216x1024xf32, #tpu.memory_space<vmem>>, %arg3: memref<4x1xf32, #tpu.memory_space<vmem>>, %arg4: memref<4x1024xf32, #tpu.memory_space<vmem>>) attributes {dimension_semantics = [#tpu.dimension_semantics<parallel>], iteration_bounds = array<i64: 8>, scalar_prefetch = 0 : i64, scratch_operands = 0 : i64, tpu.core_type = #tpu.core_type<tc>, window_params = [{pipeline_mode = #tpu.pipeline_mode<synchronous>, transform_indices = @transform_0, window_bounds = array<i64: 4, 216>}, {transform_indices = @transform_1, window_bounds = array<i64: 216, 1024>}, {pipeline_mode = #tpu.pipeline_mode<synchronous>, transform_indices = @transform_2, window_bounds = array<i64: 4, 1>}, {transform_indices = @transform_3, window_bounds = array<i64: 4, 1024>}]} {
    %c0 = arith.constant 0 : index
    %c0_0 = arith.constant 0 : index
    %0 = vector.load %arg1[%c0, %c0_0] : memref<4x216xf32, #tpu.memory_space<vmem>>, vector<4x216xf32>
    %c0_1 = arith.constant 0 : index
    %c0_2 = arith.constant 0 : index
    %1 = vector.load %arg2[%c0_1, %c0_2] : memref<216x1024xf32, #tpu.memory_space<vmem>>, vector<216x1024xf32>
    %cst = arith.constant dense<0.000000e+00> : vector<4x1024xf32>
    %2 = tpu.matmul %0, %1, %cst {dimension_numbers = #tpu.dot_dimension_numbers<[1], [0], [0], [1], [0, 0, 1, 1], [], []>} : vector<4x216xf32>, vector<216x1024xf32>, vector<4x1024xf32> -> vector<4x1024xf32>
    %c0_3 = arith.constant 0 : index
    %c0_4 = arith.constant 0 : index
    %3 = vector.load %arg3[%c0_3, %c0_4] : memref<4x1xf32, #tpu.memory_space<vmem>>, vector<4x1xf32>
    %4 = vector.broadcast %3 : vector<4x1xf32> to vector<4x1024xf32>
    %5 = arith.addf %2, %4 : vector<4x1024xf32>
    %c0_5 = arith.constant 0 : index
    %c0_6 = arith.constant 0 : index
    %6 = vector.load %arg4[%c0_5, %c0_6] : memref<4x1024xf32, #tpu.memory_space<vmem>>, vector<4x1024xf32>
    tpu.vector_store %arg4[%c0_5, %c0_6], %5 {strides = array<i32>} : memref<4x1024xf32, #tpu.memory_space<vmem>>, vector<4x1024xf32>,
    return
  }
  func.func @transform_0(%arg0: i32) -> (i32, i32) {
    %c0_i32 = arith.constant 0 : i32
    %c0_i32_0 = arith.constant 0 : i32
    %c0_i32_1 = arith.constant 0 : i32
    return %c0_i32, %c0_i32_0 : i32, i32
  }
  func.func @transform_1(%arg0: i32) -> (i32, i32) {
    %c0_i32 = arith.constant 0 : i32
    %c0_i32_0 = arith.constant 0 : i32
    return %c0_i32, %arg0 : i32, i32
  }
  func.func @transform_2(%arg0: i32) -> (i32, i32) {
    %c0_i32 = arith.constant 0 : i32
    %c0_i32_0 = arith.constant 0 : i32
    %c0_i32_1 = arith.constant 0 : i32
    return %c0_i32, %c0_i32_0 : i32, i32
  }
  func.func @transform_3(%arg0: i32) -> (i32, i32) {
    %c0_i32 = arith.constant 0 : i32
    %c0_i32_0 = arith.constant 0 : i32
    return %c0_i32, %arg0 : i32, i32
  }
}

</mosaic_0001>

<llo_original>
// kernel: hourglass_forward.6
$region0: #{hourglass_forward.6}
  #allocation0 [shape = 'u32[]', space=smem, size = 0x4, offset = 0x4, fixed_abs, tag = 'smem constant byte address 0x4 - core index']
  #allocation1 [shape = 'u32[144,128]{1,0:T(1,128)}', space=vmem, size = 0x12000, scoped, tag = 'internal scratch']
  %s0 = inlined_call_operand.vmem [shape: f32[8,108], index: 0, kind: input, shape index: {}]
  %s1 = inlined_call_operand.vmem [shape: f32[108,1024], index: 1, kind: input, shape index: {}]
  %s2 = inlined_call_operand.vmem [shape: f32[8,1], index: 2, kind: input, shape index: {}]
  %s3 = inlined_call_operand.vmem [shape: f32[8,1024], index: 3, kind: output, shape index: {}]
  %s4 = sld [smem:[#allocation0]]
  $region68: #{hourglass_forward.6} parent=0
    _
  %s6 = ssub.s32 1, %s4
  %s7 = scalar_select 0, %s6, %s4
  $region1: #{hourglass_forward.6} parent=0
    #allocation2 [shape = 'u8[458752]{0}', space=vmem, size = 0x70000, scoped, tag = 'input window, operand 1']
    loop: start=0, step=1, limit=4
    $region2: #{hourglass_forward.6} parent=1 // loop_pre_header
      _
    $region3: #{hourglass_forward.6} parent=1 // loop_header
      %s9 = sphi 0, %s13
      %p10 = scmp.ge.s32.totalorder %s9, 4
      %s17 = sphi 0, %s17
      %s19 = sphi 0, %s17
      %s20 = sphi 0, %s19
      %s34 = sphi 0, %s20
      %s40 = sphi 0, %s42
      %s43 = sphi 0, %s40
      %s44 = sphi 0, %s43
      %s60 = sphi 0, %s44
      %s64 = sphi 0, %s64
      %s66 = sphi 0, %s64
      %s67 = sphi 0, %s66
      %s81 = sphi 0, %s67
      %s87 = sphi 0, %s89
      %s90 = sphi 0, %s87
      %s91 = sphi 0, %s90
      %s107 = sphi 0, %s91
    $region4: #{hourglass_forward.6} parent=1 // loop_header_branch
      %12 = sbr.rel (%p10) target = $region8
    $region5: #{hourglass_forward.6} parent=1 // loop_body
      %s14 = ssub.s32 %s9, 1
      %s15 = ssub.s32 %s9, 2
      %s16 = sadd.s32 %s9, 1
      %s18 = sadd.s32 %s17, 1
      %p21 = scmp.eq.s32.totalorder %s9, 1
      %p22 = scmp.ne.s32.totalorder %s17, %s19
      %p23 = scmp.eq.s32.totalorder %s9, 0
      %p24 = por %p22, %p23
      %p25 = scmp.ne.s32.totalorder %s17, %s19
      %p26 = scmp.eq.s32.totalorder %s14, 1
      %p27 = por %p25, %p26
      %p28 = scmp.ne.s32.totalorder %s19, %s20
      %p29 = scmp.eq.s32.totalorder %s14, 0
      %p30 = por %p28, %p29
      %p31 = scmp.ne.s32.totalorder %s19, %s20
      %p32 = scmp.eq.s32.totalorder %s15, 1
      %p33 = por %p31, %p32
      %p35 = scmp.ne.s32.totalorder %s20, %s34
      %p36 = scmp.eq.s32.totalorder %s15, 0
      %p37 = por %p35, %p36
      %s38 = ssub.s32 %s9, %s16
      %p39 = scmp.eq.s32.totalorder %s38, 0
      %s41 = sadd.s32 %s40, 1
      %s42 = scalar_select %p39, %s40, %s41
      %p45 = pneg %p39
      %p46 = scmp.eq.s32.totalorder %s9, 1
      %p47 = por %p45, %p46
      %p48 = scmp.ne.s32.totalorder %s40, %s43
      %p49 = scmp.eq.s32.totalorder %s9, 0
      %p50 = por %p48, %p49
      %p51 = scmp.ne.s32.totalorder %s40, %s43
      %p52 = scmp.eq.s32.totalorder %s14, 1
      %p53 = por %p51, %p52
      %p54 = scmp.ne.s32.totalorder %s43, %s44
      %p55 = scmp.eq.s32.totalorder %s14, 0
      %p56 = por %p54, %p55
      %p57 = scmp.ne.s32.totalorder %s43, %s44
      %p58 = scmp.eq.s32.totalorder %s15, 1
      %p59 = por %p57, %p58
      %p61 = scmp.ne.s32.totalorder %s44, %s60
      %p62 = scmp.eq.s32.totalorder %s15, 0
      %p63 = por %p61, %p62
      %s65 = sadd.s32 %s64, 1
      %p68 = scmp.eq.s32.totalorder %s9, 1
      %p69 = scmp.ne.s32.totalorder %s64, %s66
      %p70 = scmp.eq.s32.totalorder %s9, 0
      %p71 = por %p69, %p70
      %p72 = scmp.ne.s32.totalorder %s64, %s66
      %p73 = scmp.eq.s32.totalorder %s14, 1
      %p74 = por %p72, %p73
      %p75 = scmp.ne.s32.totalorder %s66, %s67
      %p76 = scmp.eq.s32.totalorder %s14, 0
      %p77 = por %p75, %p76
      %p78 = scmp.ne.s32.totalorder %s66, %s67
      %p79 = scmp.eq.s32.totalorder %s15, 1
      %p80 = por %p78, %p79
      %p82 = scmp.ne.s32.totalorder %s67, %s81
      %p83 = scmp.eq.s32.totalorder %s15, 0
      %p84 = por %p82, %p83
      %s85 = ssub.s32 %s9, %s16
      %p86 = scmp.eq.s32.totalorder %s85, 0
      %s88 = sadd.s32 %s87, 1
      %s89 = scalar_select %p86, %s87, %s88
      %p92 = pneg %p86
      %p93 = scmp.eq.s32.totalorder %s9, 1
      %p94 = por %p92, %p93
      %p95 = scmp.ne.s32.totalorder %s87, %s90
      %p96 = scmp.eq.s32.totalorder %s9, 0
      %p97 = por %p95, %p96
      %p98 = scmp.ne.s32.totalorder %s87, %s90
      %p99 = scmp.eq.s32.totalorder %s14, 1
      %p100 = por %p98, %p99
      %p101 = scmp.ne.s32.totalorder %s90, %s91
      %p102 = scmp.eq.s32.totalorder %s14, 0
      %p103 = por %p101, %p102
      %p104 = scmp.ne.s32.totalorder %s90, %s91
      %p105 = scmp.eq.s32.totalorder %s15, 1
      %p106 = por %p104, %p105
      %p108 = scmp.ne.s32.totalorder %s91, %s107
      %p109 = scmp.eq.s32.totalorder %s15, 0
      %p110 = por %p108, %p109
      %p111 = scmp.le.s32.totalorder 1, %s9
      %p112 = scmp.lt.s32.totalorder %s9, 3
      %p113 = pnand %p111, %p112
      %p114 = pneg %p113
      // Predicated region
      $region9: #{hourglass_forward.6} parent=5 // pred_check
        _
      $region10: #{hourglass_forward.6} parent=5 // pred_check_branch
        %116 = sbr.rel (%p113) target = $region12
      $region11: #{hourglass_forward.6} parent=5 // pred_region
        %s117 = ssub.s32 %s9, 1
        // Predicated region
        $region13: #{hourglass_forward.6} parent=11 // pred_check
          %p118 = pneg %p30
        $region14: #{hourglass_forward.6} parent=11 // pred_check_branch
          %120 = sbr.rel (%p118) target = $region16
        $region15: #{hourglass_forward.6} parent=11 // pred_region
          _
        $region16: #{hourglass_forward.6} parent=11 // pred_fallthru
          _
        // Predicated region
        $region17: #{hourglass_forward.6} parent=11 // pred_check
          %p121 = pneg %p77
        $region18: #{hourglass_forward.6} parent=11 // pred_check_branch
          %123 = sbr.rel (%p121) target = $region20
        $region19: #{hourglass_forward.6} parent=11 // pred_region
          _
        $region20: #{hourglass_forward.6} parent=11 // pred_fallthru
          _
      $region12: #{hourglass_forward.6} parent=5 // pred_fallthru
        _
      %p124 = scmp.lt.s32.totalorder %s9, 2
      // Predicated region
      $region21: #{hourglass_forward.6} parent=5 // pred_check
        %p125 = pneg %p124
      $region22: #{hourglass_forward.6} parent=5 // pred_check_branch
        %127 = sbr.rel (%p125) target = $region24
      $region23: #{hourglass_forward.6} parent=5 // pred_region
        // Predicated region
        $region25: #{hourglass_forward.6} parent=23 // pred_check
          %p128 = pneg %p50
        $region26: #{hourglass_forward.6} parent=23 // pred_check_branch
          %130 = sbr.rel (%p128) target = $region28
        $region27: #{hourglass_forward.6} parent=23 // pred_region
          %s131 = sand.u32 %s40, 1
          %s132 = sand.u32 %s40, 1
          %s133 = smul.addr %s132, 448
          %s134 = scalar_lea.vmem [#allocation2], %s133
          %s135 = smul.u32 4, %s9
          %s136 = smul.addr %s135, 8
          %s137 = scalar_lea.vmem %s1, %s136
          // Predicated region
          $region29: #{hourglass_forward.6} parent=27 // pred_check
            _
          $region30: #{hourglass_forward.6} parent=27 // pred_check_branch
            %139 = sbr.rel (0) target = $region32
          $region31: #{hourglass_forward.6} parent=27 // pred_region
            // Predicated region
            $region33: #{hourglass_forward.6} parent=31 // pred_check
              _
            $region34: #{hourglass_forward.6} parent=31 // pred_check_branch
              %141 = sbr.rel (0) target = $region36
            $region35: #{hourglass_forward.6} parent=31 // pred_region
              loop: start=0, step=1, limit=1
              $region37: #{hourglass_forward.6} parent=35 // loop_pre_header
                _
              $region38: #{hourglass_forward.6} parent=35 // loop_header
                %s143 = sphi 0, %s147
                %p144 = scmp.ge.s32.totalorder %s143, 1
                %s148 = sphi %s137, %s137
                %s149 = sphi %s134, %s134
              $region39: #{hourglass_forward.6} parent=35 // loop_header_branch
                %146 = sbr.rel (%p144) target = $region43
              $region40: #{hourglass_forward.6} parent=35 // loop_body
                %v150 = vld [vmem:[%s148] sm:$0xff]
                %151 = vst [vmem:[%s149] sm:$0xff] %v150
                %v152 = vld [vmem:[%s148 + $0x8] sm:$0xff]
                %153 = vst [vmem:[%s149 + $0x8] sm:$0xff] %v152
                %v154 = vld [vmem:[%s148 + $0x10] sm:$0xff]
                %155 = vst [vmem:[%s149 + $0x10] sm:$0xff] %v154
                %v156 = vld [vmem:[%s148 + $0x18] sm:$0xff]
                %157 = vst [vmem:[%s149 + $0x18] sm:$0xff] %v156
                %v158 = vld [vmem:[%s148 + $0x40] sm:$0xff]
                %159 = vst [vmem:[%s149 + $0x20] sm:$0xff] %v158
                %v160 = vld [vmem:[%s148 + $0x48] sm:$0xff]
                %161 = vst [vmem:[%s149 + $0x28] sm:$0xff] %v160
                %v162 = vld [vmem:[%s148 + $0x50] sm:$0xff]
                %163 = vst [vmem:[%s149 + $0x30] sm:$0xff] %v162
                %v164 = vld [vmem:[%s148 + $0x58] sm:$0xff]
                %165 = vst [vmem:[%s149 + $0x38] sm:$0xff] %v164
                %v166 = vld [vmem:[%s148 + $0x80] sm:$0xff]
                %167 = vst [vmem:[%s149 + $0x40] sm:$0xff] %v166
                %v168 = vld [vmem:[%s148 + $0x88] sm:$0xff]
                %169 = vst [vmem:[%s149 + $0x48] sm:$0xff] %v168
                %v170 = vld [vmem:[%s148 + $0x90] sm:$0xff]
                %171 = vst [vmem:[%s149 + $0x50] sm:$0xff] %v170
                %v172 = vld [vmem:[%s148 + $0x98] sm:$0xff]
                %173 = vst [vmem:[%s149 + $0x58] sm:$0xff] %v172
                %v174 = vld [vmem:[%s148 + $0xc0] sm:$0xff]
                %175 = vst [vmem:[%s149 + $0x60] sm:$0xff] %v174
                %v176 = vld [vmem:[%s148 + $0xc8] sm:$0xff]
                %177 = vst [vmem:[%s149 + $0x68] sm:$0xff] %v176
                %v178 = vld [vmem:[%s148 + $0xd0] sm:$0xff]
                %179 = vst [vmem:[%s149 + $0x70] sm:$0xff] %v178
                %v180 = vld [vmem:[%s148 + $0xd8] sm:$0xff]
                %181 = vst [vmem:[%s149 + $0x78] sm:$0xff] %v180
                %v182 = vld [vmem:[%s148 + $0x100] sm:$0xff]
                %183 = vst [vmem:[%s149 + $0x80] sm:$0xff] %v182
                %v184 = vld [vmem:[%s148 + $0x108] sm:$0xff]
                %185 = vst [vmem:[%s149 + $0x88] sm:$0xff] %v184
                %v186 = vld [vmem:[%s148 + $0x110] sm:$0xff]
                %187 = vst [vmem:[%s149 + $0x90] sm:$0xff] %v186
                %v188 = vld [vmem:[%s148 + $0x118] sm:$0xff]
                %189 = vst [vmem:[%s149 + $0x98] sm:$0xff] %v188
                %v190 = vld [vmem:[%s148 + $0x140] sm:$0xff]
                %191 = vst [vmem:[%s149 + $0xa0] sm:$0xff] %v190
                %v192 = vld [vmem:[%s148 + $0x148] sm:$0xff]
                %193 = vst [vmem:[%s149 + $0xa8] sm:$0xff] %v192
                %v194 = vld [vmem:[%s148 + $0x150] sm:$0xff]
                %195 = vst [vmem:[%s149 + $0xb0] sm:$0xff] %v194
                %v196 = vld [vmem:[%s148 + $0x158] sm:$0xff]
                %197 = vst [vmem:[%s149 + $0xb8] sm:$0xff] %v196
                %v198 = vld [vmem:[%s148 + $0x180] sm:$0xff]
                %199 = vst [vmem:[%s149 + $0xc0] sm:$0xff] %v198
                %v200 = vld [vmem:[%s148 + $0x188] sm:$0xff]
                %201 = vst [vmem:[%s149 + $0xc8] sm:$0xff] %v200
                %v202 = vld [vmem:[%s148 + $0x190] sm:$0xff]
                %203 = vst [vmem:[%s149 + $0xd0] sm:$0xff] %v202
                %v204 = vld [vmem:[%s148 + $0x198] sm:$0xff]
                %205 = vst [vmem:[%s149 + $0xd8] sm:$0xff] %v204
                %v206 = vld [vmem:[%s148 + $0x1c0] sm:$0xff]
                %207 = vst [vmem:[%s149 + $0xe0] sm:$0xff] %v206
                %v208 = vld [vmem:[%s148 + $0x1c8] sm:$0xff]
                %209 = vst [vmem:[%s149 + $0xe8] sm:$0xff] %v208
                %v210 = vld [vmem:[%s148 + $0x1d0] sm:$0xff]
                %211 = vst [vmem:[%s149 + $0xf0] sm:$0xff] %v210
                %v212 = vld [vmem:[%s148 + $0x1d8] sm:$0xff]
                %213 = vst [vmem:[%s149 + $0xf8] sm:$0xff] %v212
                %v214 = vld [vmem:[%s148 + $0x200] sm:$0xff]
                %215 = vst [vmem:[%s149 + $0x100] sm:$0xff] %v214
                %v216 = vld [vmem:[%s148 + $0x208] sm:$0xff]
                %217 = vst [vmem:[%s149 + $0x108] sm:$0xff] %v216
                %v218 = vld [vmem:[%s148 + $0x210] sm:$0xff]
                %219 = vst [vmem:[%s149 + $0x110] sm:$0xff] %v218
                %v220 = vld [vmem:[%s148 + $0x218] sm:$0xff]
                %221 = vst [vmem:[%s149 + $0x118] sm:$0xff] %v220
                %v222 = vld [vmem:[%s148 + $0x240] sm:$0xff]
                %223 = vst [vmem:[%s149 + $0x120] sm:$0xff] %v222
                %v224 = vld [vmem:[%s148 + $0x248] sm:$0xff]
                %225 = vst [vmem:[%s149 + $0x128] sm:$0xff] %v224
                %v226 = vld [vmem:[%s148 + $0x250] sm:$0xff]
                %227 = vst [vmem:[%s149 + $0x130] sm:$0xff] %v226
                %v228 = vld [vmem:[%s148 + $0x258] sm:$0xff]
                %229 = vst [vmem:[%s149 + $0x138] sm:$0xff] %v228
                %v230 = vld [vmem:[%s148 + $0x280] sm:$0xff]
                %231 = vst [vmem:[%s149 + $0x140] sm:$0xff] %v230
                %v232 = vld [vmem:[%s148 + $0x288] sm:$0xff]
                %233 = vst [vmem:[%s149 + $0x148] sm:$0xff] %v232
                %v234 = vld [vmem:[%s148 + $0x290] sm:$0xff]
                %235 = vst [vmem:[%s149 + $0x150] sm:$0xff] %v234
                %v236 = vld [vmem:[%s148 + $0x298] sm:$0xff]
                %237 = vst [vmem:[%s149 + $0x158] sm:$0xff] %v236
                %v238 = vld [vmem:[%s148 + $0x2c0] sm:$0xff]
                %239 = vst [vmem:[%s149 + $0x160] sm:$0xff] %v238
                %v240 = vld [vmem:[%s148 + $0x2c8] sm:$0xff]
                %241 = vst [vmem:[%s149 + $0x168] sm:$0xff] %v240
                %v242 = vld [vmem:[%s148 + $0x2d0] sm:$0xff]
                %243 = vst [vmem:[%s149 + $0x170] sm:$0xff] %v242
                %v244 = vld [vmem:[%s148 + $0x2d8] sm:$0xff]
                %245 = vst [vmem:[%s149 + $0x178] sm:$0xff] %v244
                %v246 = vld [vmem:[%s148 + $0x300] sm:$0xff]
                %247 = vst [vmem:[%s149 + $0x180] sm:$0xff] %v246
                %v248 = vld [vmem:[%s148 + $0x308] sm:$0xff]
                %249 = vst [vmem:[%s149 + $0x188] sm:$0xff] %v248
                %v250 = vld [vmem:[%s148 + $0x310] sm:$0xff]
                %251 = vst [vmem:[%s149 + $0x190] sm:$0xff] %v250
                %v252 = vld [vmem:[%s148 + $0x318] sm:$0xff]
                %253 = vst [vmem:[%s149 + $0x198] sm:$0xff] %v252
                %v254 = vld [vmem:[%s148 + $0x340] sm:$0xff]
                %255 = vst [vmem:[%s149 + $0x1a0] sm:$0xff] %v254
                %v256 = vld [vmem:[%s148 + $0x348] sm:$0xff]
                %257 = vst [vmem:[%s149 + $0x1a8] sm:$0xff] %v256
                %v258 = vld [vmem:[%s148 + $0x350] sm:$0xff]
                %259 = vst [vmem:[%s149 + $0x1b0] sm:$0xff] %v258
                %v260 = vld [vmem:[%s148 + $0x358] sm:$0xff]
                %261 = vst [vmem:[%s149 + $0x1b8] sm:$0xff] %v260
              $region41: #{hourglass_forward.6} parent=35 // loop_footer
                %s147 = sadd.s32 1, %s143
              $region42: #{hourglass_forward.6} parent=35 // loop_footer_branch
                %142 = sbr.rel target = $region38
              $region43: #{hourglass_forward.6} parent=35 // loop_exit
                _
            $region36: #{hourglass_forward.6} parent=31 // pred_fallthru
              _
            // Predicated region
            $region44: #{hourglass_forward.6} parent=31 // pred_check
              _
            $region45: #{hourglass_forward.6} parent=31 // pred_check_branch
              %263 = sbr.rel target = $region47
            $region46: #{hourglass_forward.6} parent=31 // pred_region
              _
            $region47: #{hourglass_forward.6} parent=31 // pred_fallthru
              _
          $region32: #{hourglass_forward.6} parent=27 // pred_fallthru
            _
          %264 = vnop
        $region28: #{hourglass_forward.6} parent=23 // pred_fallthru
          _
      $region24: #{hourglass_forward.6} parent=5 // pred_fallthru
        _
      %p265 = scmp.le.s32.totalorder 1, %s9
      %p266 = scmp.lt.s32.totalorder %s9, 3
      %p267 = pnand %p265, %p266
      %p268 = pneg %p267
      // Predicated region
      $region48: #{hourglass_forward.6} parent=5 // pred_check
        _
      $region49: #{hourglass_forward.6} parent=5 // pred_check_branch
        %270 = sbr.rel (%p267) target = $region51
      $region50: #{hourglass_forward.6} parent=5 // pred_region
        %s271 = ssub.s32 %s9, 1
        %s272 = sand.u32 %s43, 1
        %s273 = sand.u32 %s43, 1
        %s274 = smul.addr %s273, 448
        %s275 = scalar_lea.vmem [#allocation2], %s274
        // Predicated region
        $region52: #{hourglass_forward.6} parent=50 // pred_check
          %p276 = pneg %p56
        $region53: #{hourglass_forward.6} parent=50 // pred_check_branch
          %278 = sbr.rel (%p276) target = $region55
        $region54: #{hourglass_forward.6} parent=50 // pred_region
          _
        $region55: #{hourglass_forward.6} parent=50 // pred_fallthru
          _
        %p279 = pneg %p30
        %p280 = pneg %p27
        %s281 = sand.u32 %s43, 1
        %s282 = sand.u32 %s43, 1
        %s283 = smul.addr %s282, 448
        %s284 = scalar_lea.vmem [#allocation2], %s283
        %p285 = pneg %p56
        %p286 = pneg %p53
        %p287 = pneg %p77
        %p288 = pneg %p74
        %p289 = pneg %p103
        %p290 = pneg %p100
        %s291 = smul.u32 4, %s14
        %p292 = scmp.lt.s32.totalorder %s291, 7
        %s293 = scalar_select %p292, %s291, 7
        %s294 = smul.addr %s293, 8
        %s295 = scalar_lea.vmem %s3, %s294
        %s296 = smul.u32 4, %s14
        %s297 = smul.u32 4, %s14
        %p298 = scmp.lt.s32.totalorder %s297, 7
        %s299 = scalar_select %p298, %s297, 7
        %s300 = smul.addr %s299, 8
        %s301 = scalar_lea.vmem %s3, %s300
        %s302 = smul.u32 4, %s14
        %v303 = vld [vmem:[%s0] sm:$0xff]
        %v304 = vld [vmem:[%s275] sm:$0xff]
        %v305 = vld [vmem:[%s275 + $0x8] sm:$0xff]
        %v306 = vld [vmem:[%s275 + $0x10] sm:$0xff]
        %v307 = vld [vmem:[%s275 + $0x18] sm:$0xff]
        %v308 = vld [vmem:[%s275 + $0x20] sm:$0xff]
        %v309 = vld [vmem:[%s275 + $0x28] sm:$0xff]
        %v310 = vld [vmem:[%s275 + $0x30] sm:$0xff]
        %v311 = vld [vmem:[%s275 + $0x38] sm:$0xff]
        %v312 = vld [vmem:[%s275 + $0x40] sm:$0xff]
        %v313 = vld [vmem:[%s275 + $0x48] sm:$0xff]
        %v314 = vld [vmem:[%s275 + $0x50] sm:$0xff]
        %v315 = vld [vmem:[%s275 + $0x58] sm:$0xff]
        %v316 = vld [vmem:[%s275 + $0x60] sm:$0xff]
        %v317 = vld [vmem:[%s275 + $0x68] sm:$0xff]
        %v318 = vld [vmem:[%s275 + $0x70] sm:$0xff]
        %v319 = vld [vmem:[%s275 + $0x78] sm:$0xff]
        %v320 = vld [vmem:[%s275 + $0x80] sm:$0xff]
        %v321 = vld [vmem:[%s275 + $0x88] sm:$0xff]
        %v322 = vld [vmem:[%s275 + $0x90] sm:$0xff]
        %v323 = vld [vmem:[%s275 + $0x98] sm:$0xff]
        %v324 = vld [vmem:[%s275 + $0xa0] sm:$0xff]
        %v325 = vld [vmem:[%s275 + $0xa8] sm:$0xff]
        %v326 = vld [vmem:[%s275 + $0xb0] sm:$0xff]
        %v327 = vld [vmem:[%s275 + $0xb8] sm:$0xff]
        %v328 = vld [vmem:[%s275 + $0xc0] sm:$0xff]
        %v329 = vld [vmem:[%s275 + $0xc8] sm:$0xff]
        %v330 = vld [vmem:[%s275 + $0xd0] sm:$0xff]
        %v331 = vld [vmem:[%s275 + $0xd8] sm:$0xff]
        %v332 = vld [vmem:[%s275 + $0xe0] sm:$0xff]
        %v333 = vld [vmem:[%s275 + $0xe8] sm:$0xff]
        %v334 = vld [vmem:[%s275 + $0xf0] sm:$0xff]
        %v335 = vld [vmem:[%s275 + $0xf8] sm:$0xff]
        %v336 = vld [vmem:[%s275 + $0x100] sm:$0xff]
        %v337 = vld [vmem:[%s275 + $0x108] sm:$0xff]
        %v338 = vld [vmem:[%s275 + $0x110] sm:$0xff]
        %v339 = vld [vmem:[%s275 + $0x118] sm:$0xff]
        %v340 = vld [vmem:[%s275 + $0x120] sm:$0xff]
        %v341 = vld [vmem:[%s275 + $0x128] sm:$0xff]
        %v342 = vld [vmem:[%s275 + $0x130] sm:$0xff]
        %v343 = vld [vmem:[%s275 + $0x138] sm:$0xff]
        %v344 = vld [vmem:[%s275 + $0x140] sm:$0xff]
        %v345 = vld [vmem:[%s275 + $0x148] sm:$0xff]
        %v346 = vld [vmem:[%s275 + $0x150] sm:$0xff]
        %v347 = vld [vmem:[%s275 + $0x158] sm:$0xff]
        %v348 = vld [vmem:[%s275 + $0x160] sm:$0xff]
        %v349 = vld [vmem:[%s275 + $0x168] sm:$0xff]
        %v350 = vld [vmem:[%s275 + $0x170] sm:$0xff]
        %v351 = vld [vmem:[%s275 + $0x178] sm:$0xff]
        %v352 = vld [vmem:[%s275 + $0x180] sm:$0xff]
        %v353 = vld [vmem:[%s275 + $0x188] sm:$0xff]
        %v354 = vld [vmem:[%s275 + $0x190] sm:$0xff]
        %v355 = vld [vmem:[%s275 + $0x198] sm:$0xff]
        %v356 = vld [vmem:[%s275 + $0x1a0] sm:$0xf]
        %v357 = vld [vmem:[%s275 + $0x1a8] sm:$0xf]
        %v358 = vld [vmem:[%s275 + $0x1b0] sm:$0xf]
        %v359 = vld [vmem:[%s275 + $0x1b8] sm:$0xf]
        %v360 = vld [vmem:[%s2] sm:$0xff]
        %362 = vset.pattern.permute.xlu0 0
        %363 = vperm.xlu0 %362, %v360
        %v364 = vpop.permute.xlu0 %363
        %vm366 = vcmask 883712
        %v368 = vsel %vm366, %v303, 0
        %vm370 = vcmask 1043456
        %v372 = vsel %vm370, %v356, 0
        %v375 = vsel %vm370, %v357, 0
        %v378 = vsel %vm370, %v358, 0
        %v381 = vsel %vm370, %v359, 0
        %383 = vmatprep.subr.mxu0 %v305
        %384 = vmatpush1.msra.mxu0 %v304
        %385 = vmatprep.subr.mxu0 %v309
        %386 = vmatpush1.msra.mxu0 %v308
        %387 = vmatprep.subr.mxu0 %v313
        %388 = vmatpush1.msra.mxu0 %v312
        %389 = vmatprep.subr.mxu0 %v317
        %390 = vmatpush1.msra.mxu0 %v316
        %391 = vmatprep.subr.mxu0 %v321
        %392 = vmatpush1.msra.mxu0 %v320
        %393 = vmatprep.subr.mxu0 %v325
        %394 = vmatpush1.msra.mxu0 %v324
        %395 = vmatprep.subr.mxu0 %v329
        %396 = vmatpush1.msra.mxu0 %v328
        %397 = vmatprep.subr.mxu0 %v333
        %398 = vmatpush1.msra.mxu0 %v332
        %399 = vmatprep.subr.mxu0 %v337
        %400 = vmatpush1.msra.mxu0 %v336
        %401 = vmatprep.subr.mxu0 %v341
        %402 = vmatpush1.msra.mxu0 %v340
        %403 = vmatprep.subr.mxu0 %v345
        %404 = vmatpush1.msra.mxu0 %v344
        %405 = vmatprep.subr.mxu0 %v349
        %406 = vmatpush1.msra.mxu0 %v348
        %407 = vmatprep.subr.mxu0 %v353
        %408 = vmatpush1.msra.mxu0 %v352
        %409 = vmatprep.subr.mxu0 %v375
        %410 = vmatpush1.msra.mxu0 %v372
        %411 = vmatprep.subr.mxu0 0.0
        %412 = vmatpush1.msra.mxu0 0.0
        %413 = vmatprep.subr.mxu0 0.0
        %414 = vmatpush1.msra.mxu0 0.0
        %415 = vmatprep.subr.mxu0 0.0
        %416 = vmatpush1.msra.mxu0 0.0
        %417 = vmatprep.subr.mxu0 0.0
        %418 = vmatpush1.msra.mxu0 0.0
        %419 = vmatprep.subr.mxu0 0.0
        %420 = vmatpush1.msra.mxu0 0.0
        %421 = vmatprep.subr.mxu0 0.0
        %422 = vmatpush1.msra.mxu0 0.0
        %423 = vmatprep.subr.mxu0 0.0
        %424 = vmatpush1.msra.mxu0 0.0
        %425 = vmatprep.subr.mxu0 0.0
        %426 = vmatpush1.msra.mxu0 0.0
        %427 = vmatprep.subr.mxu0 0.0
        %428 = vmatpush1.msra.mxu0 0.0
        %429 = vmatprep.subr.mxu0 0.0
        %430 = vmatpush1.msra.mxu0 0.0
        %431 = vmatprep.subr.mxu0 0.0
        %432 = vmatpush1.msra.mxu0 0.0
        %433 = vmatprep.subr.mxu0 0.0
        %434 = vmatpush1.msra.mxu0 0.0
        %435 = vmatprep.subr.mxu0 0.0
        %436 = vmatpush1.msra.mxu0 0.0
        %437 = vmatprep.subr.mxu0 0.0
        %438 = vmatpush1.msra.mxu0 0.0
        %439 = vmatprep.subr.mxu0 0.0
        %440 = vmatpush1.msra.mxu0 0.0
        %441 = vmatprep.subr.mxu0 0.0
        %442 = vmatpush1.msra.mxu0 0.0
        %443 = vmatprep.subr.mxu0 0.0
        %444 = vmatpush1.msra.mxu0 0.0
        %445 = vmatprep.subr.mxu0 0.0
        %446 = vmatpush1.msra.mxu0 0.0
        %447 = vmatprep.mubr.f32.mxu0 0.0
        %448 = vmatmul.mubr.f32.gmra.mrb[0].mxu0 %v368
        %v449 = vpop.f32.mrb[0].mxu0
        %v450 = vadd.f32 %v364, %v449
        %v451 = vpop.f32.mrb[0].mxu0
        %v452 = vadd.f32 %v364, %v451
        %453 = vdwg.mxu0
        %454 = vmatprep.subr.mxu0 %v307
        %455 = vmatpush1.msra.mxu0 %v306
        %456 = vmatprep.subr.mxu0 %v311
        %457 = vmatpush1.msra.mxu0 %v310
        %458 = vmatprep.subr.mxu0 %v315
        %459 = vmatpush1.msra.mxu0 %v314
        %460 = vmatprep.subr.mxu0 %v319
        %461 = vmatpush1.msra.mxu0 %v318
        %462 = vmatprep.subr.mxu0 %v323
        %463 = vmatpush1.msra.mxu0 %v322
        %464 = vmatprep.subr.mxu0 %v327
        %465 = vmatpush1.msra.mxu0 %v326
        %466 = vmatprep.subr.mxu0 %v331
        %467 = vmatpush1.msra.mxu0 %v330
        %468 = vmatprep.subr.mxu0 %v335
        %469 = vmatpush1.msra.mxu0 %v334
        %470 = vmatprep.subr.mxu0 %v339
        %471 = vmatpush1.msra.mxu0 %v338
        %472 = vmatprep.subr.mxu0 %v343
        %473 = vmatpush1.msra.mxu0 %v342
        %474 = vmatprep.subr.mxu0 %v347
        %475 = vmatpush1.msra.mxu0 %v346
        %476 = vmatprep.subr.mxu0 %v351
        %477 = vmatpush1.msra.mxu0 %v350
        %478 = vmatprep.subr.mxu0 %v355
        %479 = vmatpush1.msra.mxu0 %v354
        %480 = vmatprep.subr.mxu0 %v381
        %481 = vmatpush1.msra.mxu0 %v378
        %482 = vmatprep.subr.mxu0 0.0
        %483 = vmatpush1.msra.mxu0 0.0
        %484 = vmatprep.subr.mxu0 0.0
        %485 = vmatpush1.msra.mxu0 0.0
        %486 = vmatprep.subr.mxu0 0.0
        %487 = vmatpush1.msra.mxu0 0.0
        %488 = vmatprep.subr.mxu0 0.0
        %489 = vmatpush1.msra.mxu0 0.0
        %490 = vmatprep.subr.mxu0 0.0
        %491 = vmatpush1.msra.mxu0 0.0
        %492 = vmatprep.subr.mxu0 0.0
        %493 = vmatpush1.msra.mxu0 0.0
        %494 = vmatprep.subr.mxu0 0.0
        %495 = vmatpush1.msra.mxu0 0.0
        %496 = vmatprep.subr.mxu0 0.0
        %497 = vmatpush1.msra.mxu0 0.0
        %498 = vmatprep.subr.mxu0 0.0
        %499 = vmatpush1.msra.mxu0 0.0
        %500 = vmatprep.subr.mxu0 0.0
        %501 = vmatpush1.msra.mxu0 0.0
        %502 = vmatprep.subr.mxu0 0.0
        %503 = vmatpush1.msra.mxu0 0.0
        %504 = vmatprep.subr.mxu0 0.0
        %505 = vmatpush1.msra.mxu0 0.0
        %506 = vmatprep.subr.mxu0 0.0
        %507 = vmatpush1.msra.mxu0 0.0
        %508 = vmatprep.subr.mxu0 0.0
        %509 = vmatpush1.msra.mxu0 0.0
        %510 = vmatprep.subr.mxu0 0.0
        %511 = vmatpush1.msra.mxu0 0.0
        %512 = vmatprep.subr.mxu0 0.0
        %513 = vmatpush1.msra.mxu0 0.0
        %514 = vmatprep.subr.mxu0 0.0
        %515 = vmatpush1.msra.mxu0 0.0
        %516 = vmatprep.subr.mxu0 0.0
        %517 = vmatpush1.msra.mxu0 0.0
        %518 = vmatprep.mubr.f32.mxu0 0.0
        %519 = vmatmul.mubr.f32.gmra.mrb[0].mxu0 %v368
        %v520 = vpop.f32.mrb[0].mxu0
        %v521 = vadd.f32 %v364, %v520
        %v522 = vpop.f32.mrb[0].mxu0
        %v523 = vadd.f32 %v364, %v522
        %524 = vdwg.mxu0
        %v525 = vmax.f32 %v450, 0.0
        %v526 = vmax.f32 %v452, 0.0
        %v527 = vmax.f32 %v521, 0.0
        %v528 = vmax.f32 %v523, 0.0
        %529 = vst [vmem:[%s301] sm:$0xff] %v525
        %530 = vst [vmem:[%s301 + $0x8] sm:$0xff] %v526
        %531 = vst [vmem:[%s301 + $0x10] sm:$0xff] %v527
        %532 = vst [vmem:[%s301 + $0x18] sm:$0xff] %v528
        %s533 = smul.u32 4, %s14
        %p534 = scmp.lt.s32.totalorder %s533, 7
        %s535 = scalar_select %p534, %s533, 7
        %s536 = smul.addr %s535, 8
        %s537 = scalar_lea.vmem %s3, %s536
        // Predicated region
        $region56: #{hourglass_forward.6} parent=50 // pred_check
          %p538 = pneg %p100
        $region57: #{hourglass_forward.6} parent=50 // pred_check_branch
          %540 = sbr.rel (%p538) target = $region59
        $region58: #{hourglass_forward.6} parent=50 // pred_region
          %s541 = smul.u32 4, %s14
        $region59: #{hourglass_forward.6} parent=50 // pred_fallthru
          _
      $region51: #{hourglass_forward.6} parent=5 // pred_fallthru
        _
      %p542 = scmp.le.s32.totalorder 2, %s9
      // Predicated region
      $region60: #{hourglass_forward.6} parent=5 // pred_check
        %p543 = pneg %p542
      $region61: #{hourglass_forward.6} parent=5 // pred_check_branch
        %545 = sbr.rel (%p543) target = $region63
      $region62: #{hourglass_forward.6} parent=5 // pred_region
        %s546 = ssub.s32 %s9, 2
        // Predicated region
        $region64: #{hourglass_forward.6} parent=62 // pred_check
          %p547 = pneg %p106
        $region65: #{hourglass_forward.6} parent=62 // pred_check_branch
          %549 = sbr.rel (%p547) target = $region67
        $region66: #{hourglass_forward.6} parent=62 // pred_region
          %s550 = smul.u32 4, %s15
          %p551 = scmp.lt.s32.totalorder %s550, 7
          %s552 = scalar_select %p551, %s550, 7
          %s553 = smul.addr %s552, 8
          %s554 = scalar_lea.vmem %s3, %s553
        $region67: #{hourglass_forward.6} parent=62 // pred_fallthru
          _
      $region63: #{hourglass_forward.6} parent=5 // pred_fallthru
        _
    $region6: #{hourglass_forward.6} parent=1 // loop_footer
      %s13 = sadd.s32 1, %s9
    $region7: #{hourglass_forward.6} parent=1 // loop_footer_branch
      %8 = sbr.rel target = $region3
    $region8: #{hourglass_forward.6} parent=1 // loop_exit
      _

// kernel: hourglass_forward.7
$region0: #{hourglass_forward.7}
  #allocation0 [shape = 'u32[]', space=smem, size = 0x4, offset = 0x4, fixed_abs, tag = 'smem constant byte address 0x4 - core index']
  #allocation1 [shape = 'u32[144,128]{1,0:T(1,128)}', space=vmem, size = 0x12000, scoped, tag = 'internal scratch']
  %s0 = inlined_call_operand.vmem [shape: f32[8,216], index: 0, kind: input, shape index: {}]
  %s1 = inlined_call_operand.vmem [shape: f32[216,1024], index: 1, kind: input, shape index: {}]
  %s2 = inlined_call_operand.vmem [shape: f32[8,1], index: 2, kind: input, shape index: {}]
  %s3 = inlined_call_operand.vmem [shape: f32[8,1024], index: 3, kind: output, shape index: {}]
  %s4 = sld [smem:[#allocation0]]
  $region68: #{hourglass_forward.7} parent=0
    _
  %s6 = ssub.s32 1, %s4
  %s7 = scalar_select 0, %s6, %s4
  $region1: #{hourglass_forward.7} parent=0
    #allocation2 [shape = 'u8[884736]{0}', space=vmem, size = 0xd8000, scoped, tag = 'input window, operand 1']
    loop: start=0, step=1, limit=4
    $region2: #{hourglass_forward.7} parent=1 // loop_pre_header
      _
    $region3: #{hourglass_forward.7} parent=1 // loop_header
      %s9 = sphi 0, %s13
      %p10 = scmp.ge.s32.totalorder %s9, 4
      %s17 = sphi 0, %s17
      %s19 = sphi 0, %s17
      %s20 = sphi 0, %s19
      %s34 = sphi 0, %s20
      %s40 = sphi 0, %s42
      %s43 = sphi 0, %s40
      %s44 = sphi 0, %s43
      %s60 = sphi 0, %s44
      %s64 = sphi 0, %s64
      %s66 = sphi 0, %s64
      %s67 = sphi 0, %s66
      %s81 = sphi 0, %s67
      %s87 = sphi 0, %s89
      %s90 = sphi 0, %s87
      %s91 = sphi 0, %s90
      %s107 = sphi 0, %s91
    $region4: #{hourglass_forward.7} parent=1 // loop_header_branch
      %12 = sbr.rel (%p10) target = $region8
    $region5: #{hourglass_forward.7} parent=1 // loop_body
      %s14 = ssub.s32 %s9, 1
      %s15 = ssub.s32 %s9, 2
      %s16 = sadd.s32 %s9, 1
      %s18 = sadd.s32 %s17, 1
      %p21 = scmp.eq.s32.totalorder %s9, 1
      %p22 = scmp.ne.s32.totalorder %s17, %s19
      %p23 = scmp.eq.s32.totalorder %s9, 0
      %p24 = por %p22, %p23
      %p25 = scmp.ne.s32.totalorder %s17, %s19
      %p26 = scmp.eq.s32.totalorder %s14, 1
      %p27 = por %p25, %p26
      %p28 = scmp.ne.s32.totalorder %s19, %s20
      %p29 = scmp.eq.s32.totalorder %s14, 0
      %p30 = por %p28, %p29
      %p31 = scmp.ne.s32.totalorder %s19, %s20
      %p32 = scmp.eq.s32.totalorder %s15, 1
      %p33 = por %p31, %p32
      %p35 = scmp.ne.s32.totalorder %s20, %s34
      %p36 = scmp.eq.s32.totalorder %s15, 0
      %p37 = por %p35, %p36
      %s38 = ssub.s32 %s9, %s16
      %p39 = scmp.eq.s32.totalorder %s38, 0
      %s41 = sadd.s32 %s40, 1
      %s42 = scalar_select %p39, %s40, %s41
      %p45 = pneg %p39
      %p46 = scmp.eq.s32.totalorder %s9, 1
      %p47 = por %p45, %p46
      %p48 = scmp.ne.s32.totalorder %s40, %s43
      %p49 = scmp.eq.s32.totalorder %s9, 0
      %p50 = por %p48, %p49
      %p51 = scmp.ne.s32.totalorder %s40, %s43
      %p52 = scmp.eq.s32.totalorder %s14, 1
      %p53 = por %p51, %p52
      %p54 = scmp.ne.s32.totalorder %s43, %s44
      %p55 = scmp.eq.s32.totalorder %s14, 0
      %p56 = por %p54, %p55
      %p57 = scmp.ne.s32.totalorder %s43, %s44
      %p58 = scmp.eq.s32.totalorder %s15, 1
      %p59 = por %p57, %p58
      %p61 = scmp.ne.s32.totalorder %s44, %s60
      %p62 = scmp.eq.s32.totalorder %s15, 0
      %p63 = por %p61, %p62
      %s65 = sadd.s32 %s64, 1
      %p68 = scmp.eq.s32.totalorder %s9, 1
      %p69 = scmp.ne.s32.totalorder %s64, %s66
      %p70 = scmp.eq.s32.totalorder %s9, 0
      %p71 = por %p69, %p70
      %p72 = scmp.ne.s32.totalorder %s64, %s66
      %p73 = scmp.eq.s32.totalorder %s14, 1
      %p74 = por %p72, %p73
      %p75 = scmp.ne.s32.totalorder %s66, %s67
      %p76 = scmp.eq.s32.totalorder %s14, 0
      %p77 = por %p75, %p76
      %p78 = scmp.ne.s32.totalorder %s66, %s67
      %p79 = scmp.eq.s32.totalorder %s15, 1
      %p80 = por %p78, %p79
      %p82 = scmp.ne.s32.totalorder %s67, %s81
      %p83 = scmp.eq.s32.totalorder %s15, 0
      %p84 = por %p82, %p83
      %s85 = ssub.s32 %s9, %s16
      %p86 = scmp.eq.s32.totalorder %s85, 0
      %s88 = sadd.s32 %s87, 1
      %s89 = scalar_select %p86, %s87, %s88
      %p92 = pneg %p86
      %p93 = scmp.eq.s32.totalorder %s9, 1
      %p94 = por %p92, %p93
      %p95 = scmp.ne.s32.totalorder %s87, %s90
      %p96 = scmp.eq.s32.totalorder %s9, 0
      %p97 = por %p95, %p96
      %p98 = scmp.ne.s32.totalorder %s87, %s90
      %p99 = scmp.eq.s32.totalorder %s14, 1
      %p100 = por %p98, %p99
      %p101 = scmp.ne.s32.totalorder %s90, %s91
      %p102 = scmp.eq.s32.totalorder %s14, 0
      %p103 = por %p101, %p102
      %p104 = scmp.ne.s32.totalorder %s90, %s91
      %p105 = scmp.eq.s32.totalorder %s15, 1
      %p106 = por %p104, %p105
      %p108 = scmp.ne.s32.totalorder %s91, %s107
      %p109 = scmp.eq.s32.totalorder %s15, 0
      %p110 = por %p108, %p109
      %p111 = scmp.le.s32.totalorder 1, %s9
      %p112 = scmp.lt.s32.totalorder %s9, 3
      %p113 = pnand %p111, %p112
      %p114 = pneg %p113
      // Predicated region
      $region9: #{hourglass_forward.7} parent=5 // pred_check
        _
      $region10: #{hourglass_forward.7} parent=5 // pred_check_branch
        %116 = sbr.rel (%p113) target = $region12
      $region11: #{hourglass_forward.7} parent=5 // pred_region
        %s117 = ssub.s32 %s9, 1
        // Predicated region
        $region13: #{hourglass_forward.7} parent=11 // pred_check
          %p118 = pneg %p30
        $region14: #{hourglass_forward.7} parent=11 // pred_check_branch
          %120 = sbr.rel (%p118) target = $region16
        $region15: #{hourglass_forward.7} parent=11 // pred_region
          _
        $region16: #{hourglass_forward.7} parent=11 // pred_fallthru
          _
        // Predicated region
        $region17: #{hourglass_forward.7} parent=11 // pred_check
          %p121 = pneg %p77
        $region18: #{hourglass_forward.7} parent=11 // pred_check_branch
          %123 = sbr.rel (%p121) target = $region20
        $region19: #{hourglass_forward.7} parent=11 // pred_region
          _
        $region20: #{hourglass_forward.7} parent=11 // pred_fallthru
          _
      $region12: #{hourglass_forward.7} parent=5 // pred_fallthru
        _
      %p124 = scmp.lt.s32.totalorder %s9, 2
      // Predicated region
      $region21: #{hourglass_forward.7} parent=5 // pred_check
        %p125 = pneg %p124
      $region22: #{hourglass_forward.7} parent=5 // pred_check_branch
        %127 = sbr.rel (%p125) target = $region24
      $region23: #{hourglass_forward.7} parent=5 // pred_region
        // Predicated region
        $region25: #{hourglass_forward.7} parent=23 // pred_check
          %p128 = pneg %p50
        $region26: #{hourglass_forward.7} parent=23 // pred_check_branch
          %130 = sbr.rel (%p128) target = $region28
        $region27: #{hourglass_forward.7} parent=23 // pred_region
          %s131 = sand.u32 %s40, 1
          %s132 = sand.u32 %s40, 1
          %s133 = smul.addr %s132, 864
          %s134 = scalar_lea.vmem [#allocation2], %s133
          %s135 = smul.u32 4, %s9
          %s136 = smul.addr %s135, 8
          %s137 = scalar_lea.vmem %s1, %s136
          // Predicated region
          $region29: #{hourglass_forward.7} parent=27 // pred_check
            _
          $region30: #{hourglass_forward.7} parent=27 // pred_check_branch
            %139 = sbr.rel (0) target = $region32
          $region31: #{hourglass_forward.7} parent=27 // pred_region
            // Predicated region
            $region33: #{hourglass_forward.7} parent=31 // pred_check
              _
            $region34: #{hourglass_forward.7} parent=31 // pred_check_branch
              %141 = sbr.rel (0) target = $region36
            $region35: #{hourglass_forward.7} parent=31 // pred_region
              loop: start=0, step=1, limit=1
              $region37: #{hourglass_forward.7} parent=35 // loop_pre_header
                _
              $region38: #{hourglass_forward.7} parent=35 // loop_header
                %s143 = sphi 0, %s147
                %p144 = scmp.ge.s32.totalorder %s143, 1
                %s148 = sphi %s137, %s137
                %s149 = sphi %s134, %s134
              $region39: #{hourglass_forward.7} parent=35 // loop_header_branch
                %146 = sbr.rel (%p144) target = $region43
              $region40: #{hourglass_forward.7} parent=35 // loop_body
                %v150 = vld [vmem:[%s148] sm:$0xff]
                %151 = vst [vmem:[%s149] sm:$0xff] %v150
                %v152 = vld [vmem:[%s148 + $0x8] sm:$0xff]
                %153 = vst [vmem:[%s149 + $0x8] sm:$0xff] %v152
                %v154 = vld [vmem:[%s148 + $0x10] sm:$0xff]
                %155 = vst [vmem:[%s149 + $0x10] sm:$0xff] %v154
                %v156 = vld [vmem:[%s148 + $0x18] sm:$0xff]
                %157 = vst [vmem:[%s149 + $0x18] sm:$0xff] %v156
                %v158 = vld [vmem:[%s148 + $0x40] sm:$0xff]
                %159 = vst [vmem:[%s149 + $0x20] sm:$0xff] %v158
                %v160 = vld [vmem:[%s148 + $0x48] sm:$0xff]
                %161 = vst [vmem:[%s149 + $0x28] sm:$0xff] %v160
                %v162 = vld [vmem:[%s148 + $0x50] sm:$0xff]
                %163 = vst [vmem:[%s149 + $0x30] sm:$0xff] %v162
                %v164 = vld [vmem:[%s148 + $0x58] sm:$0xff]
                %165 = vst [vmem:[%s149 + $0x38] sm:$0xff] %v164
                %v166 = vld [vmem:[%s148 + $0x80] sm:$0xff]
                %167 = vst [vmem:[%s149 + $0x40] sm:$0xff] %v166
                %v168 = vld [vmem:[%s148 + $0x88] sm:$0xff]
                %169 = vst [vmem:[%s149 + $0x48] sm:$0xff] %v168
                %v170 = vld [vmem:[%s148 + $0x90] sm:$0xff]
                %171 = vst [vmem:[%s149 + $0x50] sm:$0xff] %v170
                %v172 = vld [vmem:[%s148 + $0x98] sm:$0xff]
                %173 = vst [vmem:[%s149 + $0x58] sm:$0xff] %v172
                %v174 = vld [vmem:[%s148 + $0xc0] sm:$0xff]
                %175 = vst [vmem:[%s149 + $0x60] sm:$0xff] %v174
                %v176 = vld [vmem:[%s148 + $0xc8] sm:$0xff]
                %177 = vst [vmem:[%s149 + $0x68] sm:$0xff] %v176
                %v178 = vld [vmem:[%s148 + $0xd0] sm:$0xff]
                %179 = vst [vmem:[%s149 + $0x70] sm:$0xff] %v178
                %v180 = vld [vmem:[%s148 + $0xd8] sm:$0xff]
                %181 = vst [vmem:[%s149 + $0x78] sm:$0xff] %v180
                %v182 = vld [vmem:[%s148 + $0x100] sm:$0xff]
                %183 = vst [vmem:[%s149 + $0x80] sm:$0xff] %v182
                %v184 = vld [vmem:[%s148 + $0x108] sm:$0xff]
                %185 = vst [vmem:[%s149 + $0x88] sm:$0xff] %v184
                %v186 = vld [vmem:[%s148 + $0x110] sm:$0xff]
                %187 = vst [vmem:[%s149 + $0x90] sm:$0xff] %v186
                %v188 = vld [vmem:[%s148 + $0x118] sm:$0xff]
                %189 = vst [vmem:[%s149 + $0x98] sm:$0xff] %v188
                %v190 = vld [vmem:[%s148 + $0x140] sm:$0xff]
                %191 = vst [vmem:[%s149 + $0xa0] sm:$0xff] %v190
                %v192 = vld [vmem:[%s148 + $0x148] sm:$0xff]
                %193 = vst [vmem:[%s149 + $0xa8] sm:$0xff] %v192
                %v194 = vld [vmem:[%s148 + $0x150] sm:$0xff]
                %195 = vst [vmem:[%s149 + $0xb0] sm:$0xff] %v194
                %v196 = vld [vmem:[%s148 + $0x158] sm:$0xff]
                %197 = vst [vmem:[%s149 + $0xb8] sm:$0xff] %v196
                %v198 = vld [vmem:[%s148 + $0x180] sm:$0xff]
                %199 = vst [vmem:[%s149 + $0xc0] sm:$0xff] %v198
                %v200 = vld [vmem:[%s148 + $0x188] sm:$0xff]
                %201 = vst [vmem:[%s149 + $0xc8] sm:$0xff] %v200
                %v202 = vld [vmem:[%s148 + $0x190] sm:$0xff]
                %203 = vst [vmem:[%s149 + $0xd0] sm:$0xff] %v202
                %v204 = vld [vmem:[%s148 + $0x198] sm:$0xff]
                %205 = vst [vmem:[%s149 + $0xd8] sm:$0xff] %v204
                %v206 = vld [vmem:[%s148 + $0x1c0] sm:$0xff]
                %207 = vst [vmem:[%s149 + $0xe0] sm:$0xff] %v206
                %v208 = vld [vmem:[%s148 + $0x1c8] sm:$0xff]
                %209 = vst [vmem:[%s149 + $0xe8] sm:$0xff] %v208
                %v210 = vld [vmem:[%s148 + $0x1d0] sm:$0xff]
                %211 = vst [vmem:[%s149 + $0xf0] sm:$0xff] %v210
                %v212 = vld [vmem:[%s148 + $0x1d8] sm:$0xff]
                %213 = vst [vmem:[%s149 + $0xf8] sm:$0xff] %v212
                %v214 = vld [vmem:[%s148 + $0x200] sm:$0xff]
                %215 = vst [vmem:[%s149 + $0x100] sm:$0xff] %v214
                %v216 = vld [vmem:[%s148 + $0x208] sm:$0xff]
                %217 = vst [vmem:[%s149 + $0x108] sm:$0xff] %v216
                %v218 = vld [vmem:[%s148 + $0x210] sm:$0xff]
                %219 = vst [vmem:[%s149 + $0x110] sm:$0xff] %v218
                %v220 = vld [vmem:[%s148 + $0x218] sm:$0xff]
                %221 = vst [vmem:[%s149 + $0x118] sm:$0xff] %v220
                %v222 = vld [vmem:[%s148 + $0x240] sm:$0xff]
                %223 = vst [vmem:[%s149 + $0x120] sm:$0xff] %v222
                %v224 = vld [vmem:[%s148 + $0x248] sm:$0xff]
                %225 = vst [vmem:[%s149 + $0x128] sm:$0xff] %v224
                %v226 = vld [vmem:[%s148 + $0x250] sm:$0xff]
                %227 = vst [vmem:[%s149 + $0x130] sm:$0xff] %v226
                %v228 = vld [vmem:[%s148 + $0x258] sm:$0xff]
                %229 = vst [vmem:[%s149 + $0x138] sm:$0xff] %v228
                %v230 = vld [vmem:[%s148 + $0x280] sm:$0xff]
                %231 = vst [vmem:[%s149 + $0x140] sm:$0xff] %v230
                %v232 = vld [vmem:[%s148 + $0x288] sm:$0xff]
                %233 = vst [vmem:[%s149 + $0x148] sm:$0xff] %v232
                %v234 = vld [vmem:[%s148 + $0x290] sm:$0xff]
                %235 = vst [vmem:[%s149 + $0x150] sm:$0xff] %v234
                %v236 = vld [vmem:[%s148 + $0x298] sm:$0xff]
                %237 = vst [vmem:[%s149 + $0x158] sm:$0xff] %v236
                %v238 = vld [vmem:[%s148 + $0x2c0] sm:$0xff]
                %239 = vst [vmem:[%s149 + $0x160] sm:$0xff] %v238
                %v240 = vld [vmem:[%s148 + $0x2c8] sm:$0xff]
                %241 = vst [vmem:[%s149 + $0x168] sm:$0xff] %v240
                %v242 = vld [vmem:[%s148 + $0x2d0] sm:$0xff]
                %243 = vst [vmem:[%s149 + $0x170] sm:$0xff] %v242
                %v244 = vld [vmem:[%s148 + $0x2d8] sm:$0xff]
                %245 = vst [vmem:[%s149 + $0x178] sm:$0xff] %v244
                %v246 = vld [vmem:[%s148 + $0x300] sm:$0xff]
                %247 = vst [vmem:[%s149 + $0x180] sm:$0xff] %v246
                %v248 = vld [vmem:[%s148 + $0x308] sm:$0xff]
                %249 = vst [vmem:[%s149 + $0x188] sm:$0xff] %v248
                %v250 = vld [vmem:[%s148 + $0x310] sm:$0xff]
                %251 = vst [vmem:[%s149 + $0x190] sm:$0xff] %v250
                %v252 = vld [vmem:[%s148 + $0x318] sm:$0xff]
                %253 = vst [vmem:[%s149 + $0x198] sm:$0xff] %v252
                %v254 = vld [vmem:[%s148 + $0x340] sm:$0xff]
                %255 = vst [vmem:[%s149 + $0x1a0] sm:$0xff] %v254
                %v256 = vld [vmem:[%s148 + $0x348] sm:$0xff]
                %257 = vst [vmem:[%s149 + $0x1a8] sm:$0xff] %v256
                %v258 = vld [vmem:[%s148 + $0x350] sm:$0xff]
                %259 = vst [vmem:[%s149 + $0x1b0] sm:$0xff] %v258
                %v260 = vld [vmem:[%s148 + $0x358] sm:$0xff]
                %261 = vst [vmem:[%s149 + $0x1b8] sm:$0xff] %v260
                %v262 = vld [vmem:[%s148 + $0x380] sm:$0xff]
                %263 = vst [vmem:[%s149 + $0x1c0] sm:$0xff] %v262
                %v264 = vld [vmem:[%s148 + $0x388] sm:$0xff]
                %265 = vst [vmem:[%s149 + $0x1c8] sm:$0xff] %v264
                %v266 = vld [vmem:[%s148 + $0x390] sm:$0xff]
                %267 = vst [vmem:[%s149 + $0x1d0] sm:$0xff] %v266
                %v268 = vld [vmem:[%s148 + $0x398] sm:$0xff]
                %269 = vst [vmem:[%s149 + $0x1d8] sm:$0xff] %v268
                %v270 = vld [vmem:[%s148 + $0x3c0] sm:$0xff]
                %271 = vst [vmem:[%s149 + $0x1e0] sm:$0xff] %v270
                %v272 = vld [vmem:[%s148 + $0x3c8] sm:$0xff]
                %273 = vst [vmem:[%s149 + $0x1e8] sm:$0xff] %v272
                %v274 = vld [vmem:[%s148 + $0x3d0] sm:$0xff]
                %275 = vst [vmem:[%s149 + $0x1f0] sm:$0xff] %v274
                %v276 = vld [vmem:[%s148 + $0x3d8] sm:$0xff]
                %277 = vst [vmem:[%s149 + $0x1f8] sm:$0xff] %v276
                %v278 = vld [vmem:[%s148 + $0x400] sm:$0xff]
                %279 = vst [vmem:[%s149 + $0x200] sm:$0xff] %v278
                %v280 = vld [vmem:[%s148 + $0x408] sm:$0xff]
                %281 = vst [vmem:[%s149 + $0x208] sm:$0xff] %v280
                %v282 = vld [vmem:[%s148 + $0x410] sm:$0xff]
                %283 = vst [vmem:[%s149 + $0x210] sm:$0xff] %v282
                %v284 = vld [vmem:[%s148 + $0x418] sm:$0xff]
                %285 = vst [vmem:[%s149 + $0x218] sm:$0xff] %v284
                %v286 = vld [vmem:[%s148 + $0x440] sm:$0xff]
                %287 = vst [vmem:[%s149 + $0x220] sm:$0xff] %v286
                %v288 = vld [vmem:[%s148 + $0x448] sm:$0xff]
                %289 = vst [vmem:[%s149 + $0x228] sm:$0xff] %v288
                %v290 = vld [vmem:[%s148 + $0x450] sm:$0xff]
                %291 = vst [vmem:[%s149 + $0x230] sm:$0xff] %v290
                %v292 = vld [vmem:[%s148 + $0x458] sm:$0xff]
                %293 = vst [vmem:[%s149 + $0x238] sm:$0xff] %v292
                %v294 = vld [vmem:[%s148 + $0x480] sm:$0xff]
                %295 = vst [vmem:[%s149 + $0x240] sm:$0xff] %v294
                %v296 = vld [vmem:[%s148 + $0x488] sm:$0xff]
                %297 = vst [vmem:[%s149 + $0x248] sm:$0xff] %v296
                %v298 = vld [vmem:[%s148 + $0x490] sm:$0xff]
                %299 = vst [vmem:[%s149 + $0x250] sm:$0xff] %v298
                %v300 = vld [vmem:[%s148 + $0x498] sm:$0xff]
                %301 = vst [vmem:[%s149 + $0x258] sm:$0xff] %v300
                %v302 = vld [vmem:[%s148 + $0x4c0] sm:$0xff]
                %303 = vst [vmem:[%s149 + $0x260] sm:$0xff] %v302
                %v304 = vld [vmem:[%s148 + $0x4c8] sm:$0xff]
                %305 = vst [vmem:[%s149 + $0x268] sm:$0xff] %v304
                %v306 = vld [vmem:[%s148 + $0x4d0] sm:$0xff]
                %307 = vst [vmem:[%s149 + $0x270] sm:$0xff] %v306
                %v308 = vld [vmem:[%s148 + $0x4d8] sm:$0xff]
                %309 = vst [vmem:[%s149 + $0x278] sm:$0xff] %v308
                %v310 = vld [vmem:[%s148 + $0x500] sm:$0xff]
                %311 = vst [vmem:[%s149 + $0x280] sm:$0xff] %v310
                %v312 = vld [vmem:[%s148 + $0x508] sm:$0xff]
                %313 = vst [vmem:[%s149 + $0x288] sm:$0xff] %v312
                %v314 = vld [vmem:[%s148 + $0x510] sm:$0xff]
                %315 = vst [vmem:[%s149 + $0x290] sm:$0xff] %v314
                %v316 = vld [vmem:[%s148 + $0x518] sm:$0xff]
                %317 = vst [vmem:[%s149 + $0x298] sm:$0xff] %v316
                %v318 = vld [vmem:[%s148 + $0x540] sm:$0xff]
                %319 = vst [vmem:[%s149 + $0x2a0] sm:$0xff] %v318
                %v320 = vld [vmem:[%s148 + $0x548] sm:$0xff]
                %321 = vst [vmem:[%s149 + $0x2a8] sm:$0xff] %v320
                %v322 = vld [vmem:[%s148 + $0x550] sm:$0xff]
                %323 = vst [vmem:[%s149 + $0x2b0] sm:$0xff] %v322
                %v324 = vld [vmem:[%s148 + $0x558] sm:$0xff]
                %325 = vst [vmem:[%s149 + $0x2b8] sm:$0xff] %v324
                %v326 = vld [vmem:[%s148 + $0x580] sm:$0xff]
                %327 = vst [vmem:[%s149 + $0x2c0] sm:$0xff] %v326
                %v328 = vld [vmem:[%s148 + $0x588] sm:$0xff]
                %329 = vst [vmem:[%s149 + $0x2c8] sm:$0xff] %v328
                %v330 = vld [vmem:[%s148 + $0x590] sm:$0xff]
                %331 = vst [vmem:[%s149 + $0x2d0] sm:$0xff] %v330
                %v332 = vld [vmem:[%s148 + $0x598] sm:$0xff]
                %333 = vst [vmem:[%s149 + $0x2d8] sm:$0xff] %v332
                %v334 = vld [vmem:[%s148 + $0x5c0] sm:$0xff]
                %335 = vst [vmem:[%s149 + $0x2e0] sm:$0xff] %v334
                %v336 = vld [vmem:[%s148 + $0x5c8] sm:$0xff]
                %337 = vst [vmem:[%s149 + $0x2e8] sm:$0xff] %v336
                %v338 = vld [vmem:[%s148 + $0x5d0] sm:$0xff]
                %339 = vst [vmem:[%s149 + $0x2f0] sm:$0xff] %v338
                %v340 = vld [vmem:[%s148 + $0x5d8] sm:$0xff]
                %341 = vst [vmem:[%s149 + $0x2f8] sm:$0xff] %v340
                %v342 = vld [vmem:[%s148 + $0x600] sm:$0xff]
                %343 = vst [vmem:[%s149 + $0x300] sm:$0xff] %v342
                %v344 = vld [vmem:[%s148 + $0x608] sm:$0xff]
                %345 = vst [vmem:[%s149 + $0x308] sm:$0xff] %v344
                %v346 = vld [vmem:[%s148 + $0x610] sm:$0xff]
                %347 = vst [vmem:[%s149 + $0x310] sm:$0xff] %v346
                %v348 = vld [vmem:[%s148 + $0x618] sm:$0xff]
                %349 = vst [vmem:[%s149 + $0x318] sm:$0xff] %v348
                %v350 = vld [vmem:[%s148 + $0x640] sm:$0xff]
                %351 = vst [vmem:[%s149 + $0x320] sm:$0xff] %v350
                %v352 = vld [vmem:[%s148 + $0x648] sm:$0xff]
                %353 = vst [vmem:[%s149 + $0x328] sm:$0xff] %v352
                %v354 = vld [vmem:[%s148 + $0x650] sm:$0xff]
                %355 = vst [vmem:[%s149 + $0x330] sm:$0xff] %v354
                %v356 = vld [vmem:[%s148 + $0x658] sm:$0xff]
                %357 = vst [vmem:[%s149 + $0x338] sm:$0xff] %v356
                %v358 = vld [vmem:[%s148 + $0x680] sm:$0xff]
                %359 = vst [vmem:[%s149 + $0x340] sm:$0xff] %v358
                %v360 = vld [vmem:[%s148 + $0x688] sm:$0xff]
                %361 = vst [vmem:[%s149 + $0x348] sm:$0xff] %v360
                %v362 = vld [vmem:[%s148 + $0x690] sm:$0xff]
                %363 = vst [vmem:[%s149 + $0x350] sm:$0xff] %v362
                %v364 = vld [vmem:[%s148 + $0x698] sm:$0xff]
                %365 = vst [vmem:[%s149 + $0x358] sm:$0xff] %v364
              $region41: #{hourglass_forward.7} parent=35 // loop_footer
                %s147 = sadd.s32 1, %s143
              $region42: #{hourglass_forward.7} parent=35 // loop_footer_branch
                %142 = sbr.rel target = $region38
              $region43: #{hourglass_forward.7} parent=35 // loop_exit
                _
            $region36: #{hourglass_forward.7} parent=31 // pred_fallthru
              _
            // Predicated region
            $region44: #{hourglass_forward.7} parent=31 // pred_check
              _
            $region45: #{hourglass_forward.7} parent=31 // pred_check_branch
              %367 = sbr.rel target = $region47
            $region46: #{hourglass_forward.7} parent=31 // pred_region
              _
            $region47: #{hourglass_forward.7} parent=31 // pred_fallthru
              _
          $region32: #{hourglass_forward.7} parent=27 // pred_fallthru
            _
          %368 = vnop
        $region28: #{hourglass_forward.7} parent=23 // pred_fallthru
          _
      $region24: #{hourglass_forward.7} parent=5 // pred_fallthru
        _
      %p369 = scmp.le.s32.totalorder 1, %s9
      %p370 = scmp.lt.s32.totalorder %s9, 3
      %p371 = pnand %p369, %p370
      %p372 = pneg %p371
      // Predicated region
      $region48: #{hourglass_forward.7} parent=5 // pred_check
        _
      $region49: #{hourglass_forward.7} parent=5 // pred_check_branch
        %374 = sbr.rel (%p371) target = $region51
      $region50: #{hourglass_forward.7} parent=5 // pred_region
        %s375 = ssub.s32 %s9, 1
        %s376 = sand.u32 %s43, 1
        %s377 = sand.u32 %s43, 1
        %s378 = smul.addr %s377, 864
        %s379 = scalar_lea.vmem [#allocation2], %s378
        // Predicated region
        $region52: #{hourglass_forward.7} parent=50 // pred_check
          %p380 = pneg %p56
        $region53: #{hourglass_forward.7} parent=50 // pred_check_branch
          %382 = sbr.rel (%p380) target = $region55
        $region54: #{hourglass_forward.7} parent=50 // pred_region
          _
        $region55: #{hourglass_forward.7} parent=50 // pred_fallthru
          _
        %p383 = pneg %p30
        %p384 = pneg %p27
        %s385 = sand.u32 %s43, 1
        %s386 = sand.u32 %s43, 1
        %s387 = smul.addr %s386, 864
        %s388 = scalar_lea.vmem [#allocation2], %s387
        %p389 = pneg %p56
        %p390 = pneg %p53
        %p391 = pneg %p77
        %p392 = pneg %p74
        %p393 = pneg %p103
        %p394 = pneg %p100
        %s395 = smul.u32 4, %s14
        %p396 = scmp.lt.s32.totalorder %s395, 7
        %s397 = scalar_select %p396, %s395, 7
        %s398 = smul.addr %s397, 8
        %s399 = scalar_lea.vmem %s3, %s398
        %s400 = smul.u32 4, %s14
        %s401 = smul.u32 4, %s14
        %p402 = scmp.lt.s32.totalorder %s401, 7
        %s403 = scalar_select %p402, %s401, 7
        %s404 = smul.addr %s403, 8
        %s405 = scalar_lea.vmem %s3, %s404
        %s406 = smul.u32 4, %s14
        %v407 = vld [vmem:[%s0] sm:$0xff]
        %v408 = vld [vmem:[%s0 + $0x8] sm:$0xff]
        %v409 = vld [vmem:[%s379] sm:$0xff]
        %v410 = vld [vmem:[%s379 + $0x8] sm:$0xff]
        %v411 = vld [vmem:[%s379 + $0x10] sm:$0xff]
        %v412 = vld [vmem:[%s379 + $0x18] sm:$0xff]
        %v413 = vld [vmem:[%s379 + $0x20] sm:$0xff]
        %v414 = vld [vmem:[%s379 + $0x28] sm:$0xff]
        %v415 = vld [vmem:[%s379 + $0x30] sm:$0xff]
        %v416 = vld [vmem:[%s379 + $0x38] sm:$0xff]
        %v417 = vld [vmem:[%s379 + $0x40] sm:$0xff]
        %v418 = vld [vmem:[%s379 + $0x48] sm:$0xff]
        %v419 = vld [vmem:[%s379 + $0x50] sm:$0xff]
        %v420 = vld [vmem:[%s379 + $0x58] sm:$0xff]
        %v421 = vld [vmem:[%s379 + $0x60] sm:$0xff]
        %v422 = vld [vmem:[%s379 + $0x68] sm:$0xff]
        %v423 = vld [vmem:[%s379 + $0x70] sm:$0xff]
        %v424 = vld [vmem:[%s379 + $0x78] sm:$0xff]
        %v425 = vld [vmem:[%s379 + $0x80] sm:$0xff]
        %v426 = vld [vmem:[%s379 + $0x88] sm:$0xff]
        %v427 = vld [vmem:[%s379 + $0x90] sm:$0xff]
        %v428 = vld [vmem:[%s379 + $0x98] sm:$0xff]
        %v429 = vld [vmem:[%s379 + $0xa0] sm:$0xff]
        %v430 = vld [vmem:[%s379 + $0xa8] sm:$0xff]
        %v431 = vld [vmem:[%s379 + $0xb0] sm:$0xff]
        %v432 = vld [vmem:[%s379 + $0xb8] sm:$0xff]
        %v433 = vld [vmem:[%s379 + $0xc0] sm:$0xff]
        %v434 = vld [vmem:[%s379 + $0xc8] sm:$0xff]
        %v435 = vld [vmem:[%s379 + $0xd0] sm:$0xff]
        %v436 = vld [vmem:[%s379 + $0xd8] sm:$0xff]
        %v437 = vld [vmem:[%s379 + $0xe0] sm:$0xff]
        %v438 = vld [vmem:[%s379 + $0xe8] sm:$0xff]
        %v439 = vld [vmem:[%s379 + $0xf0] sm:$0xff]
        %v440 = vld [vmem:[%s379 + $0xf8] sm:$0xff]
        %v441 = vld [vmem:[%s379 + $0x100] sm:$0xff]
        %v442 = vld [vmem:[%s379 + $0x108] sm:$0xff]
        %v443 = vld [vmem:[%s379 + $0x110] sm:$0xff]
        %v444 = vld [vmem:[%s379 + $0x118] sm:$0xff]
        %v445 = vld [vmem:[%s379 + $0x120] sm:$0xff]
        %v446 = vld [vmem:[%s379 + $0x128] sm:$0xff]
        %v447 = vld [vmem:[%s379 + $0x130] sm:$0xff]
        %v448 = vld [vmem:[%s379 + $0x138] sm:$0xff]
        %v449 = vld [vmem:[%s379 + $0x140] sm:$0xff]
        %v450 = vld [vmem:[%s379 + $0x148] sm:$0xff]
        %v451 = vld [vmem:[%s379 + $0x150] sm:$0xff]
        %v452 = vld [vmem:[%s379 + $0x158] sm:$0xff]
        %v453 = vld [vmem:[%s379 + $0x160] sm:$0xff]
        %v454 = vld [vmem:[%s379 + $0x168] sm:$0xff]
        %v455 = vld [vmem:[%s379 + $0x170] sm:$0xff]
        %v456 = vld [vmem:[%s379 + $0x178] sm:$0xff]
        %v457 = vld [vmem:[%s379 + $0x180] sm:$0xff]
        %v458 = vld [vmem:[%s379 + $0x188] sm:$0xff]
        %v459 = vld [vmem:[%s379 + $0x190] sm:$0xff]
        %v460 = vld [vmem:[%s379 + $0x198] sm:$0xff]
        %v461 = vld [vmem:[%s379 + $0x1a0] sm:$0xff]
        %v462 = vld [vmem:[%s379 + $0x1a8] sm:$0xff]
        %v463 = vld [vmem:[%s379 + $0x1b0] sm:$0xff]
        %v464 = vld [vmem:[%s379 + $0x1b8] sm:$0xff]
        %v465 = vld [vmem:[%s379 + $0x1c0] sm:$0xff]
        %v466 = vld [vmem:[%s379 + $0x1c8] sm:$0xff]
        %v467 = vld [vmem:[%s379 + $0x1d0] sm:$0xff]
        %v468 = vld [vmem:[%s379 + $0x1d8] sm:$0xff]
        %v469 = vld [vmem:[%s379 + $0x1e0] sm:$0xff]
        %v470 = vld [vmem:[%s379 + $0x1e8] sm:$0xff]
        %v471 = vld [vmem:[%s379 + $0x1f0] sm:$0xff]
        %v472 = vld [vmem:[%s379 + $0x1f8] sm:$0xff]
        %v473 = vld [vmem:[%s379 + $0x200] sm:$0xff]
        %v474 = vld [vmem:[%s379 + $0x208] sm:$0xff]
        %v475 = vld [vmem:[%s379 + $0x210] sm:$0xff]
        %v476 = vld [vmem:[%s379 + $0x218] sm:$0xff]
        %v477 = vld [vmem:[%s379 + $0x220] sm:$0xff]
        %v478 = vld [vmem:[%s379 + $0x228] sm:$0xff]
        %v479 = vld [vmem:[%s379 + $0x230] sm:$0xff]
        %v480 = vld [vmem:[%s379 + $0x238] sm:$0xff]
        %v481 = vld [vmem:[%s379 + $0x240] sm:$0xff]
        %v482 = vld [vmem:[%s379 + $0x248] sm:$0xff]
        %v483 = vld [vmem:[%s379 + $0x250] sm:$0xff]
        %v484 = vld [vmem:[%s379 + $0x258] sm:$0xff]
        %v485 = vld [vmem:[%s379 + $0x260] sm:$0xff]
        %v486 = vld [vmem:[%s379 + $0x268] sm:$0xff]
        %v487 = vld [vmem:[%s379 + $0x270] sm:$0xff]
        %v488 = vld [vmem:[%s379 + $0x278] sm:$0xff]
        %v489 = vld [vmem:[%s379 + $0x280] sm:$0xff]
        %v490 = vld [vmem:[%s379 + $0x288] sm:$0xff]
        %v491 = vld [vmem:[%s379 + $0x290] sm:$0xff]
        %v492 = vld [vmem:[%s379 + $0x298] sm:$0xff]
        %v493 = vld [vmem:[%s379 + $0x2a0] sm:$0xff]
        %v494 = vld [vmem:[%s379 + $0x2a8] sm:$0xff]
        %v495 = vld [vmem:[%s379 + $0x2b0] sm:$0xff]
        %v496 = vld [vmem:[%s379 + $0x2b8] sm:$0xff]
        %v497 = vld [vmem:[%s379 + $0x2c0] sm:$0xff]
        %v498 = vld [vmem:[%s379 + $0x2c8] sm:$0xff]
        %v499 = vld [vmem:[%s379 + $0x2d0] sm:$0xff]
        %v500 = vld [vmem:[%s379 + $0x2d8] sm:$0xff]
        %v501 = vld [vmem:[%s379 + $0x2e0] sm:$0xff]
        %v502 = vld [vmem:[%s379 + $0x2e8] sm:$0xff]
        %v503 = vld [vmem:[%s379 + $0x2f0] sm:$0xff]
        %v504 = vld [vmem:[%s379 + $0x2f8] sm:$0xff]
        %v505 = vld [vmem:[%s379 + $0x300] sm:$0xff]
        %v506 = vld [vmem:[%s379 + $0x308] sm:$0xff]
        %v507 = vld [vmem:[%s379 + $0x310] sm:$0xff]
        %v508 = vld [vmem:[%s379 + $0x318] sm:$0xff]
        %v509 = vld [vmem:[%s379 + $0x320] sm:$0xff]
        %v510 = vld [vmem:[%s379 + $0x328] sm:$0xff]
        %v511 = vld [vmem:[%s379 + $0x330] sm:$0xff]
        %v512 = vld [vmem:[%s379 + $0x338] sm:$0xff]
        %v513 = vld [vmem:[%s379 + $0x340] sm:$0xff]
        %v514 = vld [vmem:[%s379 + $0x348] sm:$0xff]
        %v515 = vld [vmem:[%s379 + $0x350] sm:$0xff]
        %v516 = vld [vmem:[%s379 + $0x358] sm:$0xff]
        %v517 = vld [vmem:[%s2] sm:$0xff]
        %519 = vset.pattern.permute.xlu0 0
        %520 = vperm.xlu0 %519, %v517
        %v521 = vpop.permute.xlu0 %520
        %vm523 = vcmask 719872
        %v525 = vsel %vm523, %v408, 0
        %527 = vmatprep.subr.mxu0 %v410
        %528 = vmatpush1.msra.mxu0 %v409
        %529 = vmatprep.subr.mxu0 %v414
        %530 = vmatpush1.msra.mxu0 %v413
        %531 = vmatprep.subr.mxu0 %v418
        %532 = vmatpush1.msra.mxu0 %v417
        %533 = vmatprep.subr.mxu0 %v422
        %534 = vmatpush1.msra.mxu0 %v421
        %535 = vmatprep.subr.mxu0 %v426
        %536 = vmatpush1.msra.mxu0 %v425
        %537 = vmatprep.subr.mxu0 %v430
        %538 = vmatpush1.msra.mxu0 %v429
        %539 = vmatprep.subr.mxu0 %v434
        %540 = vmatpush1.msra.mxu0 %v433
        %541 = vmatprep.subr.mxu0 %v438
        %542 = vmatpush1.msra.mxu0 %v437
        %543 = vmatprep.subr.mxu0 %v442
        %544 = vmatpush1.msra.mxu0 %v441
        %545 = vmatprep.subr.mxu0 %v446
        %546 = vmatpush1.msra.mxu0 %v445
        %547 = vmatprep.subr.mxu0 %v450
        %548 = vmatpush1.msra.mxu0 %v449
        %549 = vmatprep.subr.mxu0 %v454
        %550 = vmatpush1.msra.mxu0 %v453
        %551 = vmatprep.subr.mxu0 %v458
        %552 = vmatpush1.msra.mxu0 %v457
        %553 = vmatprep.subr.mxu0 %v462
        %554 = vmatpush1.msra.mxu0 %v461
        %555 = vmatprep.subr.mxu0 %v466
        %556 = vmatpush1.msra.mxu0 %v465
        %557 = vmatprep.subr.mxu0 %v470
        %558 = vmatpush1.msra.mxu0 %v469
        %559 = vmatprep.subr.mxu0 %v474
        %560 = vmatpush1.msra.mxu0 %v473
        %561 = vmatprep.subr.mxu0 %v478
        %562 = vmatpush1.msra.mxu0 %v477
        %563 = vmatprep.subr.mxu0 %v482
        %564 = vmatpush1.msra.mxu0 %v481
        %565 = vmatprep.subr.mxu0 %v486
        %566 = vmatpush1.msra.mxu0 %v485
        %567 = vmatprep.subr.mxu0 %v490
        %568 = vmatpush1.msra.mxu0 %v489
        %569 = vmatprep.subr.mxu0 %v494
        %570 = vmatpush1.msra.mxu0 %v493
        %571 = vmatprep.subr.mxu0 %v498
        %572 = vmatpush1.msra.mxu0 %v497
        %573 = vmatprep.subr.mxu0 %v502
        %574 = vmatpush1.msra.mxu0 %v501
        %575 = vmatprep.subr.mxu0 %v506
        %576 = vmatpush1.msra.mxu0 %v505
        %577 = vmatprep.subr.mxu0 %v510
        %578 = vmatpush1.msra.mxu0 %v509
        %579 = vmatprep.subr.mxu0 %v514
        %580 = vmatpush1.msra.mxu0 %v513
        %581 = vmatprep.subr.mxu0 0.0
        %582 = vmatpush1.msra.mxu0 0.0
        %583 = vmatprep.subr.mxu0 0.0
        %584 = vmatpush1.msra.mxu0 0.0
        %585 = vmatprep.subr.mxu0 0.0
        %586 = vmatpush1.msra.mxu0 0.0
        %587 = vmatprep.subr.mxu0 0.0
        %588 = vmatpush1.msra.mxu0 0.0
        %589 = vmatprep.subr.mxu0 0.0
        %590 = vmatpush1.msra.mxu0 0.0
        %591 = vmatprep.mubr.f32.mxu0 %v525
        %592 = vmatmul.mubr.f32.gmra.mrb[0].mxu0 %v407
        %v593 = vpop.f32.mrb[0].mxu0
        %v594 = vadd.f32 %v521, %v593
        %v595 = vpop.f32.mrb[0].mxu0
        %v596 = vadd.f32 %v521, %v595
        %597 = vdwg.mxu0
        %598 = vmatprep.subr.mxu0 %v412
        %599 = vmatpush1.msra.mxu0 %v411
        %600 = vmatprep.subr.mxu0 %v416
        %601 = vmatpush1.msra.mxu0 %v415
        %602 = vmatprep.subr.mxu0 %v420
        %603 = vmatpush1.msra.mxu0 %v419
        %604 = vmatprep.subr.mxu0 %v424
        %605 = vmatpush1.msra.mxu0 %v423
        %606 = vmatprep.subr.mxu0 %v428
        %607 = vmatpush1.msra.mxu0 %v427
        %608 = vmatprep.subr.mxu0 %v432
        %609 = vmatpush1.msra.mxu0 %v431
        %610 = vmatprep.subr.mxu0 %v436
        %611 = vmatpush1.msra.mxu0 %v435
        %612 = vmatprep.subr.mxu0 %v440
        %613 = vmatpush1.msra.mxu0 %v439
        %614 = vmatprep.subr.mxu0 %v444
        %615 = vmatpush1.msra.mxu0 %v443
        %616 = vmatprep.subr.mxu0 %v448
        %617 = vmatpush1.msra.mxu0 %v447
        %618 = vmatprep.subr.mxu0 %v452
        %619 = vmatpush1.msra.mxu0 %v451
        %620 = vmatprep.subr.mxu0 %v456
        %621 = vmatpush1.msra.mxu0 %v455
        %622 = vmatprep.subr.mxu0 %v460
        %623 = vmatpush1.msra.mxu0 %v459
        %624 = vmatprep.subr.mxu0 %v464
        %625 = vmatpush1.msra.mxu0 %v463
        %626 = vmatprep.subr.mxu0 %v468
        %627 = vmatpush1.msra.mxu0 %v467
        %628 = vmatprep.subr.mxu0 %v472
        %629 = vmatpush1.msra.mxu0 %v471
        %630 = vmatprep.subr.mxu0 %v476
        %631 = vmatpush1.msra.mxu0 %v475
        %632 = vmatprep.subr.mxu0 %v480
        %633 = vmatpush1.msra.mxu0 %v479
        %634 = vmatprep.subr.mxu0 %v484
        %635 = vmatpush1.msra.mxu0 %v483
        %636 = vmatprep.subr.mxu0 %v488
        %637 = vmatpush1.msra.mxu0 %v487
        %638 = vmatprep.subr.mxu0 %v492
        %639 = vmatpush1.msra.mxu0 %v491
        %640 = vmatprep.subr.mxu0 %v496
        %641 = vmatpush1.msra.mxu0 %v495
        %642 = vmatprep.subr.mxu0 %v500
        %643 = vmatpush1.msra.mxu0 %v499
        %644 = vmatprep.subr.mxu0 %v504
        %645 = vmatpush1.msra.mxu0 %v503
        %646 = vmatprep.subr.mxu0 %v508
        %647 = vmatpush1.msra.mxu0 %v507
        %648 = vmatprep.subr.mxu0 %v512
        %649 = vmatpush1.msra.mxu0 %v511
        %650 = vmatprep.subr.mxu0 %v516
        %651 = vmatpush1.msra.mxu0 %v515
        %652 = vmatprep.subr.mxu0 0.0
        %653 = vmatpush1.msra.mxu0 0.0
        %654 = vmatprep.subr.mxu0 0.0
        %655 = vmatpush1.msra.mxu0 0.0
        %656 = vmatprep.subr.mxu0 0.0
        %657 = vmatpush1.msra.mxu0 0.0
        %658 = vmatprep.subr.mxu0 0.0
        %659 = vmatpush1.msra.mxu0 0.0
        %660 = vmatprep.subr.mxu0 0.0
        %661 = vmatpush1.msra.mxu0 0.0
        %662 = vmatprep.mubr.f32.mxu0 %v525
        %663 = vmatmul.mubr.f32.gmra.mrb[0].mxu0 %v407
        %v664 = vpop.f32.mrb[0].mxu0
        %v665 = vadd.f32 %v521, %v664
        %v666 = vpop.f32.mrb[0].mxu0
        %v667 = vadd.f32 %v521, %v666
        %668 = vdwg.mxu0
        %v669 = vmax.f32 %v594, 0.0
        %v670 = vmax.f32 %v596, 0.0
        %v671 = vmax.f32 %v665, 0.0
        %v672 = vmax.f32 %v667, 0.0
        %673 = vst [vmem:[%s405] sm:$0xff] %v669
        %674 = vst [vmem:[%s405 + $0x8] sm:$0xff] %v670
        %675 = vst [vmem:[%s405 + $0x10] sm:$0xff] %v671
        %676 = vst [vmem:[%s405 + $0x18] sm:$0xff] %v672
        %s677 = smul.u32 4, %s14
        %p678 = scmp.lt.s32.totalorder %s677, 7
        %s679 = scalar_select %p678, %s677, 7
        %s680 = smul.addr %s679, 8
        %s681 = scalar_lea.vmem %s3, %s680
        // Predicated region
        $region56: #{hourglass_forward.7} parent=50 // pred_check
          %p682 = pneg %p100
        $region57: #{hourglass_forward.7} parent=50 // pred_check_branch
          %684 = sbr.rel (%p682) target = $region59
        $region58: #{hourglass_forward.7} parent=50 // pred_region
          %s685 = smul.u32 4, %s14
        $region59: #{hourglass_forward.7} parent=50 // pred_fallthru
          _
      $region51: #{hourglass_forward.7} parent=5 // pred_fallthru
        _
      %p686 = scmp.le.s32.totalorder 2, %s9
      // Predicated region
      $region60: #{hourglass_forward.7} parent=5 // pred_check
        %p687 = pneg %p686
      $region61: #{hourglass_forward.7} parent=5 // pred_check_branch
        %689 = sbr.rel (%p687) target = $region63
      $region62: #{hourglass_forward.7} parent=5 // pred_region
        %s690 = ssub.s32 %s9, 2
        // Predicated region
        $region64: #{hourglass_forward.7} parent=62 // pred_check
          %p691 = pneg %p106
        $region65: #{hourglass_forward.7} parent=62 // pred_check_branch
          %693 = sbr.rel (%p691) target = $region67
        $region66: #{hourglass_forward.7} parent=62 // pred_region
          %s694 = smul.u32 4, %s15
          %p695 = scmp.lt.s32.totalorder %s694, 7
          %s696 = scalar_select %p695, %s694, 7
          %s697 = smul.addr %s696, 8
          %s698 = scalar_lea.vmem %s3, %s697
        $region67: #{hourglass_forward.7} parent=62 // pred_fallthru
          _
      $region63: #{hourglass_forward.7} parent=5 // pred_fallthru
        _
    $region6: #{hourglass_forward.7} parent=1 // loop_footer
      %s13 = sadd.s32 1, %s9
    $region7: #{hourglass_forward.7} parent=1 // loop_footer_branch
      %8 = sbr.rel target = $region3
    $region8: #{hourglass_forward.7} parent=1 // loop_exit
      _

// kernel: hourglass_forward.8
$region0: #{hourglass_forward.8}
  #allocation0 [shape = 'u32[]', space=smem, size = 0x4, offset = 0x4, fixed_abs, tag = 'smem constant byte address 0x4 - core index']
  #allocation1 [shape = 'u32[144,128]{1,0:T(1,128)}', space=vmem, size = 0x12000, scoped, tag = 'internal scratch']
  %s0 = inlined_call_operand.vmem [shape: f32[8,216], index: 0, kind: input, shape index: {}]
  %s1 = inlined_call_operand.vmem [shape: f32[216,128], index: 1, kind: input, shape index: {}]
  %s2 = inlined_call_operand.vmem [shape: f32[8,1], index: 2, kind: input, shape index: {}]
  %s3 = inlined_call_operand.vmem [shape: f32[8,128], index: 3, kind: output, shape index: {}]
  %s4 = sld [smem:[#allocation0]]
  $region22: #{hourglass_forward.8} parent=0
    _
  %s6 = ssub.s32 1, %s4
  %s7 = scalar_select 0, %s6, %s4
  // Predicated region
  $region2: #{hourglass_forward.8} parent=0 // pred_check
    _
  $region3: #{hourglass_forward.8} parent=0 // pred_check_branch
    %9 = sbr.rel (0) target = $region5
  $region4: #{hourglass_forward.8} parent=0 // pred_region
    _
  $region5: #{hourglass_forward.8} parent=0 // pred_fallthru
    _
  // Predicated region
  $region6: #{hourglass_forward.8} parent=0 // pred_check
    _
  $region7: #{hourglass_forward.8} parent=0 // pred_check_branch
    %11 = sbr.rel (0) target = $region9
  $region8: #{hourglass_forward.8} parent=0 // pred_region
    _
  $region9: #{hourglass_forward.8} parent=0 // pred_fallthru
    _
  // Predicated region
  $region10: #{hourglass_forward.8} parent=0 // pred_check
    _
  $region11: #{hourglass_forward.8} parent=0 // pred_check_branch
    %13 = sbr.rel (0) target = $region13
  $region12: #{hourglass_forward.8} parent=0 // pred_region
    _
  $region13: #{hourglass_forward.8} parent=0 // pred_fallthru
    _
  %v14 = vld [vmem:[%s0] sm:$0xff]
  %v15 = vld [vmem:[%s0 + $0x8] sm:$0xff]
  %v16 = vld [vmem:[%s1] sm:$0xff]
  %v17 = vld [vmem:[%s1 + $0x8] sm:$0xff]
  %v18 = vld [vmem:[%s1 + $0x10] sm:$0xff]
  %v19 = vld [vmem:[%s1 + $0x18] sm:$0xff]
  %v20 = vld [vmem:[%s1 + $0x20] sm:$0xff]
  %v21 = vld [vmem:[%s1 + $0x28] sm:$0xff]
  %v22 = vld [vmem:[%s1 + $0x30] sm:$0xff]
  %v23 = vld [vmem:[%s1 + $0x38] sm:$0xff]
  %v24 = vld [vmem:[%s1 + $0x40] sm:$0xff]
  %v25 = vld [vmem:[%s1 + $0x48] sm:$0xff]
  %v26 = vld [vmem:[%s1 + $0x50] sm:$0xff]
  %v27 = vld [vmem:[%s1 + $0x58] sm:$0xff]
  %v28 = vld [vmem:[%s1 + $0x60] sm:$0xff]
  %v29 = vld [vmem:[%s1 + $0x68] sm:$0xff]
  %v30 = vld [vmem:[%s1 + $0x70] sm:$0xff]
  %v31 = vld [vmem:[%s1 + $0x78] sm:$0xff]
  %v32 = vld [vmem:[%s1 + $0x80] sm:$0xff]
  %v33 = vld [vmem:[%s1 + $0x88] sm:$0xff]
  %v34 = vld [vmem:[%s1 + $0x90] sm:$0xff]
  %v35 = vld [vmem:[%s1 + $0x98] sm:$0xff]
  %v36 = vld [vmem:[%s1 + $0xa0] sm:$0xff]
  %v37 = vld [vmem:[%s1 + $0xa8] sm:$0xff]
  %v38 = vld [vmem:[%s1 + $0xb0] sm:$0xff]
  %v39 = vld [vmem:[%s1 + $0xb8] sm:$0xff]
  %v40 = vld [vmem:[%s1 + $0xc0] sm:$0xff]
  %v41 = vld [vmem:[%s1 + $0xc8] sm:$0xff]
  %v42 = vld [vmem:[%s1 + $0xd0] sm:$0xff]
  %v43 = vld [vmem:[%s2] sm:$0xff]
  %45 = vset.pattern.permute.xlu0 0
  %46 = vperm.xlu0 %45, %v43
  %v47 = vpop.permute.xlu0 %46
  %vm49 = vcmask 719872
  %v51 = vsel %vm49, %v15, 0
  %53 = vmatprep.subr.mxu0 0.0
  %54 = vmatpush1.msra.mxu0 %v16
  %55 = vmatprep.subr.mxu0 0.0
  %56 = vmatpush1.msra.mxu0 %v17
  %57 = vmatprep.subr.mxu0 0.0
  %58 = vmatpush1.msra.mxu0 %v18
  %59 = vmatprep.subr.mxu0 0.0
  %60 = vmatpush1.msra.mxu0 %v19
  %61 = vmatprep.subr.mxu0 0.0
  %62 = vmatpush1.msra.mxu0 %v20
  %63 = vmatprep.subr.mxu0 0.0
  %64 = vmatpush1.msra.mxu0 %v21
  %65 = vmatprep.subr.mxu0 0.0
  %66 = vmatpush1.msra.mxu0 %v22
  %67 = vmatprep.subr.mxu0 0.0
  %68 = vmatpush1.msra.mxu0 %v23
  %69 = vmatprep.subr.mxu0 0.0
  %70 = vmatpush1.msra.mxu0 %v24
  %71 = vmatprep.subr.mxu0 0.0
  %72 = vmatpush1.msra.mxu0 %v25
  %73 = vmatprep.subr.mxu0 0.0
  %74 = vmatpush1.msra.mxu0 %v26
  %75 = vmatprep.subr.mxu0 0.0
  %76 = vmatpush1.msra.mxu0 %v27
  %77 = vmatprep.subr.mxu0 0.0
  %78 = vmatpush1.msra.mxu0 %v28
  %79 = vmatprep.subr.mxu0 0.0
  %80 = vmatpush1.msra.mxu0 %v29
  %81 = vmatprep.subr.mxu0 0.0
  %82 = vmatpush1.msra.mxu0 %v30
  %83 = vmatprep.subr.mxu0 0.0
  %84 = vmatpush1.msra.mxu0 %v31
  %85 = vmatprep.subr.mxu0 0.0
  %86 = vmatpush1.msra.mxu0 %v32
  %87 = vmatprep.subr.mxu0 0.0
  %88 = vmatpush1.msra.mxu0 %v33
  %89 = vmatprep.subr.mxu0 0.0
  %90 = vmatpush1.msra.mxu0 %v34
  %91 = vmatprep.subr.mxu0 0.0
  %92 = vmatpush1.msra.mxu0 %v35
  %93 = vmatprep.subr.mxu0 0.0
  %94 = vmatpush1.msra.mxu0 %v36
  %95 = vmatprep.subr.mxu0 0.0
  %96 = vmatpush1.msra.mxu0 %v37
  %97 = vmatprep.subr.mxu0 0.0
  %98 = vmatpush1.msra.mxu0 %v38
  %99 = vmatprep.subr.mxu0 0.0
  %100 = vmatpush1.msra.mxu0 %v39
  %101 = vmatprep.subr.mxu0 0.0
  %102 = vmatpush1.msra.mxu0 %v40
  %103 = vmatprep.subr.mxu0 0.0
  %104 = vmatpush1.msra.mxu0 %v41
  %105 = vmatprep.subr.mxu0 0.0
  %106 = vmatpush1.msra.mxu0 %v42
  %107 = vmatprep.subr.mxu0 0.0
  %108 = vmatpush1.msra.mxu0 0.0
  %109 = vmatprep.subr.mxu0 0.0
  %110 = vmatpush1.msra.mxu0 0.0
  %111 = vmatprep.subr.mxu0 0.0
  %112 = vmatpush1.msra.mxu0 0.0
  %113 = vmatprep.subr.mxu0 0.0
  %114 = vmatpush1.msra.mxu0 0.0
  %115 = vmatprep.subr.mxu0 0.0
  %116 = vmatpush1.msra.mxu0 0.0
  %117 = vmatprep.mubr.f32.mxu0 %v51
  %118 = vmatmul.mubr.f32.gmra.mrb[0].mxu0 %v14
  %v119 = vpop.f32.mrb[0].mxu0
  %v120 = vadd.f32 %v47, %v119
  %v121 = vpop.f32.mrb[0].mxu0
  %122 = vdwg.mxu0
  %v123 = vmax.f32 %v120, 0.0
  %124 = vst [vmem:[%s3] sm:$0xff] %v123
  // Predicated region
  $region14: #{hourglass_forward.8} parent=0 // pred_check
    _
  $region15: #{hourglass_forward.8} parent=0 // pred_check_branch
    %126 = sbr.rel (0) target = $region17
  $region16: #{hourglass_forward.8} parent=0 // pred_region
    _
  $region17: #{hourglass_forward.8} parent=0 // pred_fallthru
    _
  // Predicated region
  $region18: #{hourglass_forward.8} parent=0 // pred_check
    _
  $region19: #{hourglass_forward.8} parent=0 // pred_check_branch
    %128 = sbr.rel (0) target = $region21
  $region20: #{hourglass_forward.8} parent=0 // pred_region
    _
  $region21: #{hourglass_forward.8} parent=0 // pred_fallthru
    _

// kernel: hourglass_forward.10
$region0: #{hourglass_forward.10}
  #allocation0 [shape = 'u32[]', space=smem, size = 0x4, offset = 0x4, fixed_abs, tag = 'smem constant byte address 0x4 - core index']
  #allocation1 [shape = 'u32[144,128]{1,0:T(1,128)}', space=vmem, size = 0x12000, scoped, tag = 'internal scratch']
  %s0 = inlined_call_operand.vmem [shape: f32[8,216], index: 0, kind: input, shape index: {}]
  %s1 = inlined_call_operand.vmem [shape: f32[216,1024], index: 1, kind: input, shape index: {}]
  %s2 = inlined_call_operand.vmem [shape: f32[8,1], index: 2, kind: input, shape index: {}]
  %s3 = inlined_call_operand.vmem [shape: f32[8,1024], index: 3, kind: input, shape index: {}]
  %s4 = inlined_call_operand.vmem [shape: f32[8,1024], index: 4, kind: output, shape index: {}]
  %s5 = sld [smem:[#allocation0]]
  $region72: #{hourglass_forward.10} parent=0
    _
  %s7 = ssub.s32 1, %s5
  %s8 = scalar_select 0, %s7, %s5
  $region1: #{hourglass_forward.10} parent=0
    #allocation2 [shape = 'u8[884736]{0}', space=vmem, size = 0xd8000, scoped, tag = 'input window, operand 1']
    loop: start=0, step=1, limit=4
    $region2: #{hourglass_forward.10} parent=1 // loop_pre_header
      _
    $region3: #{hourglass_forward.10} parent=1 // loop_header
      %s10 = sphi 0, %s14
      %p11 = scmp.ge.s32.totalorder %s10, 4
      %s18 = sphi 0, %s18
      %s20 = sphi 0, %s18
      %s21 = sphi 0, %s20
      %s35 = sphi 0, %s21
      %s41 = sphi 0, %s43
      %s44 = sphi 0, %s41
      %s45 = sphi 0, %s44
      %s61 = sphi 0, %s45
      %s65 = sphi 0, %s65
      %s67 = sphi 0, %s65
      %s68 = sphi 0, %s67
      %s82 = sphi 0, %s68
      %s88 = sphi 0, %s90
      %s91 = sphi 0, %s88
      %s92 = sphi 0, %s91
      %s108 = sphi 0, %s92
      %s114 = sphi 0, %s116
      %s117 = sphi 0, %s114
      %s118 = sphi 0, %s117
      %s134 = sphi 0, %s118
    $region4: #{hourglass_forward.10} parent=1 // loop_header_branch
      %13 = sbr.rel (%p11) target = $region8
    $region5: #{hourglass_forward.10} parent=1 // loop_body
      %s15 = ssub.s32 %s10, 1
      %s16 = ssub.s32 %s10, 2
      %s17 = sadd.s32 %s10, 1
      %s19 = sadd.s32 %s18, 1
      %p22 = scmp.eq.s32.totalorder %s10, 1
      %p23 = scmp.ne.s32.totalorder %s18, %s20
      %p24 = scmp.eq.s32.totalorder %s10, 0
      %p25 = por %p23, %p24
      %p26 = scmp.ne.s32.totalorder %s18, %s20
      %p27 = scmp.eq.s32.totalorder %s15, 1
      %p28 = por %p26, %p27
      %p29 = scmp.ne.s32.totalorder %s20, %s21
      %p30 = scmp.eq.s32.totalorder %s15, 0
      %p31 = por %p29, %p30
      %p32 = scmp.ne.s32.totalorder %s20, %s21
      %p33 = scmp.eq.s32.totalorder %s16, 1
      %p34 = por %p32, %p33
      %p36 = scmp.ne.s32.totalorder %s21, %s35
      %p37 = scmp.eq.s32.totalorder %s16, 0
      %p38 = por %p36, %p37
      %s39 = ssub.s32 %s10, %s17
      %p40 = scmp.eq.s32.totalorder %s39, 0
      %s42 = sadd.s32 %s41, 1
      %s43 = scalar_select %p40, %s41, %s42
      %p46 = pneg %p40
      %p47 = scmp.eq.s32.totalorder %s10, 1
      %p48 = por %p46, %p47
      %p49 = scmp.ne.s32.totalorder %s41, %s44
      %p50 = scmp.eq.s32.totalorder %s10, 0
      %p51 = por %p49, %p50
      %p52 = scmp.ne.s32.totalorder %s41, %s44
      %p53 = scmp.eq.s32.totalorder %s15, 1
      %p54 = por %p52, %p53
      %p55 = scmp.ne.s32.totalorder %s44, %s45
      %p56 = scmp.eq.s32.totalorder %s15, 0
      %p57 = por %p55, %p56
      %p58 = scmp.ne.s32.totalorder %s44, %s45
      %p59 = scmp.eq.s32.totalorder %s16, 1
      %p60 = por %p58, %p59
      %p62 = scmp.ne.s32.totalorder %s45, %s61
      %p63 = scmp.eq.s32.totalorder %s16, 0
      %p64 = por %p62, %p63
      %s66 = sadd.s32 %s65, 1
      %p69 = scmp.eq.s32.totalorder %s10, 1
      %p70 = scmp.ne.s32.totalorder %s65, %s67
      %p71 = scmp.eq.s32.totalorder %s10, 0
      %p72 = por %p70, %p71
      %p73 = scmp.ne.s32.totalorder %s65, %s67
      %p74 = scmp.eq.s32.totalorder %s15, 1
      %p75 = por %p73, %p74
      %p76 = scmp.ne.s32.totalorder %s67, %s68
      %p77 = scmp.eq.s32.totalorder %s15, 0
      %p78 = por %p76, %p77
      %p79 = scmp.ne.s32.totalorder %s67, %s68
      %p80 = scmp.eq.s32.totalorder %s16, 1
      %p81 = por %p79, %p80
      %p83 = scmp.ne.s32.totalorder %s68, %s82
      %p84 = scmp.eq.s32.totalorder %s16, 0
      %p85 = por %p83, %p84
      %s86 = ssub.s32 %s10, %s17
      %p87 = scmp.eq.s32.totalorder %s86, 0
      %s89 = sadd.s32 %s88, 1
      %s90 = scalar_select %p87, %s88, %s89
      %p93 = pneg %p87
      %p94 = scmp.eq.s32.totalorder %s10, 1
      %p95 = por %p93, %p94
      %p96 = scmp.ne.s32.totalorder %s88, %s91
      %p97 = scmp.eq.s32.totalorder %s10, 0
      %p98 = por %p96, %p97
      %p99 = scmp.ne.s32.totalorder %s88, %s91
      %p100 = scmp.eq.s32.totalorder %s15, 1
      %p101 = por %p99, %p100
      %p102 = scmp.ne.s32.totalorder %s91, %s92
      %p103 = scmp.eq.s32.totalorder %s15, 0
      %p104 = por %p102, %p103
      %p105 = scmp.ne.s32.totalorder %s91, %s92
      %p106 = scmp.eq.s32.totalorder %s16, 1
      %p107 = por %p105, %p106
      %p109 = scmp.ne.s32.totalorder %s92, %s108
      %p110 = scmp.eq.s32.totalorder %s16, 0
      %p111 = por %p109, %p110
      %s112 = ssub.s32 %s10, %s17
      %p113 = scmp.eq.s32.totalorder %s112, 0
      %s115 = sadd.s32 %s114, 1
      %s116 = scalar_select %p113, %s114, %s115
      %p119 = pneg %p113
      %p120 = scmp.eq.s32.totalorder %s10, 1
      %p121 = por %p119, %p120
      %p122 = scmp.ne.s32.totalorder %s114, %s117
      %p123 = scmp.eq.s32.totalorder %s10, 0
      %p124 = por %p122, %p123
      %p125 = scmp.ne.s32.totalorder %s114, %s117
      %p126 = scmp.eq.s32.totalorder %s15, 1
      %p127 = por %p125, %p126
      %p128 = scmp.ne.s32.totalorder %s117, %s118
      %p129 = scmp.eq.s32.totalorder %s15, 0
      %p130 = por %p128, %p129
      %p131 = scmp.ne.s32.totalorder %s117, %s118
      %p132 = scmp.eq.s32.totalorder %s16, 1
      %p133 = por %p131, %p132
      %p135 = scmp.ne.s32.totalorder %s118, %s134
      %p136 = scmp.eq.s32.totalorder %s16, 0
      %p137 = por %p135, %p136
      %p138 = scmp.le.s32.totalorder 1, %s10
      %p139 = scmp.lt.s32.totalorder %s10, 3
      %p140 = pnand %p138, %p139
      %p141 = pneg %p140
      // Predicated region
      $region9: #{hourglass_forward.10} parent=5 // pred_check
        _
      $region10: #{hourglass_forward.10} parent=5 // pred_check_branch
        %143 = sbr.rel (%p140) target = $region12
      $region11: #{hourglass_forward.10} parent=5 // pred_region
        %s144 = ssub.s32 %s10, 1
        // Predicated region
        $region13: #{hourglass_forward.10} parent=11 // pred_check
          %p145 = pneg %p31
        $region14: #{hourglass_forward.10} parent=11 // pred_check_branch
          %147 = sbr.rel (%p145) target = $region16
        $region15: #{hourglass_forward.10} parent=11 // pred_region
          _
        $region16: #{hourglass_forward.10} parent=11 // pred_fallthru
          _
        // Predicated region
        $region17: #{hourglass_forward.10} parent=11 // pred_check
          %p148 = pneg %p78
        $region18: #{hourglass_forward.10} parent=11 // pred_check_branch
          %150 = sbr.rel (%p148) target = $region20
        $region19: #{hourglass_forward.10} parent=11 // pred_region
          _
        $region20: #{hourglass_forward.10} parent=11 // pred_fallthru
          _
      $region12: #{hourglass_forward.10} parent=5 // pred_fallthru
        _
      %p151 = scmp.lt.s32.totalorder %s10, 2
      // Predicated region
      $region21: #{hourglass_forward.10} parent=5 // pred_check
        %p152 = pneg %p151
      $region22: #{hourglass_forward.10} parent=5 // pred_check_branch
        %154 = sbr.rel (%p152) target = $region24
      $region23: #{hourglass_forward.10} parent=5 // pred_region
        // Predicated region
        $region25: #{hourglass_forward.10} parent=23 // pred_check
          %p155 = pneg %p51
        $region26: #{hourglass_forward.10} parent=23 // pred_check_branch
          %157 = sbr.rel (%p155) target = $region28
        $region27: #{hourglass_forward.10} parent=23 // pred_region
          %s158 = sand.u32 %s41, 1
          %s159 = sand.u32 %s41, 1
          %s160 = smul.addr %s159, 864
          %s161 = scalar_lea.vmem [#allocation2], %s160
          %s162 = smul.u32 4, %s10
          %s163 = smul.addr %s162, 8
          %s164 = scalar_lea.vmem %s1, %s163
          // Predicated region
          $region29: #{hourglass_forward.10} parent=27 // pred_check
            _
          $region30: #{hourglass_forward.10} parent=27 // pred_check_branch
            %166 = sbr.rel (0) target = $region32
          $region31: #{hourglass_forward.10} parent=27 // pred_region
            // Predicated region
            $region33: #{hourglass_forward.10} parent=31 // pred_check
              _
            $region34: #{hourglass_forward.10} parent=31 // pred_check_branch
              %168 = sbr.rel (0) target = $region36
            $region35: #{hourglass_forward.10} parent=31 // pred_region
              loop: start=0, step=1, limit=1
              $region37: #{hourglass_forward.10} parent=35 // loop_pre_header
                _
              $region38: #{hourglass_forward.10} parent=35 // loop_header
                %s170 = sphi 0, %s174
                %p171 = scmp.ge.s32.totalorder %s170, 1
                %s175 = sphi %s164, %s164
                %s176 = sphi %s161, %s161
              $region39: #{hourglass_forward.10} parent=35 // loop_header_branch
                %173 = sbr.rel (%p171) target = $region43
              $region40: #{hourglass_forward.10} parent=35 // loop_body
                %v177 = vld [vmem:[%s175] sm:$0xff]
                %178 = vst [vmem:[%s176] sm:$0xff] %v177
                %v179 = vld [vmem:[%s175 + $0x8] sm:$0xff]
                %180 = vst [vmem:[%s176 + $0x8] sm:$0xff] %v179
                %v181 = vld [vmem:[%s175 + $0x10] sm:$0xff]
                %182 = vst [vmem:[%s176 + $0x10] sm:$0xff] %v181
                %v183 = vld [vmem:[%s175 + $0x18] sm:$0xff]
                %184 = vst [vmem:[%s176 + $0x18] sm:$0xff] %v183
                %v185 = vld [vmem:[%s175 + $0x40] sm:$0xff]
                %186 = vst [vmem:[%s176 + $0x20] sm:$0xff] %v185
                %v187 = vld [vmem:[%s175 + $0x48] sm:$0xff]
                %188 = vst [vmem:[%s176 + $0x28] sm:$0xff] %v187
                %v189 = vld [vmem:[%s175 + $0x50] sm:$0xff]
                %190 = vst [vmem:[%s176 + $0x30] sm:$0xff] %v189
                %v191 = vld [vmem:[%s175 + $0x58] sm:$0xff]
                %192 = vst [vmem:[%s176 + $0x38] sm:$0xff] %v191
                %v193 = vld [vmem:[%s175 + $0x80] sm:$0xff]
                %194 = vst [vmem:[%s176 + $0x40] sm:$0xff] %v193
                %v195 = vld [vmem:[%s175 + $0x88] sm:$0xff]
                %196 = vst [vmem:[%s176 + $0x48] sm:$0xff] %v195
                %v197 = vld [vmem:[%s175 + $0x90] sm:$0xff]
                %198 = vst [vmem:[%s176 + $0x50] sm:$0xff] %v197
                %v199 = vld [vmem:[%s175 + $0x98] sm:$0xff]
                %200 = vst [vmem:[%s176 + $0x58] sm:$0xff] %v199
                %v201 = vld [vmem:[%s175 + $0xc0] sm:$0xff]
                %202 = vst [vmem:[%s176 + $0x60] sm:$0xff] %v201
                %v203 = vld [vmem:[%s175 + $0xc8] sm:$0xff]
                %204 = vst [vmem:[%s176 + $0x68] sm:$0xff] %v203
                %v205 = vld [vmem:[%s175 + $0xd0] sm:$0xff]
                %206 = vst [vmem:[%s176 + $0x70] sm:$0xff] %v205
                %v207 = vld [vmem:[%s175 + $0xd8] sm:$0xff]
                %208 = vst [vmem:[%s176 + $0x78] sm:$0xff] %v207
                %v209 = vld [vmem:[%s175 + $0x100] sm:$0xff]
                %210 = vst [vmem:[%s176 + $0x80] sm:$0xff] %v209
                %v211 = vld [vmem:[%s175 + $0x108] sm:$0xff]
                %212 = vst [vmem:[%s176 + $0x88] sm:$0xff] %v211
                %v213 = vld [vmem:[%s175 + $0x110] sm:$0xff]
                %214 = vst [vmem:[%s176 + $0x90] sm:$0xff] %v213
                %v215 = vld [vmem:[%s175 + $0x118] sm:$0xff]
                %216 = vst [vmem:[%s176 + $0x98] sm:$0xff] %v215
                %v217 = vld [vmem:[%s175 + $0x140] sm:$0xff]
                %218 = vst [vmem:[%s176 + $0xa0] sm:$0xff] %v217
                %v219 = vld [vmem:[%s175 + $0x148] sm:$0xff]
                %220 = vst [vmem:[%s176 + $0xa8] sm:$0xff] %v219
                %v221 = vld [vmem:[%s175 + $0x150] sm:$0xff]
                %222 = vst [vmem:[%s176 + $0xb0] sm:$0xff] %v221
                %v223 = vld [vmem:[%s175 + $0x158] sm:$0xff]
                %224 = vst [vmem:[%s176 + $0xb8] sm:$0xff] %v223
                %v225 = vld [vmem:[%s175 + $0x180] sm:$0xff]
                %226 = vst [vmem:[%s176 + $0xc0] sm:$0xff] %v225
                %v227 = vld [vmem:[%s175 + $0x188] sm:$0xff]
                %228 = vst [vmem:[%s176 + $0xc8] sm:$0xff] %v227
                %v229 = vld [vmem:[%s175 + $0x190] sm:$0xff]
                %230 = vst [vmem:[%s176 + $0xd0] sm:$0xff] %v229
                %v231 = vld [vmem:[%s175 + $0x198] sm:$0xff]
                %232 = vst [vmem:[%s176 + $0xd8] sm:$0xff] %v231
                %v233 = vld [vmem:[%s175 + $0x1c0] sm:$0xff]
                %234 = vst [vmem:[%s176 + $0xe0] sm:$0xff] %v233
                %v235 = vld [vmem:[%s175 + $0x1c8] sm:$0xff]
                %236 = vst [vmem:[%s176 + $0xe8] sm:$0xff] %v235
                %v237 = vld [vmem:[%s175 + $0x1d0] sm:$0xff]
                %238 = vst [vmem:[%s176 + $0xf0] sm:$0xff] %v237
                %v239 = vld [vmem:[%s175 + $0x1d8] sm:$0xff]
                %240 = vst [vmem:[%s176 + $0xf8] sm:$0xff] %v239
                %v241 = vld [vmem:[%s175 + $0x200] sm:$0xff]
                %242 = vst [vmem:[%s176 + $0x100] sm:$0xff] %v241
                %v243 = vld [vmem:[%s175 + $0x208] sm:$0xff]
                %244 = vst [vmem:[%s176 + $0x108] sm:$0xff] %v243
                %v245 = vld [vmem:[%s175 + $0x210] sm:$0xff]
                %246 = vst [vmem:[%s176 + $0x110] sm:$0xff] %v245
                %v247 = vld [vmem:[%s175 + $0x218] sm:$0xff]
                %248 = vst [vmem:[%s176 + $0x118] sm:$0xff] %v247
                %v249 = vld [vmem:[%s175 + $0x240] sm:$0xff]
                %250 = vst [vmem:[%s176 + $0x120] sm:$0xff] %v249
                %v251 = vld [vmem:[%s175 + $0x248] sm:$0xff]
                %252 = vst [vmem:[%s176 + $0x128] sm:$0xff] %v251
                %v253 = vld [vmem:[%s175 + $0x250] sm:$0xff]
                %254 = vst [vmem:[%s176 + $0x130] sm:$0xff] %v253
                %v255 = vld [vmem:[%s175 + $0x258] sm:$0xff]
                %256 = vst [vmem:[%s176 + $0x138] sm:$0xff] %v255
                %v257 = vld [vmem:[%s175 + $0x280] sm:$0xff]
                %258 = vst [vmem:[%s176 + $0x140] sm:$0xff] %v257
                %v259 = vld [vmem:[%s175 + $0x288] sm:$0xff]
                %260 = vst [vmem:[%s176 + $0x148] sm:$0xff] %v259
                %v261 = vld [vmem:[%s175 + $0x290] sm:$0xff]
                %262 = vst [vmem:[%s176 + $0x150] sm:$0xff] %v261
                %v263 = vld [vmem:[%s175 + $0x298] sm:$0xff]
                %264 = vst [vmem:[%s176 + $0x158] sm:$0xff] %v263
                %v265 = vld [vmem:[%s175 + $0x2c0] sm:$0xff]
                %266 = vst [vmem:[%s176 + $0x160] sm:$0xff] %v265
                %v267 = vld [vmem:[%s175 + $0x2c8] sm:$0xff]
                %268 = vst [vmem:[%s176 + $0x168] sm:$0xff] %v267
                %v269 = vld [vmem:[%s175 + $0x2d0] sm:$0xff]
                %270 = vst [vmem:[%s176 + $0x170] sm:$0xff] %v269
                %v271 = vld [vmem:[%s175 + $0x2d8] sm:$0xff]
                %272 = vst [vmem:[%s176 + $0x178] sm:$0xff] %v271
                %v273 = vld [vmem:[%s175 + $0x300] sm:$0xff]
                %274 = vst [vmem:[%s176 + $0x180] sm:$0xff] %v273
                %v275 = vld [vmem:[%s175 + $0x308] sm:$0xff]
                %276 = vst [vmem:[%s176 + $0x188] sm:$0xff] %v275
                %v277 = vld [vmem:[%s175 + $0x310] sm:$0xff]
                %278 = vst [vmem:[%s176 + $0x190] sm:$0xff] %v277
                %v279 = vld [vmem:[%s175 + $0x318] sm:$0xff]
                %280 = vst [vmem:[%s176 + $0x198] sm:$0xff] %v279
                %v281 = vld [vmem:[%s175 + $0x340] sm:$0xff]
                %282 = vst [vmem:[%s176 + $0x1a0] sm:$0xff] %v281
                %v283 = vld [vmem:[%s175 + $0x348] sm:$0xff]
                %284 = vst [vmem:[%s176 + $0x1a8] sm:$0xff] %v283
                %v285 = vld [vmem:[%s175 + $0x350] sm:$0xff]
                %286 = vst [vmem:[%s176 + $0x1b0] sm:$0xff] %v285
                %v287 = vld [vmem:[%s175 + $0x358] sm:$0xff]
                %288 = vst [vmem:[%s176 + $0x1b8] sm:$0xff] %v287
                %v289 = vld [vmem:[%s175 + $0x380] sm:$0xff]
                %290 = vst [vmem:[%s176 + $0x1c0] sm:$0xff] %v289
                %v291 = vld [vmem:[%s175 + $0x388] sm:$0xff]
                %292 = vst [vmem:[%s176 + $0x1c8] sm:$0xff] %v291
                %v293 = vld [vmem:[%s175 + $0x390] sm:$0xff]
                %294 = vst [vmem:[%s176 + $0x1d0] sm:$0xff] %v293
                %v295 = vld [vmem:[%s175 + $0x398] sm:$0xff]
                %296 = vst [vmem:[%s176 + $0x1d8] sm:$0xff] %v295
                %v297 = vld [vmem:[%s175 + $0x3c0] sm:$0xff]
                %298 = vst [vmem:[%s176 + $0x1e0] sm:$0xff] %v297
                %v299 = vld [vmem:[%s175 + $0x3c8] sm:$0xff]
                %300 = vst [vmem:[%s176 + $0x1e8] sm:$0xff] %v299
                %v301 = vld [vmem:[%s175 + $0x3d0] sm:$0xff]
                %302 = vst [vmem:[%s176 + $0x1f0] sm:$0xff] %v301
                %v303 = vld [vmem:[%s175 + $0x3d8] sm:$0xff]
                %304 = vst [vmem:[%s176 + $0x1f8] sm:$0xff] %v303
                %v305 = vld [vmem:[%s175 + $0x400] sm:$0xff]
                %306 = vst [vmem:[%s176 + $0x200] sm:$0xff] %v305
                %v307 = vld [vmem:[%s175 + $0x408] sm:$0xff]
                %308 = vst [vmem:[%s176 + $0x208] sm:$0xff] %v307
                %v309 = vld [vmem:[%s175 + $0x410] sm:$0xff]
                %310 = vst [vmem:[%s176 + $0x210] sm:$0xff] %v309
                %v311 = vld [vmem:[%s175 + $0x418] sm:$0xff]
                %312 = vst [vmem:[%s176 + $0x218] sm:$0xff] %v311
                %v313 = vld [vmem:[%s175 + $0x440] sm:$0xff]
                %314 = vst [vmem:[%s176 + $0x220] sm:$0xff] %v313
                %v315 = vld [vmem:[%s175 + $0x448] sm:$0xff]
                %316 = vst [vmem:[%s176 + $0x228] sm:$0xff] %v315
                %v317 = vld [vmem:[%s175 + $0x450] sm:$0xff]
                %318 = vst [vmem:[%s176 + $0x230] sm:$0xff] %v317
                %v319 = vld [vmem:[%s175 + $0x458] sm:$0xff]
                %320 = vst [vmem:[%s176 + $0x238] sm:$0xff] %v319
                %v321 = vld [vmem:[%s175 + $0x480] sm:$0xff]
                %322 = vst [vmem:[%s176 + $0x240] sm:$0xff] %v321
                %v323 = vld [vmem:[%s175 + $0x488] sm:$0xff]
                %324 = vst [vmem:[%s176 + $0x248] sm:$0xff] %v323
                %v325 = vld [vmem:[%s175 + $0x490] sm:$0xff]
                %326 = vst [vmem:[%s176 + $0x250] sm:$0xff] %v325
                %v327 = vld [vmem:[%s175 + $0x498] sm:$0xff]
                %328 = vst [vmem:[%s176 + $0x258] sm:$0xff] %v327
                %v329 = vld [vmem:[%s175 + $0x4c0] sm:$0xff]
                %330 = vst [vmem:[%s176 + $0x260] sm:$0xff] %v329
                %v331 = vld [vmem:[%s175 + $0x4c8] sm:$0xff]
                %332 = vst [vmem:[%s176 + $0x268] sm:$0xff] %v331
                %v333 = vld [vmem:[%s175 + $0x4d0] sm:$0xff]
                %334 = vst [vmem:[%s176 + $0x270] sm:$0xff] %v333
                %v335 = vld [vmem:[%s175 + $0x4d8] sm:$0xff]
                %336 = vst [vmem:[%s176 + $0x278] sm:$0xff] %v335
                %v337 = vld [vmem:[%s175 + $0x500] sm:$0xff]
                %338 = vst [vmem:[%s176 + $0x280] sm:$0xff] %v337
                %v339 = vld [vmem:[%s175 + $0x508] sm:$0xff]
                %340 = vst [vmem:[%s176 + $0x288] sm:$0xff] %v339
                %v341 = vld [vmem:[%s175 + $0x510] sm:$0xff]
                %342 = vst [vmem:[%s176 + $0x290] sm:$0xff] %v341
                %v343 = vld [vmem:[%s175 + $0x518] sm:$0xff]
                %344 = vst [vmem:[%s176 + $0x298] sm:$0xff] %v343
                %v345 = vld [vmem:[%s175 + $0x540] sm:$0xff]
                %346 = vst [vmem:[%s176 + $0x2a0] sm:$0xff] %v345
                %v347 = vld [vmem:[%s175 + $0x548] sm:$0xff]
                %348 = vst [vmem:[%s176 + $0x2a8] sm:$0xff] %v347
                %v349 = vld [vmem:[%s175 + $0x550] sm:$0xff]
                %350 = vst [vmem:[%s176 + $0x2b0] sm:$0xff] %v349
                %v351 = vld [vmem:[%s175 + $0x558] sm:$0xff]
                %352 = vst [vmem:[%s176 + $0x2b8] sm:$0xff] %v351
                %v353 = vld [vmem:[%s175 + $0x580] sm:$0xff]
                %354 = vst [vmem:[%s176 + $0x2c0] sm:$0xff] %v353
                %v355 = vld [vmem:[%s175 + $0x588] sm:$0xff]
                %356 = vst [vmem:[%s176 + $0x2c8] sm:$0xff] %v355
                %v357 = vld [vmem:[%s175 + $0x590] sm:$0xff]
                %358 = vst [vmem:[%s176 + $0x2d0] sm:$0xff] %v357
                %v359 = vld [vmem:[%s175 + $0x598] sm:$0xff]
                %360 = vst [vmem:[%s176 + $0x2d8] sm:$0xff] %v359
                %v361 = vld [vmem:[%s175 + $0x5c0] sm:$0xff]
                %362 = vst [vmem:[%s176 + $0x2e0] sm:$0xff] %v361
                %v363 = vld [vmem:[%s175 + $0x5c8] sm:$0xff]
                %364 = vst [vmem:[%s176 + $0x2e8] sm:$0xff] %v363
                %v365 = vld [vmem:[%s175 + $0x5d0] sm:$0xff]
                %366 = vst [vmem:[%s176 + $0x2f0] sm:$0xff] %v365
                %v367 = vld [vmem:[%s175 + $0x5d8] sm:$0xff]
                %368 = vst [vmem:[%s176 + $0x2f8] sm:$0xff] %v367
                %v369 = vld [vmem:[%s175 + $0x600] sm:$0xff]
                %370 = vst [vmem:[%s176 + $0x300] sm:$0xff] %v369
                %v371 = vld [vmem:[%s175 + $0x608] sm:$0xff]
                %372 = vst [vmem:[%s176 + $0x308] sm:$0xff] %v371
                %v373 = vld [vmem:[%s175 + $0x610] sm:$0xff]
                %374 = vst [vmem:[%s176 + $0x310] sm:$0xff] %v373
                %v375 = vld [vmem:[%s175 + $0x618] sm:$0xff]
                %376 = vst [vmem:[%s176 + $0x318] sm:$0xff] %v375
                %v377 = vld [vmem:[%s175 + $0x640] sm:$0xff]
                %378 = vst [vmem:[%s176 + $0x320] sm:$0xff] %v377
                %v379 = vld [vmem:[%s175 + $0x648] sm:$0xff]
                %380 = vst [vmem:[%s176 + $0x328] sm:$0xff] %v379
                %v381 = vld [vmem:[%s175 + $0x650] sm:$0xff]
                %382 = vst [vmem:[%s176 + $0x330] sm:$0xff] %v381
                %v383 = vld [vmem:[%s175 + $0x658] sm:$0xff]
                %384 = vst [vmem:[%s176 + $0x338] sm:$0xff] %v383
                %v385 = vld [vmem:[%s175 + $0x680] sm:$0xff]
                %386 = vst [vmem:[%s176 + $0x340] sm:$0xff] %v385
                %v387 = vld [vmem:[%s175 + $0x688] sm:$0xff]
                %388 = vst [vmem:[%s176 + $0x348] sm:$0xff] %v387
                %v389 = vld [vmem:[%s175 + $0x690] sm:$0xff]
                %390 = vst [vmem:[%s176 + $0x350] sm:$0xff] %v389
                %v391 = vld [vmem:[%s175 + $0x698] sm:$0xff]
                %392 = vst [vmem:[%s176 + $0x358] sm:$0xff] %v391
              $region41: #{hourglass_forward.10} parent=35 // loop_footer
                %s174 = sadd.s32 1, %s170
              $region42: #{hourglass_forward.10} parent=35 // loop_footer_branch
                %169 = sbr.rel target = $region38
              $region43: #{hourglass_forward.10} parent=35 // loop_exit
                _
            $region36: #{hourglass_forward.10} parent=31 // pred_fallthru
              _
            // Predicated region
            $region44: #{hourglass_forward.10} parent=31 // pred_check
              _
            $region45: #{hourglass_forward.10} parent=31 // pred_check_branch
              %394 = sbr.rel target = $region47
            $region46: #{hourglass_forward.10} parent=31 // pred_region
              _
            $region47: #{hourglass_forward.10} parent=31 // pred_fallthru
              _
          $region32: #{hourglass_forward.10} parent=27 // pred_fallthru
            _
          %395 = vnop
        $region28: #{hourglass_forward.10} parent=23 // pred_fallthru
          _
        // Predicated region
        $region48: #{hourglass_forward.10} parent=23 // pred_check
          %p396 = pneg %p98
        $region49: #{hourglass_forward.10} parent=23 // pred_check_branch
          %398 = sbr.rel (%p396) target = $region51
        $region50: #{hourglass_forward.10} parent=23 // pred_region
          %s399 = smul.u32 4, %s10
          %p400 = scmp.lt.s32.totalorder %s399, 7
          %s401 = scalar_select %p400, %s399, 7
          %s402 = smul.addr %s401, 8
          %s403 = scalar_lea.vmem %s3, %s402
          %s404 = smul.u32 4, %s10
        $region51: #{hourglass_forward.10} parent=23 // pred_fallthru
          _
      $region24: #{hourglass_forward.10} parent=5 // pred_fallthru
        _
      %p405 = scmp.le.s32.totalorder 1, %s10
      %p406 = scmp.lt.s32.totalorder %s10, 3
      %p407 = pnand %p405, %p406
      %p408 = pneg %p407
      // Predicated region
      $region52: #{hourglass_forward.10} parent=5 // pred_check
        _
      $region53: #{hourglass_forward.10} parent=5 // pred_check_branch
        %410 = sbr.rel (%p407) target = $region55
      $region54: #{hourglass_forward.10} parent=5 // pred_region
        %s411 = ssub.s32 %s10, 1
        %s412 = sand.u32 %s44, 1
        %s413 = sand.u32 %s44, 1
        %s414 = smul.addr %s413, 864
        %s415 = scalar_lea.vmem [#allocation2], %s414
        // Predicated region
        $region56: #{hourglass_forward.10} parent=54 // pred_check
          %p416 = pneg %p57
        $region57: #{hourglass_forward.10} parent=54 // pred_check_branch
          %418 = sbr.rel (%p416) target = $region59
        $region58: #{hourglass_forward.10} parent=54 // pred_region
          _
        $region59: #{hourglass_forward.10} parent=54 // pred_fallthru
          _
        %p419 = pneg %p31
        %p420 = pneg %p28
        %s421 = sand.u32 %s44, 1
        %s422 = sand.u32 %s44, 1
        %s423 = smul.addr %s422, 864
        %s424 = scalar_lea.vmem [#allocation2], %s423
        %p425 = pneg %p57
        %p426 = pneg %p54
        %p427 = pneg %p78
        %p428 = pneg %p75
        %s429 = smul.u32 4, %s15
        %p430 = scmp.lt.s32.totalorder %s429, 7
        %s431 = scalar_select %p430, %s429, 7
        %s432 = smul.addr %s431, 8
        %s433 = scalar_lea.vmem %s3, %s432
        %p434 = pneg %p104
        %p435 = pneg %p101
        %p436 = pneg %p130
        %p437 = pneg %p127
        %s438 = smul.u32 4, %s15
        %p439 = scmp.lt.s32.totalorder %s438, 7
        %s440 = scalar_select %p439, %s438, 7
        %s441 = smul.addr %s440, 8
        %s442 = scalar_lea.vmem %s4, %s441
        %s443 = smul.u32 4, %s15
        %s444 = smul.u32 4, %s15
        %p445 = scmp.lt.s32.totalorder %s444, 7
        %s446 = scalar_select %p445, %s444, 7
        %s447 = smul.addr %s446, 8
        %s448 = scalar_lea.vmem %s3, %s447
        %s449 = smul.u32 4, %s15
        %s450 = smul.u32 4, %s15
        %p451 = scmp.lt.s32.totalorder %s450, 7
        %s452 = scalar_select %p451, %s450, 7
        %s453 = smul.addr %s452, 8
        %s454 = scalar_lea.vmem %s4, %s453
        %s455 = smul.u32 4, %s15
        %v456 = vld [vmem:[%s0] sm:$0xff]
        %v457 = vld [vmem:[%s0 + $0x8] sm:$0xff]
        %v458 = vld [vmem:[%s415] sm:$0xff]
        %v459 = vld [vmem:[%s415 + $0x8] sm:$0xff]
        %v460 = vld [vmem:[%s415 + $0x10] sm:$0xff]
        %v461 = vld [vmem:[%s415 + $0x18] sm:$0xff]
        %v462 = vld [vmem:[%s415 + $0x20] sm:$0xff]
        %v463 = vld [vmem:[%s415 + $0x28] sm:$0xff]
        %v464 = vld [vmem:[%s415 + $0x30] sm:$0xff]
        %v465 = vld [vmem:[%s415 + $0x38] sm:$0xff]
        %v466 = vld [vmem:[%s415 + $0x40] sm:$0xff]
        %v467 = vld [vmem:[%s415 + $0x48] sm:$0xff]
        %v468 = vld [vmem:[%s415 + $0x50] sm:$0xff]
        %v469 = vld [vmem:[%s415 + $0x58] sm:$0xff]
        %v470 = vld [vmem:[%s415 + $0x60] sm:$0xff]
        %v471 = vld [vmem:[%s415 + $0x68] sm:$0xff]
        %v472 = vld [vmem:[%s415 + $0x70] sm:$0xff]
        %v473 = vld [vmem:[%s415 + $0x78] sm:$0xff]
        %v474 = vld [vmem:[%s415 + $0x80] sm:$0xff]
        %v475 = vld [vmem:[%s415 + $0x88] sm:$0xff]
        %v476 = vld [vmem:[%s415 + $0x90] sm:$0xff]
        %v477 = vld [vmem:[%s415 + $0x98] sm:$0xff]
        %v478 = vld [vmem:[%s415 + $0xa0] sm:$0xff]
        %v479 = vld [vmem:[%s415 + $0xa8] sm:$0xff]
        %v480 = vld [vmem:[%s415 + $0xb0] sm:$0xff]
        %v481 = vld [vmem:[%s415 + $0xb8] sm:$0xff]
        %v482 = vld [vmem:[%s415 + $0xc0] sm:$0xff]
        %v483 = vld [vmem:[%s415 + $0xc8] sm:$0xff]
        %v484 = vld [vmem:[%s415 + $0xd0] sm:$0xff]
        %v485 = vld [vmem:[%s415 + $0xd8] sm:$0xff]
        %v486 = vld [vmem:[%s415 + $0xe0] sm:$0xff]
        %v487 = vld [vmem:[%s415 + $0xe8] sm:$0xff]
        %v488 = vld [vmem:[%s415 + $0xf0] sm:$0xff]
        %v489 = vld [vmem:[%s415 + $0xf8] sm:$0xff]
        %v490 = vld [vmem:[%s415 + $0x100] sm:$0xff]
        %v491 = vld [vmem:[%s415 + $0x108] sm:$0xff]
        %v492 = vld [vmem:[%s415 + $0x110] sm:$0xff]
        %v493 = vld [vmem:[%s415 + $0x118] sm:$0xff]
        %v494 = vld [vmem:[%s415 + $0x120] sm:$0xff]
        %v495 = vld [vmem:[%s415 + $0x128] sm:$0xff]
        %v496 = vld [vmem:[%s415 + $0x130] sm:$0xff]
        %v497 = vld [vmem:[%s415 + $0x138] sm:$0xff]
        %v498 = vld [vmem:[%s415 + $0x140] sm:$0xff]
        %v499 = vld [vmem:[%s415 + $0x148] sm:$0xff]
        %v500 = vld [vmem:[%s415 + $0x150] sm:$0xff]
        %v501 = vld [vmem:[%s415 + $0x158] sm:$0xff]
        %v502 = vld [vmem:[%s415 + $0x160] sm:$0xff]
        %v503 = vld [vmem:[%s415 + $0x168] sm:$0xff]
        %v504 = vld [vmem:[%s415 + $0x170] sm:$0xff]
        %v505 = vld [vmem:[%s415 + $0x178] sm:$0xff]
        %v506 = vld [vmem:[%s415 + $0x180] sm:$0xff]
        %v507 = vld [vmem:[%s415 + $0x188] sm:$0xff]
        %v508 = vld [vmem:[%s415 + $0x190] sm:$0xff]
        %v509 = vld [vmem:[%s415 + $0x198] sm:$0xff]
        %v510 = vld [vmem:[%s415 + $0x1a0] sm:$0xff]
        %v511 = vld [vmem:[%s415 + $0x1a8] sm:$0xff]
        %v512 = vld [vmem:[%s415 + $0x1b0] sm:$0xff]
        %v513 = vld [vmem:[%s415 + $0x1b8] sm:$0xff]
        %v514 = vld [vmem:[%s415 + $0x1c0] sm:$0xff]
        %v515 = vld [vmem:[%s415 + $0x1c8] sm:$0xff]
        %v516 = vld [vmem:[%s415 + $0x1d0] sm:$0xff]
        %v517 = vld [vmem:[%s415 + $0x1d8] sm:$0xff]
        %v518 = vld [vmem:[%s415 + $0x1e0] sm:$0xff]
        %v519 = vld [vmem:[%s415 + $0x1e8] sm:$0xff]
        %v520 = vld [vmem:[%s415 + $0x1f0] sm:$0xff]
        %v521 = vld [vmem:[%s415 + $0x1f8] sm:$0xff]
        %v522 = vld [vmem:[%s415 + $0x200] sm:$0xff]
        %v523 = vld [vmem:[%s415 + $0x208] sm:$0xff]
        %v524 = vld [vmem:[%s415 + $0x210] sm:$0xff]
        %v525 = vld [vmem:[%s415 + $0x218] sm:$0xff]
        %v526 = vld [vmem:[%s415 + $0x220] sm:$0xff]
        %v527 = vld [vmem:[%s415 + $0x228] sm:$0xff]
        %v528 = vld [vmem:[%s415 + $0x230] sm:$0xff]
        %v529 = vld [vmem:[%s415 + $0x238] sm:$0xff]
        %v530 = vld [vmem:[%s415 + $0x240] sm:$0xff]
        %v531 = vld [vmem:[%s415 + $0x248] sm:$0xff]
        %v532 = vld [vmem:[%s415 + $0x250] sm:$0xff]
        %v533 = vld [vmem:[%s415 + $0x258] sm:$0xff]
        %v534 = vld [vmem:[%s415 + $0x260] sm:$0xff]
        %v535 = vld [vmem:[%s415 + $0x268] sm:$0xff]
        %v536 = vld [vmem:[%s415 + $0x270] sm:$0xff]
        %v537 = vld [vmem:[%s415 + $0x278] sm:$0xff]
        %v538 = vld [vmem:[%s415 + $0x280] sm:$0xff]
        %v539 = vld [vmem:[%s415 + $0x288] sm:$0xff]
        %v540 = vld [vmem:[%s415 + $0x290] sm:$0xff]
        %v541 = vld [vmem:[%s415 + $0x298] sm:$0xff]
        %v542 = vld [vmem:[%s415 + $0x2a0] sm:$0xff]
        %v543 = vld [vmem:[%s415 + $0x2a8] sm:$0xff]
        %v544 = vld [vmem:[%s415 + $0x2b0] sm:$0xff]
        %v545 = vld [vmem:[%s415 + $0x2b8] sm:$0xff]
        %v546 = vld [vmem:[%s415 + $0x2c0] sm:$0xff]
        %v547 = vld [vmem:[%s415 + $0x2c8] sm:$0xff]
        %v548 = vld [vmem:[%s415 + $0x2d0] sm:$0xff]
        %v549 = vld [vmem:[%s415 + $0x2d8] sm:$0xff]
        %v550 = vld [vmem:[%s415 + $0x2e0] sm:$0xff]
        %v551 = vld [vmem:[%s415 + $0x2e8] sm:$0xff]
        %v552 = vld [vmem:[%s415 + $0x2f0] sm:$0xff]
        %v553 = vld [vmem:[%s415 + $0x2f8] sm:$0xff]
        %v554 = vld [vmem:[%s415 + $0x300] sm:$0xff]
        %v555 = vld [vmem:[%s415 + $0x308] sm:$0xff]
        %v556 = vld [vmem:[%s415 + $0x310] sm:$0xff]
        %v557 = vld [vmem:[%s415 + $0x318] sm:$0xff]
        %v558 = vld [vmem:[%s415 + $0x320] sm:$0xff]
        %v559 = vld [vmem:[%s415 + $0x328] sm:$0xff]
        %v560 = vld [vmem:[%s415 + $0x330] sm:$0xff]
        %v561 = vld [vmem:[%s415 + $0x338] sm:$0xff]
        %v562 = vld [vmem:[%s415 + $0x340] sm:$0xff]
        %v563 = vld [vmem:[%s415 + $0x348] sm:$0xff]
        %v564 = vld [vmem:[%s415 + $0x350] sm:$0xff]
        %v565 = vld [vmem:[%s415 + $0x358] sm:$0xff]
        %v566 = vld [vmem:[%s2] sm:$0xff]
        %568 = vset.pattern.permute.xlu0 0
        %569 = vperm.xlu0 %568, %v566
        %v570 = vpop.permute.xlu0 %569
        %vm572 = vcmask 719872
        %v574 = vsel %vm572, %v457, 0
        %576 = vmatprep.subr.mxu0 %v459
        %577 = vmatpush1.msra.mxu0 %v458
        %578 = vmatprep.subr.mxu0 %v463
        %579 = vmatpush1.msra.mxu0 %v462
        %580 = vmatprep.subr.mxu0 %v467
        %581 = vmatpush1.msra.mxu0 %v466
        %582 = vmatprep.subr.mxu0 %v471
        %583 = vmatpush1.msra.mxu0 %v470
        %584 = vmatprep.subr.mxu0 %v475
        %585 = vmatpush1.msra.mxu0 %v474
        %586 = vmatprep.subr.mxu0 %v479
        %587 = vmatpush1.msra.mxu0 %v478
        %588 = vmatprep.subr.mxu0 %v483
        %589 = vmatpush1.msra.mxu0 %v482
        %590 = vmatprep.subr.mxu0 %v487
        %591 = vmatpush1.msra.mxu0 %v486
        %592 = vmatprep.subr.mxu0 %v491
        %593 = vmatpush1.msra.mxu0 %v490
        %594 = vmatprep.subr.mxu0 %v495
        %595 = vmatpush1.msra.mxu0 %v494
        %596 = vmatprep.subr.mxu0 %v499
        %597 = vmatpush1.msra.mxu0 %v498
        %598 = vmatprep.subr.mxu0 %v503
        %599 = vmatpush1.msra.mxu0 %v502
        %600 = vmatprep.subr.mxu0 %v507
        %601 = vmatpush1.msra.mxu0 %v506
        %602 = vmatprep.subr.mxu0 %v511
        %603 = vmatpush1.msra.mxu0 %v510
        %604 = vmatprep.subr.mxu0 %v515
        %605 = vmatpush1.msra.mxu0 %v514
        %606 = vmatprep.subr.mxu0 %v519
        %607 = vmatpush1.msra.mxu0 %v518
        %608 = vmatprep.subr.mxu0 %v523
        %609 = vmatpush1.msra.mxu0 %v522
        %610 = vmatprep.subr.mxu0 %v527
        %611 = vmatpush1.msra.mxu0 %v526
        %612 = vmatprep.subr.mxu0 %v531
        %613 = vmatpush1.msra.mxu0 %v530
        %614 = vmatprep.subr.mxu0 %v535
        %615 = vmatpush1.msra.mxu0 %v534
        %616 = vmatprep.subr.mxu0 %v539
        %617 = vmatpush1.msra.mxu0 %v538
        %618 = vmatprep.subr.mxu0 %v543
        %619 = vmatpush1.msra.mxu0 %v542
        %620 = vmatprep.subr.mxu0 %v547
        %621 = vmatpush1.msra.mxu0 %v546
        %622 = vmatprep.subr.mxu0 %v551
        %623 = vmatpush1.msra.mxu0 %v550
        %624 = vmatprep.subr.mxu0 %v555
        %625 = vmatpush1.msra.mxu0 %v554
        %626 = vmatprep.subr.mxu0 %v559
        %627 = vmatpush1.msra.mxu0 %v558
        %628 = vmatprep.subr.mxu0 %v563
        %629 = vmatpush1.msra.mxu0 %v562
        %630 = vmatprep.subr.mxu0 0.0
        %631 = vmatpush1.msra.mxu0 0.0
        %632 = vmatprep.subr.mxu0 0.0
        %633 = vmatpush1.msra.mxu0 0.0
        %634 = vmatprep.subr.mxu0 0.0
        %635 = vmatpush1.msra.mxu0 0.0
        %636 = vmatprep.subr.mxu0 0.0
        %637 = vmatpush1.msra.mxu0 0.0
        %638 = vmatprep.subr.mxu0 0.0
        %639 = vmatpush1.msra.mxu0 0.0
        %640 = vmatprep.mubr.f32.mxu0 %v574
        %641 = vmatmul.mubr.f32.gmra.mrb[0].mxu0 %v456
        %v642 = vpop.f32.mrb[0].mxu0
        %v643 = vadd.f32 %v570, %v642
        %v644 = vpop.f32.mrb[0].mxu0
        %v645 = vadd.f32 %v570, %v644
        %646 = vdwg.mxu0
        %647 = vmatprep.subr.mxu0 %v461
        %648 = vmatpush1.msra.mxu0 %v460
        %649 = vmatprep.subr.mxu0 %v465
        %650 = vmatpush1.msra.mxu0 %v464
        %651 = vmatprep.subr.mxu0 %v469
        %652 = vmatpush1.msra.mxu0 %v468
        %653 = vmatprep.subr.mxu0 %v473
        %654 = vmatpush1.msra.mxu0 %v472
        %655 = vmatprep.subr.mxu0 %v477
        %656 = vmatpush1.msra.mxu0 %v476
        %657 = vmatprep.subr.mxu0 %v481
        %658 = vmatpush1.msra.mxu0 %v480
        %659 = vmatprep.subr.mxu0 %v485
        %660 = vmatpush1.msra.mxu0 %v484
        %661 = vmatprep.subr.mxu0 %v489
        %662 = vmatpush1.msra.mxu0 %v488
        %663 = vmatprep.subr.mxu0 %v493
        %664 = vmatpush1.msra.mxu0 %v492
        %665 = vmatprep.subr.mxu0 %v497
        %666 = vmatpush1.msra.mxu0 %v496
        %667 = vmatprep.subr.mxu0 %v501
        %668 = vmatpush1.msra.mxu0 %v500
        %669 = vmatprep.subr.mxu0 %v505
        %670 = vmatpush1.msra.mxu0 %v504
        %671 = vmatprep.subr.mxu0 %v509
        %672 = vmatpush1.msra.mxu0 %v508
        %673 = vmatprep.subr.mxu0 %v513
        %674 = vmatpush1.msra.mxu0 %v512
        %675 = vmatprep.subr.mxu0 %v517
        %676 = vmatpush1.msra.mxu0 %v516
        %677 = vmatprep.subr.mxu0 %v521
        %678 = vmatpush1.msra.mxu0 %v520
        %679 = vmatprep.subr.mxu0 %v525
        %680 = vmatpush1.msra.mxu0 %v524
        %681 = vmatprep.subr.mxu0 %v529
        %682 = vmatpush1.msra.mxu0 %v528
        %683 = vmatprep.subr.mxu0 %v533
        %684 = vmatpush1.msra.mxu0 %v532
        %685 = vmatprep.subr.mxu0 %v537
        %686 = vmatpush1.msra.mxu0 %v536
        %687 = vmatprep.subr.mxu0 %v541
        %688 = vmatpush1.msra.mxu0 %v540
        %689 = vmatprep.subr.mxu0 %v545
        %690 = vmatpush1.msra.mxu0 %v544
        %691 = vmatprep.subr.mxu0 %v549
        %692 = vmatpush1.msra.mxu0 %v548
        %693 = vmatprep.subr.mxu0 %v553
        %694 = vmatpush1.msra.mxu0 %v552
        %695 = vmatprep.subr.mxu0 %v557
        %696 = vmatpush1.msra.mxu0 %v556
        %697 = vmatprep.subr.mxu0 %v561
        %698 = vmatpush1.msra.mxu0 %v560
        %699 = vmatprep.subr.mxu0 %v565
        %700 = vmatpush1.msra.mxu0 %v564
        %701 = vmatprep.subr.mxu0 0.0
        %702 = vmatpush1.msra.mxu0 0.0
        %703 = vmatprep.subr.mxu0 0.0
        %704 = vmatpush1.msra.mxu0 0.0
        %705 = vmatprep.subr.mxu0 0.0
        %706 = vmatpush1.msra.mxu0 0.0
        %707 = vmatprep.subr.mxu0 0.0
        %708 = vmatpush1.msra.mxu0 0.0
        %709 = vmatprep.subr.mxu0 0.0
        %710 = vmatpush1.msra.mxu0 0.0
        %711 = vmatprep.mubr.f32.mxu0 %v574
        %712 = vmatmul.mubr.f32.gmra.mrb[0].mxu0 %v456
        %v713 = vpop.f32.mrb[0].mxu0
        %v714 = vadd.f32 %v570, %v713
        %v715 = vpop.f32.mrb[0].mxu0
        %v716 = vadd.f32 %v570, %v715
        %717 = vdwg.mxu0
        %v718 = vld [vmem:[%s448] sm:$0xff]
        %v719 = vld [vmem:[%s448 + $0x8] sm:$0xff]
        %v720 = vld [vmem:[%s448 + $0x10] sm:$0xff]
        %v721 = vld [vmem:[%s448 + $0x18] sm:$0xff]
        %v722 = vadd.f32 %v643, %v718
        %v723 = vadd.f32 %v645, %v719
        %v724 = vadd.f32 %v714, %v720
        %v725 = vadd.f32 %v716, %v721
        %v726 = vmax.f32 %v722, 0.0
        %v727 = vmax.f32 %v723, 0.0
        %v728 = vmax.f32 %v724, 0.0
        %v729 = vmax.f32 %v725, 0.0
        %730 = vst [vmem:[%s454] sm:$0xff] %v726
        %731 = vst [vmem:[%s454 + $0x8] sm:$0xff] %v727
        %732 = vst [vmem:[%s454 + $0x10] sm:$0xff] %v728
        %733 = vst [vmem:[%s454 + $0x18] sm:$0xff] %v729
        %s734 = smul.u32 4, %s15
        %p735 = scmp.lt.s32.totalorder %s734, 7
        %s736 = scalar_select %p735, %s734, 7
        %s737 = smul.addr %s736, 8
        %s738 = scalar_lea.vmem %s4, %s737
        // Predicated region
        $region60: #{hourglass_forward.10} parent=54 // pred_check
          %p739 = pneg %p127
        $region61: #{hourglass_forward.10} parent=54 // pred_check_branch
          %741 = sbr.rel (%p739) target = $region63
        $region62: #{hourglass_forward.10} parent=54 // pred_region
          %s742 = smul.u32 4, %s15
        $region63: #{hourglass_forward.10} parent=54 // pred_fallthru
          _
      $region55: #{hourglass_forward.10} parent=5 // pred_fallthru
        _
      %p743 = scmp.le.s32.totalorder 2, %s10
      // Predicated region
      $region64: #{hourglass_forward.10} parent=5 // pred_check
        %p744 = pneg %p743
      $region65: #{hourglass_forward.10} parent=5 // pred_check_branch
        %746 = sbr.rel (%p744) target = $region67
      $region66: #{hourglass_forward.10} parent=5 // pred_region
        %s747 = ssub.s32 %s10, 2
        // Predicated region
        $region68: #{hourglass_forward.10} parent=66 // pred_check
          %p748 = pneg %p133
        $region69: #{hourglass_forward.10} parent=66 // pred_check_branch
          %750 = sbr.rel (%p748) target = $region71
        $region70: #{hourglass_forward.10} parent=66 // pred_region
          %s751 = smul.u32 4, %s16
          %p752 = scmp.lt.s32.totalorder %s751, 7
          %s753 = scalar_select %p752, %s751, 7
          %s754 = smul.addr %s753, 8
          %s755 = scalar_lea.vmem %s4, %s754
        $region71: #{hourglass_forward.10} parent=66 // pred_fallthru
          _
      $region67: #{hourglass_forward.10} parent=5 // pred_fallthru
        _
    $region6: #{hourglass_forward.10} parent=1 // loop_footer
      %s14 = sadd.s32 1, %s10
    $region7: #{hourglass_forward.10} parent=1 // loop_footer_branch
      %9 = sbr.rel target = $region3
    $region8: #{hourglass_forward.10} parent=1 // loop_exit
      _

// kernel: hourglass_forward.11
$region0: #{hourglass_forward.11}
  #allocation0 [shape = 'u32[]', space=smem, size = 0x4, offset = 0x4, fixed_abs, tag = 'smem constant byte address 0x4 - core index']
  #allocation1 [shape = 'u32[144,128]{1,0:T(1,128)}', space=vmem, size = 0x12000, scoped, tag = 'internal scratch']
  %s0 = inlined_call_operand.vmem [shape: f32[4,216], index: 0, kind: input, shape index: {}]
  %s1 = inlined_call_operand.vmem [shape: f32[216,8192], index: 1, kind: input, shape index: {}]
  %s2 = inlined_call_operand.vmem [shape: f32[4,1], index: 2, kind: input, shape index: {}]
  %s3 = inlined_call_operand.vmem [shape: f32[4,8192], index: 3, kind: output, shape index: {}]
  %s4 = sld [smem:[#allocation0]]
  $region68: #{hourglass_forward.11} parent=0
    _
  %s6 = ssub.s32 1, %s4
  %s7 = scalar_select 0, %s6, %s4
  $region1: #{hourglass_forward.11} parent=0
    #allocation2 [shape = 'u8[1769472]{0}', space=vmem, size = 0x1b0000, scoped, tag = 'input window, operand 1']
    loop: start=0, step=1, limit=10
    $region2: #{hourglass_forward.11} parent=1 // loop_pre_header
      _
    $region3: #{hourglass_forward.11} parent=1 // loop_header
      %s9 = sphi 0, %s13
      %p10 = scmp.ge.s32.totalorder %s9, 10
      %s17 = sphi 0, %s17
      %s19 = sphi 0, %s17
      %s20 = sphi 0, %s19
      %s34 = sphi 0, %s20
      %s40 = sphi 0, %s42
      %s43 = sphi 0, %s40
      %s44 = sphi 0, %s43
      %s60 = sphi 0, %s44
      %s64 = sphi 0, %s64
      %s66 = sphi 0, %s64
      %s67 = sphi 0, %s66
      %s81 = sphi 0, %s67
      %s87 = sphi 0, %s89
      %s90 = sphi 0, %s87
      %s91 = sphi 0, %s90
      %s107 = sphi 0, %s91
    $region4: #{hourglass_forward.11} parent=1 // loop_header_branch
      %12 = sbr.rel (%p10) target = $region8
    $region5: #{hourglass_forward.11} parent=1 // loop_body
      %s14 = ssub.s32 %s9, 1
      %s15 = ssub.s32 %s9, 2
      %s16 = sadd.s32 %s9, 1
      %s18 = sadd.s32 %s17, 1
      %p21 = scmp.eq.s32.totalorder %s9, 7
      %p22 = scmp.ne.s32.totalorder %s17, %s19
      %p23 = scmp.eq.s32.totalorder %s9, 0
      %p24 = por %p22, %p23
      %p25 = scmp.ne.s32.totalorder %s17, %s19
      %p26 = scmp.eq.s32.totalorder %s14, 7
      %p27 = por %p25, %p26
      %p28 = scmp.ne.s32.totalorder %s19, %s20
      %p29 = scmp.eq.s32.totalorder %s14, 0
      %p30 = por %p28, %p29
      %p31 = scmp.ne.s32.totalorder %s19, %s20
      %p32 = scmp.eq.s32.totalorder %s15, 7
      %p33 = por %p31, %p32
      %p35 = scmp.ne.s32.totalorder %s20, %s34
      %p36 = scmp.eq.s32.totalorder %s15, 0
      %p37 = por %p35, %p36
      %s38 = ssub.s32 %s9, %s16
      %p39 = scmp.eq.s32.totalorder %s38, 0
      %s41 = sadd.s32 %s40, 1
      %s42 = scalar_select %p39, %s40, %s41
      %p45 = pneg %p39
      %p46 = scmp.eq.s32.totalorder %s9, 7
      %p47 = por %p45, %p46
      %p48 = scmp.ne.s32.totalorder %s40, %s43
      %p49 = scmp.eq.s32.totalorder %s9, 0
      %p50 = por %p48, %p49
      %p51 = scmp.ne.s32.totalorder %s40, %s43
      %p52 = scmp.eq.s32.totalorder %s14, 7
      %p53 = por %p51, %p52
      %p54 = scmp.ne.s32.totalorder %s43, %s44
      %p55 = scmp.eq.s32.totalorder %s14, 0
      %p56 = por %p54, %p55
      %p57 = scmp.ne.s32.totalorder %s43, %s44
      %p58 = scmp.eq.s32.totalorder %s15, 7
      %p59 = por %p57, %p58
      %p61 = scmp.ne.s32.totalorder %s44, %s60
      %p62 = scmp.eq.s32.totalorder %s15, 0
      %p63 = por %p61, %p62
      %s65 = sadd.s32 %s64, 1
      %p68 = scmp.eq.s32.totalorder %s9, 7
      %p69 = scmp.ne.s32.totalorder %s64, %s66
      %p70 = scmp.eq.s32.totalorder %s9, 0
      %p71 = por %p69, %p70
      %p72 = scmp.ne.s32.totalorder %s64, %s66
      %p73 = scmp.eq.s32.totalorder %s14, 7
      %p74 = por %p72, %p73
      %p75 = scmp.ne.s32.totalorder %s66, %s67
      %p76 = scmp.eq.s32.totalorder %s14, 0
      %p77 = por %p75, %p76
      %p78 = scmp.ne.s32.totalorder %s66, %s67
      %p79 = scmp.eq.s32.totalorder %s15, 7
      %p80 = por %p78, %p79
      %p82 = scmp.ne.s32.totalorder %s67, %s81
      %p83 = scmp.eq.s32.totalorder %s15, 0
      %p84 = por %p82, %p83
      %s85 = ssub.s32 %s9, %s16
      %p86 = scmp.eq.s32.totalorder %s85, 0
      %s88 = sadd.s32 %s87, 1
      %s89 = scalar_select %p86, %s87, %s88
      %p92 = pneg %p86
      %p93 = scmp.eq.s32.totalorder %s9, 7
      %p94 = por %p92, %p93
      %p95 = scmp.ne.s32.totalorder %s87, %s90
      %p96 = scmp.eq.s32.totalorder %s9, 0
      %p97 = por %p95, %p96
      %p98 = scmp.ne.s32.totalorder %s87, %s90
      %p99 = scmp.eq.s32.totalorder %s14, 7
      %p100 = por %p98, %p99
      %p101 = scmp.ne.s32.totalorder %s90, %s91
      %p102 = scmp.eq.s32.totalorder %s14, 0
      %p103 = por %p101, %p102
      %p104 = scmp.ne.s32.totalorder %s90, %s91
      %p105 = scmp.eq.s32.totalorder %s15, 7
      %p106 = por %p104, %p105
      %p108 = scmp.ne.s32.totalorder %s91, %s107
      %p109 = scmp.eq.s32.totalorder %s15, 0
      %p110 = por %p108, %p109
      %p111 = scmp.le.s32.totalorder 1, %s9
      %p112 = scmp.lt.s32.totalorder %s9, 9
      %p113 = pnand %p111, %p112
      %p114 = pneg %p113
      // Predicated region
      $region9: #{hourglass_forward.11} parent=5 // pred_check
        _
      $region10: #{hourglass_forward.11} parent=5 // pred_check_branch
        %116 = sbr.rel (%p113) target = $region12
      $region11: #{hourglass_forward.11} parent=5 // pred_region
        %s117 = ssub.s32 %s9, 1
        // Predicated region
        $region13: #{hourglass_forward.11} parent=11 // pred_check
          %p118 = pneg %p30
        $region14: #{hourglass_forward.11} parent=11 // pred_check_branch
          %120 = sbr.rel (%p118) target = $region16
        $region15: #{hourglass_forward.11} parent=11 // pred_region
          _
        $region16: #{hourglass_forward.11} parent=11 // pred_fallthru
          _
        // Predicated region
        $region17: #{hourglass_forward.11} parent=11 // pred_check
          %p121 = pneg %p77
        $region18: #{hourglass_forward.11} parent=11 // pred_check_branch
          %123 = sbr.rel (%p121) target = $region20
        $region19: #{hourglass_forward.11} parent=11 // pred_region
          _
        $region20: #{hourglass_forward.11} parent=11 // pred_fallthru
          _
      $region12: #{hourglass_forward.11} parent=5 // pred_fallthru
        _
      %p124 = scmp.lt.s32.totalorder %s9, 8
      // Predicated region
      $region21: #{hourglass_forward.11} parent=5 // pred_check
        %p125 = pneg %p124
      $region22: #{hourglass_forward.11} parent=5 // pred_check_branch
        %127 = sbr.rel (%p125) target = $region24
      $region23: #{hourglass_forward.11} parent=5 // pred_region
        // Predicated region
        $region25: #{hourglass_forward.11} parent=23 // pred_check
          %p128 = pneg %p50
        $region26: #{hourglass_forward.11} parent=23 // pred_check_branch
          %130 = sbr.rel (%p128) target = $region28
        $region27: #{hourglass_forward.11} parent=23 // pred_region
          %s131 = sand.u32 %s40, 1
          %s132 = sand.u32 %s40, 1
          %s133 = smul.addr %s132, 1728
          %s134 = scalar_lea.vmem [#allocation2], %s133
          %s135 = smul.u32 8, %s9
          %s136 = smul.addr %s135, 8
          %s137 = scalar_lea.vmem %s1, %s136
          // Predicated region
          $region29: #{hourglass_forward.11} parent=27 // pred_check
            _
          $region30: #{hourglass_forward.11} parent=27 // pred_check_branch
            %139 = sbr.rel (0) target = $region32
          $region31: #{hourglass_forward.11} parent=27 // pred_region
            // Predicated region
            $region33: #{hourglass_forward.11} parent=31 // pred_check
              _
            $region34: #{hourglass_forward.11} parent=31 // pred_check_branch
              %141 = sbr.rel (0) target = $region36
            $region35: #{hourglass_forward.11} parent=31 // pred_region
              loop: start=0, step=1, limit=1
              $region37: #{hourglass_forward.11} parent=35 // loop_pre_header
                _
              $region38: #{hourglass_forward.11} parent=35 // loop_header
                %s143 = sphi 0, %s147
                %p144 = scmp.ge.s32.totalorder %s143, 1
                %s148 = sphi %s137, %s137
                %s149 = sphi %s134, %s134
              $region39: #{hourglass_forward.11} parent=35 // loop_header_branch
                %146 = sbr.rel (%p144) target = $region43
              $region40: #{hourglass_forward.11} parent=35 // loop_body
                %v150 = vld [vmem:[%s148] sm:$0xff]
                %151 = vst [vmem:[%s149] sm:$0xff] %v150
                %v152 = vld [vmem:[%s148 + $0x8] sm:$0xff]
                %153 = vst [vmem:[%s149 + $0x8] sm:$0xff] %v152
                %v154 = vld [vmem:[%s148 + $0x10] sm:$0xff]
                %155 = vst [vmem:[%s149 + $0x10] sm:$0xff] %v154
                %v156 = vld [vmem:[%s148 + $0x18] sm:$0xff]
                %157 = vst [vmem:[%s149 + $0x18] sm:$0xff] %v156
                %v158 = vld [vmem:[%s148 + $0x20] sm:$0xff]
                %159 = vst [vmem:[%s149 + $0x20] sm:$0xff] %v158
                %v160 = vld [vmem:[%s148 + $0x28] sm:$0xff]
                %161 = vst [vmem:[%s149 + $0x28] sm:$0xff] %v160
                %v162 = vld [vmem:[%s148 + $0x30] sm:$0xff]
                %163 = vst [vmem:[%s149 + $0x30] sm:$0xff] %v162
                %v164 = vld [vmem:[%s148 + $0x38] sm:$0xff]
                %165 = vst [vmem:[%s149 + $0x38] sm:$0xff] %v164
                %v166 = vld [vmem:[%s148 + $0x200] sm:$0xff]
                %167 = vst [vmem:[%s149 + $0x40] sm:$0xff] %v166
                %v168 = vld [vmem:[%s148 + $0x208] sm:$0xff]
                %169 = vst [vmem:[%s149 + $0x48] sm:$0xff] %v168
                %v170 = vld [vmem:[%s148 + $0x210] sm:$0xff]
                %171 = vst [vmem:[%s149 + $0x50] sm:$0xff] %v170
                %v172 = vld [vmem:[%s148 + $0x218] sm:$0xff]
                %173 = vst [vmem:[%s149 + $0x58] sm:$0xff] %v172
                %v174 = vld [vmem:[%s148 + $0x220] sm:$0xff]
                %175 = vst [vmem:[%s149 + $0x60] sm:$0xff] %v174
                %v176 = vld [vmem:[%s148 + $0x228] sm:$0xff]
                %177 = vst [vmem:[%s149 + $0x68] sm:$0xff] %v176
                %v178 = vld [vmem:[%s148 + $0x230] sm:$0xff]
                %179 = vst [vmem:[%s149 + $0x70] sm:$0xff] %v178
                %v180 = vld [vmem:[%s148 + $0x238] sm:$0xff]
                %181 = vst [vmem:[%s149 + $0x78] sm:$0xff] %v180
                %v182 = vld [vmem:[%s148 + $0x400] sm:$0xff]
                %183 = vst [vmem:[%s149 + $0x80] sm:$0xff] %v182
                %v184 = vld [vmem:[%s148 + $0x408] sm:$0xff]
                %185 = vst [vmem:[%s149 + $0x88] sm:$0xff] %v184
                %v186 = vld [vmem:[%s148 + $0x410] sm:$0xff]
                %187 = vst [vmem:[%s149 + $0x90] sm:$0xff] %v186
                %v188 = vld [vmem:[%s148 + $0x418] sm:$0xff]
                %189 = vst [vmem:[%s149 + $0x98] sm:$0xff] %v188
                %v190 = vld [vmem:[%s148 + $0x420] sm:$0xff]
                %191 = vst [vmem:[%s149 + $0xa0] sm:$0xff] %v190
                %v192 = vld [vmem:[%s148 + $0x428] sm:$0xff]
                %193 = vst [vmem:[%s149 + $0xa8] sm:$0xff] %v192
                %v194 = vld [vmem:[%s148 + $0x430] sm:$0xff]
                %195 = vst [vmem:[%s149 + $0xb0] sm:$0xff] %v194
                %v196 = vld [vmem:[%s148 + $0x438] sm:$0xff]
                %197 = vst [vmem:[%s149 + $0xb8] sm:$0xff] %v196
                %v198 = vld [vmem:[%s148 + $0x600] sm:$0xff]
                %199 = vst [vmem:[%s149 + $0xc0] sm:$0xff] %v198
                %v200 = vld [vmem:[%s148 + $0x608] sm:$0xff]
                %201 = vst [vmem:[%s149 + $0xc8] sm:$0xff] %v200
                %v202 = vld [vmem:[%s148 + $0x610] sm:$0xff]
                %203 = vst [vmem:[%s149 + $0xd0] sm:$0xff] %v202
                %v204 = vld [vmem:[%s148 + $0x618] sm:$0xff]
                %205 = vst [vmem:[%s149 + $0xd8] sm:$0xff] %v204
                %v206 = vld [vmem:[%s148 + $0x620] sm:$0xff]
                %207 = vst [vmem:[%s149 + $0xe0] sm:$0xff] %v206
                %v208 = vld [vmem:[%s148 + $0x628] sm:$0xff]
                %209 = vst [vmem:[%s149 + $0xe8] sm:$0xff] %v208
                %v210 = vld [vmem:[%s148 + $0x630] sm:$0xff]
                %211 = vst [vmem:[%s149 + $0xf0] sm:$0xff] %v210
                %v212 = vld [vmem:[%s148 + $0x638] sm:$0xff]
                %213 = vst [vmem:[%s149 + $0xf8] sm:$0xff] %v212
                %v214 = vld [vmem:[%s148 + $0x800] sm:$0xff]
                %215 = vst [vmem:[%s149 + $0x100] sm:$0xff] %v214
                %v216 = vld [vmem:[%s148 + $0x808] sm:$0xff]
                %217 = vst [vmem:[%s149 + $0x108] sm:$0xff] %v216
                %v218 = vld [vmem:[%s148 + $0x810] sm:$0xff]
                %219 = vst [vmem:[%s149 + $0x110] sm:$0xff] %v218
                %v220 = vld [vmem:[%s148 + $0x818] sm:$0xff]
                %221 = vst [vmem:[%s149 + $0x118] sm:$0xff] %v220
                %v222 = vld [vmem:[%s148 + $0x820] sm:$0xff]
                %223 = vst [vmem:[%s149 + $0x120] sm:$0xff] %v222
                %v224 = vld [vmem:[%s148 + $0x828] sm:$0xff]
                %225 = vst [vmem:[%s149 + $0x128] sm:$0xff] %v224
                %v226 = vld [vmem:[%s148 + $0x830] sm:$0xff]
                %227 = vst [vmem:[%s149 + $0x130] sm:$0xff] %v226
                %v228 = vld [vmem:[%s148 + $0x838] sm:$0xff]
                %229 = vst [vmem:[%s149 + $0x138] sm:$0xff] %v228
                %v230 = vld [vmem:[%s148 + $0xa00] sm:$0xff]
                %231 = vst [vmem:[%s149 + $0x140] sm:$0xff] %v230
                %v232 = vld [vmem:[%s148 + $0xa08] sm:$0xff]
                %233 = vst [vmem:[%s149 + $0x148] sm:$0xff] %v232
                %v234 = vld [vmem:[%s148 + $0xa10] sm:$0xff]
                %235 = vst [vmem:[%s149 + $0x150] sm:$0xff] %v234
                %v236 = vld [vmem:[%s148 + $0xa18] sm:$0xff]
                %237 = vst [vmem:[%s149 + $0x158] sm:$0xff] %v236
                %v238 = vld [vmem:[%s148 + $0xa20] sm:$0xff]
                %239 = vst [vmem:[%s149 + $0x160] sm:$0xff] %v238
                %v240 = vld [vmem:[%s148 + $0xa28] sm:$0xff]
                %241 = vst [vmem:[%s149 + $0x168] sm:$0xff] %v240
                %v242 = vld [vmem:[%s148 + $0xa30] sm:$0xff]
                %243 = vst [vmem:[%s149 + $0x170] sm:$0xff] %v242
                %v244 = vld [vmem:[%s148 + $0xa38] sm:$0xff]
                %245 = vst [vmem:[%s149 + $0x178] sm:$0xff] %v244
                %v246 = vld [vmem:[%s148 + $0xc00] sm:$0xff]
                %247 = vst [vmem:[%s149 + $0x180] sm:$0xff] %v246
                %v248 = vld [vmem:[%s148 + $0xc08] sm:$0xff]
                %249 = vst [vmem:[%s149 + $0x188] sm:$0xff] %v248
                %v250 = vld [vmem:[%s148 + $0xc10] sm:$0xff]
                %251 = vst [vmem:[%s149 + $0x190] sm:$0xff] %v250
                %v252 = vld [vmem:[%s148 + $0xc18] sm:$0xff]
                %253 = vst [vmem:[%s149 + $0x198] sm:$0xff] %v252
                %v254 = vld [vmem:[%s148 + $0xc20] sm:$0xff]
                %255 = vst [vmem:[%s149 + $0x1a0] sm:$0xff] %v254
                %v256 = vld [vmem:[%s148 + $0xc28] sm:$0xff]
                %257 = vst [vmem:[%s149 + $0x1a8] sm:$0xff] %v256
                %v258 = vld [vmem:[%s148 + $0xc30] sm:$0xff]
                %259 = vst [vmem:[%s149 + $0x1b0] sm:$0xff] %v258
                %v260 = vld [vmem:[%s148 + $0xc38] sm:$0xff]
                %261 = vst [vmem:[%s149 + $0x1b8] sm:$0xff] %v260
                %v262 = vld [vmem:[%s148 + $0xe00] sm:$0xff]
                %263 = vst [vmem:[%s149 + $0x1c0] sm:$0xff] %v262
                %v264 = vld [vmem:[%s148 + $0xe08] sm:$0xff]
                %265 = vst [vmem:[%s149 + $0x1c8] sm:$0xff] %v264
                %v266 = vld [vmem:[%s148 + $0xe10] sm:$0xff]
                %267 = vst [vmem:[%s149 + $0x1d0] sm:$0xff] %v266
                %v268 = vld [vmem:[%s148 + $0xe18] sm:$0xff]
                %269 = vst [vmem:[%s149 + $0x1d8] sm:$0xff] %v268
                %v270 = vld [vmem:[%s148 + $0xe20] sm:$0xff]
                %271 = vst [vmem:[%s149 + $0x1e0] sm:$0xff] %v270
                %v272 = vld [vmem:[%s148 + $0xe28] sm:$0xff]
                %273 = vst [vmem:[%s149 + $0x1e8] sm:$0xff] %v272
                %v274 = vld [vmem:[%s148 + $0xe30] sm:$0xff]
                %275 = vst [vmem:[%s149 + $0x1f0] sm:$0xff] %v274
                %v276 = vld [vmem:[%s148 + $0xe38] sm:$0xff]
                %277 = vst [vmem:[%s149 + $0x1f8] sm:$0xff] %v276
                %v278 = vld [vmem:[%s148 + $0x1000] sm:$0xff]
                %279 = vst [vmem:[%s149 + $0x200] sm:$0xff] %v278
                %v280 = vld [vmem:[%s148 + $0x1008] sm:$0xff]
                %281 = vst [vmem:[%s149 + $0x208] sm:$0xff] %v280
                %v282 = vld [vmem:[%s148 + $0x1010] sm:$0xff]
                %283 = vst [vmem:[%s149 + $0x210] sm:$0xff] %v282
                %v284 = vld [vmem:[%s148 + $0x1018] sm:$0xff]
                %285 = vst [vmem:[%s149 + $0x218] sm:$0xff] %v284
                %v286 = vld [vmem:[%s148 + $0x1020] sm:$0xff]
                %287 = vst [vmem:[%s149 + $0x220] sm:$0xff] %v286
                %v288 = vld [vmem:[%s148 + $0x1028] sm:$0xff]
                %289 = vst [vmem:[%s149 + $0x228] sm:$0xff] %v288
                %v290 = vld [vmem:[%s148 + $0x1030] sm:$0xff]
                %291 = vst [vmem:[%s149 + $0x230] sm:$0xff] %v290
                %v292 = vld [vmem:[%s148 + $0x1038] sm:$0xff]
                %293 = vst [vmem:[%s149 + $0x238] sm:$0xff] %v292
                %v294 = vld [vmem:[%s148 + $0x1200] sm:$0xff]
                %295 = vst [vmem:[%s149 + $0x240] sm:$0xff] %v294
                %v296 = vld [vmem:[%s148 + $0x1208] sm:$0xff]
                %297 = vst [vmem:[%s149 + $0x248] sm:$0xff] %v296
                %v298 = vld [vmem:[%s148 + $0x1210] sm:$0xff]
                %299 = vst [vmem:[%s149 + $0x250] sm:$0xff] %v298
                %v300 = vld [vmem:[%s148 + $0x1218] sm:$0xff]
                %301 = vst [vmem:[%s149 + $0x258] sm:$0xff] %v300
                %v302 = vld [vmem:[%s148 + $0x1220] sm:$0xff]
                %303 = vst [vmem:[%s149 + $0x260] sm:$0xff] %v302
                %v304 = vld [vmem:[%s148 + $0x1228] sm:$0xff]
                %305 = vst [vmem:[%s149 + $0x268] sm:$0xff] %v304
                %v306 = vld [vmem:[%s148 + $0x1230] sm:$0xff]
                %307 = vst [vmem:[%s149 + $0x270] sm:$0xff] %v306
                %v308 = vld [vmem:[%s148 + $0x1238] sm:$0xff]
                %309 = vst [vmem:[%s149 + $0x278] sm:$0xff] %v308
                %v310 = vld [vmem:[%s148 + $0x1400] sm:$0xff]
                %311 = vst [vmem:[%s149 + $0x280] sm:$0xff] %v310
                %v312 = vld [vmem:[%s148 + $0x1408] sm:$0xff]
                %313 = vst [vmem:[%s149 + $0x288] sm:$0xff] %v312
                %v314 = vld [vmem:[%s148 + $0x1410] sm:$0xff]
                %315 = vst [vmem:[%s149 + $0x290] sm:$0xff] %v314
                %v316 = vld [vmem:[%s148 + $0x1418] sm:$0xff]
                %317 = vst [vmem:[%s149 + $0x298] sm:$0xff] %v316
                %v318 = vld [vmem:[%s148 + $0x1420] sm:$0xff]
                %319 = vst [vmem:[%s149 + $0x2a0] sm:$0xff] %v318
                %v320 = vld [vmem:[%s148 + $0x1428] sm:$0xff]
                %321 = vst [vmem:[%s149 + $0x2a8] sm:$0xff] %v320
                %v322 = vld [vmem:[%s148 + $0x1430] sm:$0xff]
                %323 = vst [vmem:[%s149 + $0x2b0] sm:$0xff] %v322
                %v324 = vld [vmem:[%s148 + $0x1438] sm:$0xff]
                %325 = vst [vmem:[%s149 + $0x2b8] sm:$0xff] %v324
                %v326 = vld [vmem:[%s148 + $0x1600] sm:$0xff]
                %327 = vst [vmem:[%s149 + $0x2c0] sm:$0xff] %v326
                %v328 = vld [vmem:[%s148 + $0x1608] sm:$0xff]
                %329 = vst [vmem:[%s149 + $0x2c8] sm:$0xff] %v328
                %v330 = vld [vmem:[%s148 + $0x1610] sm:$0xff]
                %331 = vst [vmem:[%s149 + $0x2d0] sm:$0xff] %v330
                %v332 = vld [vmem:[%s148 + $0x1618] sm:$0xff]
                %333 = vst [vmem:[%s149 + $0x2d8] sm:$0xff] %v332
                %v334 = vld [vmem:[%s148 + $0x1620] sm:$0xff]
                %335 = vst [vmem:[%s149 + $0x2e0] sm:$0xff] %v334
                %v336 = vld [vmem:[%s148 + $0x1628] sm:$0xff]
                %337 = vst [vmem:[%s149 + $0x2e8] sm:$0xff] %v336
                %v338 = vld [vmem:[%s148 + $0x1630] sm:$0xff]
                %339 = vst [vmem:[%s149 + $0x2f0] sm:$0xff] %v338
                %v340 = vld [vmem:[%s148 + $0x1638] sm:$0xff]
                %341 = vst [vmem:[%s149 + $0x2f8] sm:$0xff] %v340
                %v342 = vld [vmem:[%s148 + $0x1800] sm:$0xff]
                %343 = vst [vmem:[%s149 + $0x300] sm:$0xff] %v342
                %v344 = vld [vmem:[%s148 + $0x1808] sm:$0xff]
                %345 = vst [vmem:[%s149 + $0x308] sm:$0xff] %v344
                %v346 = vld [vmem:[%s148 + $0x1810] sm:$0xff]
                %347 = vst [vmem:[%s149 + $0x310] sm:$0xff] %v346
                %v348 = vld [vmem:[%s148 + $0x1818] sm:$0xff]
                %349 = vst [vmem:[%s149 + $0x318] sm:$0xff] %v348
                %v350 = vld [vmem:[%s148 + $0x1820] sm:$0xff]
                %351 = vst [vmem:[%s149 + $0x320] sm:$0xff] %v350
                %v352 = vld [vmem:[%s148 + $0x1828] sm:$0xff]
                %353 = vst [vmem:[%s149 + $0x328] sm:$0xff] %v352
                %v354 = vld [vmem:[%s148 + $0x1830] sm:$0xff]
                %355 = vst [vmem:[%s149 + $0x330] sm:$0xff] %v354
                %v356 = vld [vmem:[%s148 + $0x1838] sm:$0xff]
                %357 = vst [vmem:[%s149 + $0x338] sm:$0xff] %v356
                %v358 = vld [vmem:[%s148 + $0x1a00] sm:$0xff]
                %359 = vst [vmem:[%s149 + $0x340] sm:$0xff] %v358
                %v360 = vld [vmem:[%s148 + $0x1a08] sm:$0xff]
                %361 = vst [vmem:[%s149 + $0x348] sm:$0xff] %v360
                %v362 = vld [vmem:[%s148 + $0x1a10] sm:$0xff]
                %363 = vst [vmem:[%s149 + $0x350] sm:$0xff] %v362
                %v364 = vld [vmem:[%s148 + $0x1a18] sm:$0xff]
                %365 = vst [vmem:[%s149 + $0x358] sm:$0xff] %v364
                %v366 = vld [vmem:[%s148 + $0x1a20] sm:$0xff]
                %367 = vst [vmem:[%s149 + $0x360] sm:$0xff] %v366
                %v368 = vld [vmem:[%s148 + $0x1a28] sm:$0xff]
                %369 = vst [vmem:[%s149 + $0x368] sm:$0xff] %v368
                %v370 = vld [vmem:[%s148 + $0x1a30] sm:$0xff]
                %371 = vst [vmem:[%s149 + $0x370] sm:$0xff] %v370
                %v372 = vld [vmem:[%s148 + $0x1a38] sm:$0xff]
                %373 = vst [vmem:[%s149 + $0x378] sm:$0xff] %v372
                %v374 = vld [vmem:[%s148 + $0x1c00] sm:$0xff]
                %375 = vst [vmem:[%s149 + $0x380] sm:$0xff] %v374
                %v376 = vld [vmem:[%s148 + $0x1c08] sm:$0xff]
                %377 = vst [vmem:[%s149 + $0x388] sm:$0xff] %v376
                %v378 = vld [vmem:[%s148 + $0x1c10] sm:$0xff]
                %379 = vst [vmem:[%s149 + $0x390] sm:$0xff] %v378
                %v380 = vld [vmem:[%s148 + $0x1c18] sm:$0xff]
                %381 = vst [vmem:[%s149 + $0x398] sm:$0xff] %v380
                %v382 = vld [vmem:[%s148 + $0x1c20] sm:$0xff]
                %383 = vst [vmem:[%s149 + $0x3a0] sm:$0xff] %v382
                %v384 = vld [vmem:[%s148 + $0x1c28] sm:$0xff]
                %385 = vst [vmem:[%s149 + $0x3a8] sm:$0xff] %v384
                %v386 = vld [vmem:[%s148 + $0x1c30] sm:$0xff]
                %387 = vst [vmem:[%s149 + $0x3b0] sm:$0xff] %v386
                %v388 = vld [vmem:[%s148 + $0x1c38] sm:$0xff]
                %389 = vst [vmem:[%s149 + $0x3b8] sm:$0xff] %v388
                %v390 = vld [vmem:[%s148 + $0x1e00] sm:$0xff]
                %391 = vst [vmem:[%s149 + $0x3c0] sm:$0xff] %v390
                %v392 = vld [vmem:[%s148 + $0x1e08] sm:$0xff]
                %393 = vst [vmem:[%s149 + $0x3c8] sm:$0xff] %v392
                %v394 = vld [vmem:[%s148 + $0x1e10] sm:$0xff]
                %395 = vst [vmem:[%s149 + $0x3d0] sm:$0xff] %v394
                %v396 = vld [vmem:[%s148 + $0x1e18] sm:$0xff]
                %397 = vst [vmem:[%s149 + $0x3d8] sm:$0xff] %v396
                %v398 = vld [vmem:[%s148 + $0x1e20] sm:$0xff]
                %399 = vst [vmem:[%s149 + $0x3e0] sm:$0xff] %v398
                %v400 = vld [vmem:[%s148 + $0x1e28] sm:$0xff]
                %401 = vst [vmem:[%s149 + $0x3e8] sm:$0xff] %v400
                %v402 = vld [vmem:[%s148 + $0x1e30] sm:$0xff]
                %403 = vst [vmem:[%s149 + $0x3f0] sm:$0xff] %v402
                %v404 = vld [vmem:[%s148 + $0x1e38] sm:$0xff]
                %405 = vst [vmem:[%s149 + $0x3f8] sm:$0xff] %v404
                %v406 = vld [vmem:[%s148 + $0x2000] sm:$0xff]
                %407 = vst [vmem:[%s149 + $0x400] sm:$0xff] %v406
                %v408 = vld [vmem:[%s148 + $0x2008] sm:$0xff]
                %409 = vst [vmem:[%s149 + $0x408] sm:$0xff] %v408
                %v410 = vld [vmem:[%s148 + $0x2010] sm:$0xff]
                %411 = vst [vmem:[%s149 + $0x410] sm:$0xff] %v410
                %v412 = vld [vmem:[%s148 + $0x2018] sm:$0xff]
                %413 = vst [vmem:[%s149 + $0x418] sm:$0xff] %v412
                %v414 = vld [vmem:[%s148 + $0x2020] sm:$0xff]
                %415 = vst [vmem:[%s149 + $0x420] sm:$0xff] %v414
                %v416 = vld [vmem:[%s148 + $0x2028] sm:$0xff]
                %417 = vst [vmem:[%s149 + $0x428] sm:$0xff] %v416
                %v418 = vld [vmem:[%s148 + $0x2030] sm:$0xff]
                %419 = vst [vmem:[%s149 + $0x430] sm:$0xff] %v418
                %v420 = vld [vmem:[%s148 + $0x2038] sm:$0xff]
                %421 = vst [vmem:[%s149 + $0x438] sm:$0xff] %v420
                %v422 = vld [vmem:[%s148 + $0x2200] sm:$0xff]
                %423 = vst [vmem:[%s149 + $0x440] sm:$0xff] %v422
                %v424 = vld [vmem:[%s148 + $0x2208] sm:$0xff]
                %425 = vst [vmem:[%s149 + $0x448] sm:$0xff] %v424
                %v426 = vld [vmem:[%s148 + $0x2210] sm:$0xff]
                %427 = vst [vmem:[%s149 + $0x450] sm:$0xff] %v426
                %v428 = vld [vmem:[%s148 + $0x2218] sm:$0xff]
                %429 = vst [vmem:[%s149 + $0x458] sm:$0xff] %v428
                %v430 = vld [vmem:[%s148 + $0x2220] sm:$0xff]
                %431 = vst [vmem:[%s149 + $0x460] sm:$0xff] %v430
                %v432 = vld [vmem:[%s148 + $0x2228] sm:$0xff]
                %433 = vst [vmem:[%s149 + $0x468] sm:$0xff] %v432
                %v434 = vld [vmem:[%s148 + $0x2230] sm:$0xff]
                %435 = vst [vmem:[%s149 + $0x470] sm:$0xff] %v434
                %v436 = vld [vmem:[%s148 + $0x2238] sm:$0xff]
                %437 = vst [vmem:[%s149 + $0x478] sm:$0xff] %v436
                %v438 = vld [vmem:[%s148 + $0x2400] sm:$0xff]
                %439 = vst [vmem:[%s149 + $0x480] sm:$0xff] %v438
                %v440 = vld [vmem:[%s148 + $0x2408] sm:$0xff]
                %441 = vst [vmem:[%s149 + $0x488] sm:$0xff] %v440
                %v442 = vld [vmem:[%s148 + $0x2410] sm:$0xff]
                %443 = vst [vmem:[%s149 + $0x490] sm:$0xff] %v442
                %v444 = vld [vmem:[%s148 + $0x2418] sm:$0xff]
                %445 = vst [vmem:[%s149 + $0x498] sm:$0xff] %v444
                %v446 = vld [vmem:[%s148 + $0x2420] sm:$0xff]
                %447 = vst [vmem:[%s149 + $0x4a0] sm:$0xff] %v446
                %v448 = vld [vmem:[%s148 + $0x2428] sm:$0xff]
                %449 = vst [vmem:[%s149 + $0x4a8] sm:$0xff] %v448
                %v450 = vld [vmem:[%s148 + $0x2430] sm:$0xff]
                %451 = vst [vmem:[%s149 + $0x4b0] sm:$0xff] %v450
                %v452 = vld [vmem:[%s148 + $0x2438] sm:$0xff]
                %453 = vst [vmem:[%s149 + $0x4b8] sm:$0xff] %v452
                %v454 = vld [vmem:[%s148 + $0x2600] sm:$0xff]
                %455 = vst [vmem:[%s149 + $0x4c0] sm:$0xff] %v454
                %v456 = vld [vmem:[%s148 + $0x2608] sm:$0xff]
                %457 = vst [vmem:[%s149 + $0x4c8] sm:$0xff] %v456
                %v458 = vld [vmem:[%s148 + $0x2610] sm:$0xff]
                %459 = vst [vmem:[%s149 + $0x4d0] sm:$0xff] %v458
                %v460 = vld [vmem:[%s148 + $0x2618] sm:$0xff]
                %461 = vst [vmem:[%s149 + $0x4d8] sm:$0xff] %v460
                %v462 = vld [vmem:[%s148 + $0x2620] sm:$0xff]
                %463 = vst [vmem:[%s149 + $0x4e0] sm:$0xff] %v462
                %v464 = vld [vmem:[%s148 + $0x2628] sm:$0xff]
                %465 = vst [vmem:[%s149 + $0x4e8] sm:$0xff] %v464
                %v466 = vld [vmem:[%s148 + $0x2630] sm:$0xff]
                %467 = vst [vmem:[%s149 + $0x4f0] sm:$0xff] %v466
                %v468 = vld [vmem:[%s148 + $0x2638] sm:$0xff]
                %469 = vst [vmem:[%s149 + $0x4f8] sm:$0xff] %v468
                %v470 = vld [vmem:[%s148 + $0x2800] sm:$0xff]
                %471 = vst [vmem:[%s149 + $0x500] sm:$0xff] %v470
                %v472 = vld [vmem:[%s148 + $0x2808] sm:$0xff]
                %473 = vst [vmem:[%s149 + $0x508] sm:$0xff] %v472
                %v474 = vld [vmem:[%s148 + $0x2810] sm:$0xff]
                %475 = vst [vmem:[%s149 + $0x510] sm:$0xff] %v474
                %v476 = vld [vmem:[%s148 + $0x2818] sm:$0xff]
                %477 = vst [vmem:[%s149 + $0x518] sm:$0xff] %v476
                %v478 = vld [vmem:[%s148 + $0x2820] sm:$0xff]
                %479 = vst [vmem:[%s149 + $0x520] sm:$0xff] %v478
                %v480 = vld [vmem:[%s148 + $0x2828] sm:$0xff]
                %481 = vst [vmem:[%s149 + $0x528] sm:$0xff] %v480
                %v482 = vld [vmem:[%s148 + $0x2830] sm:$0xff]
                %483 = vst [vmem:[%s149 + $0x530] sm:$0xff] %v482
                %v484 = vld [vmem:[%s148 + $0x2838] sm:$0xff]
                %485 = vst [vmem:[%s149 + $0x538] sm:$0xff] %v484
                %v486 = vld [vmem:[%s148 + $0x2a00] sm:$0xff]
                %487 = vst [vmem:[%s149 + $0x540] sm:$0xff] %v486
                %v488 = vld [vmem:[%s148 + $0x2a08] sm:$0xff]
                %489 = vst [vmem:[%s149 + $0x548] sm:$0xff] %v488
                %v490 = vld [vmem:[%s148 + $0x2a10] sm:$0xff]
                %491 = vst [vmem:[%s149 + $0x550] sm:$0xff] %v490
                %v492 = vld [vmem:[%s148 + $0x2a18] sm:$0xff]
                %493 = vst [vmem:[%s149 + $0x558] sm:$0xff] %v492
                %v494 = vld [vmem:[%s148 + $0x2a20] sm:$0xff]
                %495 = vst [vmem:[%s149 + $0x560] sm:$0xff] %v494
                %v496 = vld [vmem:[%s148 + $0x2a28] sm:$0xff]
                %497 = vst [vmem:[%s149 + $0x568] sm:$0xff] %v496
                %v498 = vld [vmem:[%s148 + $0x2a30] sm:$0xff]
                %499 = vst [vmem:[%s149 + $0x570] sm:$0xff] %v498
                %v500 = vld [vmem:[%s148 + $0x2a38] sm:$0xff]
                %501 = vst [vmem:[%s149 + $0x578] sm:$0xff] %v500
                %v502 = vld [vmem:[%s148 + $0x2c00] sm:$0xff]
                %503 = vst [vmem:[%s149 + $0x580] sm:$0xff] %v502
                %v504 = vld [vmem:[%s148 + $0x2c08] sm:$0xff]
                %505 = vst [vmem:[%s149 + $0x588] sm:$0xff] %v504
                %v506 = vld [vmem:[%s148 + $0x2c10] sm:$0xff]
                %507 = vst [vmem:[%s149 + $0x590] sm:$0xff] %v506
                %v508 = vld [vmem:[%s148 + $0x2c18] sm:$0xff]
                %509 = vst [vmem:[%s149 + $0x598] sm:$0xff] %v508
                %v510 = vld [vmem:[%s148 + $0x2c20] sm:$0xff]
                %511 = vst [vmem:[%s149 + $0x5a0] sm:$0xff] %v510
                %v512 = vld [vmem:[%s148 + $0x2c28] sm:$0xff]
                %513 = vst [vmem:[%s149 + $0x5a8] sm:$0xff] %v512
                %v514 = vld [vmem:[%s148 + $0x2c30] sm:$0xff]
                %515 = vst [vmem:[%s149 + $0x5b0] sm:$0xff] %v514
                %v516 = vld [vmem:[%s148 + $0x2c38] sm:$0xff]
                %517 = vst [vmem:[%s149 + $0x5b8] sm:$0xff] %v516
                %v518 = vld [vmem:[%s148 + $0x2e00] sm:$0xff]
                %519 = vst [vmem:[%s149 + $0x5c0] sm:$0xff] %v518
                %v520 = vld [vmem:[%s148 + $0x2e08] sm:$0xff]
                %521 = vst [vmem:[%s149 + $0x5c8] sm:$0xff] %v520
                %v522 = vld [vmem:[%s148 + $0x2e10] sm:$0xff]
                %523 = vst [vmem:[%s149 + $0x5d0] sm:$0xff] %v522
                %v524 = vld [vmem:[%s148 + $0x2e18] sm:$0xff]
                %525 = vst [vmem:[%s149 + $0x5d8] sm:$0xff] %v524
                %v526 = vld [vmem:[%s148 + $0x2e20] sm:$0xff]
                %527 = vst [vmem:[%s149 + $0x5e0] sm:$0xff] %v526
                %v528 = vld [vmem:[%s148 + $0x2e28] sm:$0xff]
                %529 = vst [vmem:[%s149 + $0x5e8] sm:$0xff] %v528
                %v530 = vld [vmem:[%s148 + $0x2e30] sm:$0xff]
                %531 = vst [vmem:[%s149 + $0x5f0] sm:$0xff] %v530
                %v532 = vld [vmem:[%s148 + $0x2e38] sm:$0xff]
                %533 = vst [vmem:[%s149 + $0x5f8] sm:$0xff] %v532
                %v534 = vld [vmem:[%s148 + $0x3000] sm:$0xff]
                %535 = vst [vmem:[%s149 + $0x600] sm:$0xff] %v534
                %v536 = vld [vmem:[%s148 + $0x3008] sm:$0xff]
                %537 = vst [vmem:[%s149 + $0x608] sm:$0xff] %v536
                %v538 = vld [vmem:[%s148 + $0x3010] sm:$0xff]
                %539 = vst [vmem:[%s149 + $0x610] sm:$0xff] %v538
                %v540 = vld [vmem:[%s148 + $0x3018] sm:$0xff]
                %541 = vst [vmem:[%s149 + $0x618] sm:$0xff] %v540
                %v542 = vld [vmem:[%s148 + $0x3020] sm:$0xff]
                %543 = vst [vmem:[%s149 + $0x620] sm:$0xff] %v542
                %v544 = vld [vmem:[%s148 + $0x3028] sm:$0xff]
                %545 = vst [vmem:[%s149 + $0x628] sm:$0xff] %v544
                %v546 = vld [vmem:[%s148 + $0x3030] sm:$0xff]
                %547 = vst [vmem:[%s149 + $0x630] sm:$0xff] %v546
                %v548 = vld [vmem:[%s148 + $0x3038] sm:$0xff]
                %549 = vst [vmem:[%s149 + $0x638] sm:$0xff] %v548
                %v550 = vld [vmem:[%s148 + $0x3200] sm:$0xff]
                %551 = vst [vmem:[%s149 + $0x640] sm:$0xff] %v550
                %v552 = vld [vmem:[%s148 + $0x3208] sm:$0xff]
                %553 = vst [vmem:[%s149 + $0x648] sm:$0xff] %v552
                %v554 = vld [vmem:[%s148 + $0x3210] sm:$0xff]
                %555 = vst [vmem:[%s149 + $0x650] sm:$0xff] %v554
                %v556 = vld [vmem:[%s148 + $0x3218] sm:$0xff]
                %557 = vst [vmem:[%s149 + $0x658] sm:$0xff] %v556
                %v558 = vld [vmem:[%s148 + $0x3220] sm:$0xff]
                %559 = vst [vmem:[%s149 + $0x660] sm:$0xff] %v558
                %v560 = vld [vmem:[%s148 + $0x3228] sm:$0xff]
                %561 = vst [vmem:[%s149 + $0x668] sm:$0xff] %v560
                %v562 = vld [vmem:[%s148 + $0x3230] sm:$0xff]
                %563 = vst [vmem:[%s149 + $0x670] sm:$0xff] %v562
                %v564 = vld [vmem:[%s148 + $0x3238] sm:$0xff]
                %565 = vst [vmem:[%s149 + $0x678] sm:$0xff] %v564
                %v566 = vld [vmem:[%s148 + $0x3400] sm:$0xff]
                %567 = vst [vmem:[%s149 + $0x680] sm:$0xff] %v566
                %v568 = vld [vmem:[%s148 + $0x3408] sm:$0xff]
                %569 = vst [vmem:[%s149 + $0x688] sm:$0xff] %v568
                %v570 = vld [vmem:[%s148 + $0x3410] sm:$0xff]
                %571 = vst [vmem:[%s149 + $0x690] sm:$0xff] %v570
                %v572 = vld [vmem:[%s148 + $0x3418] sm:$0xff]
                %573 = vst [vmem:[%s149 + $0x698] sm:$0xff] %v572
                %v574 = vld [vmem:[%s148 + $0x3420] sm:$0xff]
                %575 = vst [vmem:[%s149 + $0x6a0] sm:$0xff] %v574
                %v576 = vld [vmem:[%s148 + $0x3428] sm:$0xff]
                %577 = vst [vmem:[%s149 + $0x6a8] sm:$0xff] %v576
                %v578 = vld [vmem:[%s148 + $0x3430] sm:$0xff]
                %579 = vst [vmem:[%s149 + $0x6b0] sm:$0xff] %v578
                %v580 = vld [vmem:[%s148 + $0x3438] sm:$0xff]
                %581 = vst [vmem:[%s149 + $0x6b8] sm:$0xff] %v580
              $region41: #{hourglass_forward.11} parent=35 // loop_footer
                %s147 = sadd.s32 1, %s143
              $region42: #{hourglass_forward.11} parent=35 // loop_footer_branch
                %142 = sbr.rel target = $region38
              $region43: #{hourglass_forward.11} parent=35 // loop_exit
                _
            $region36: #{hourglass_forward.11} parent=31 // pred_fallthru
              _
            // Predicated region
            $region44: #{hourglass_forward.11} parent=31 // pred_check
              _
            $region45: #{hourglass_forward.11} parent=31 // pred_check_branch
              %583 = sbr.rel target = $region47
            $region46: #{hourglass_forward.11} parent=31 // pred_region
              _
            $region47: #{hourglass_forward.11} parent=31 // pred_fallthru
              _
          $region32: #{hourglass_forward.11} parent=27 // pred_fallthru
            _
          %584 = vnop
        $region28: #{hourglass_forward.11} parent=23 // pred_fallthru
          _
      $region24: #{hourglass_forward.11} parent=5 // pred_fallthru
        _
      %p585 = scmp.le.s32.totalorder 1, %s9
      %p586 = scmp.lt.s32.totalorder %s9, 9
      %p587 = pnand %p585, %p586
      %p588 = pneg %p587
      // Predicated region
      $region48: #{hourglass_forward.11} parent=5 // pred_check
        _
      $region49: #{hourglass_forward.11} parent=5 // pred_check_branch
        %590 = sbr.rel (%p587) target = $region51
      $region50: #{hourglass_forward.11} parent=5 // pred_region
        %s591 = ssub.s32 %s9, 1
        %s592 = sand.u32 %s43, 1
        %s593 = sand.u32 %s43, 1
        %s594 = smul.addr %s593, 1728
        %s595 = scalar_lea.vmem [#allocation2], %s594
        // Predicated region
        $region52: #{hourglass_forward.11} parent=50 // pred_check
          %p596 = pneg %p56
        $region53: #{hourglass_forward.11} parent=50 // pred_check_branch
          %598 = sbr.rel (%p596) target = $region55
        $region54: #{hourglass_forward.11} parent=50 // pred_region
          _
        $region55: #{hourglass_forward.11} parent=50 // pred_fallthru
          _
        %p599 = pneg %p30
        %p600 = pneg %p27
        %s601 = sand.u32 %s43, 1
        %s602 = sand.u32 %s43, 1
        %s603 = smul.addr %s602, 1728
        %s604 = scalar_lea.vmem [#allocation2], %s603
        %p605 = pneg %p56
        %p606 = pneg %p53
        %p607 = pneg %p77
        %p608 = pneg %p74
        %p609 = pneg %p103
        %p610 = pneg %p100
        %s611 = smul.u32 8, %s14
        %p612 = scmp.lt.s32.totalorder %s611, 63
        %s613 = scalar_select %p612, %s611, 63
        %s614 = smul.addr %s613, 4
        %s615 = scalar_lea.vmem %s3, %s614
        %s616 = smul.u32 8, %s14
        %s617 = smul.u32 8, %s14
        %p618 = scmp.lt.s32.totalorder %s617, 63
        %s619 = scalar_select %p618, %s617, 63
        %s620 = smul.addr %s619, 4
        %s621 = scalar_lea.vmem %s3, %s620
        %s622 = smul.u32 8, %s14
        %v623 = vld [vmem:[%s0] sm:$0xff]
        %v624 = vld [vmem:[%s595] sm:$0xff]
        %v625 = vld [vmem:[%s595 + $0x8] sm:$0xff]
        %v626 = vld [vmem:[%s595 + $0x10] sm:$0xff]
        %v627 = vld [vmem:[%s595 + $0x18] sm:$0xff]
        %v628 = vld [vmem:[%s595 + $0x20] sm:$0xff]
        %v629 = vld [vmem:[%s595 + $0x28] sm:$0xff]
        %v630 = vld [vmem:[%s595 + $0x30] sm:$0xff]
        %v631 = vld [vmem:[%s595 + $0x38] sm:$0xff]
        %v632 = vld [vmem:[%s595 + $0x40] sm:$0xff]
        %v633 = vld [vmem:[%s595 + $0x48] sm:$0xff]
        %v634 = vld [vmem:[%s595 + $0x50] sm:$0xff]
        %v635 = vld [vmem:[%s595 + $0x58] sm:$0xff]
        %v636 = vld [vmem:[%s595 + $0x60] sm:$0xff]
        %v637 = vld [vmem:[%s595 + $0x68] sm:$0xff]
        %v638 = vld [vmem:[%s595 + $0x70] sm:$0xff]
        %v639 = vld [vmem:[%s595 + $0x78] sm:$0xff]
        %v640 = vld [vmem:[%s595 + $0x80] sm:$0xff]
        %v641 = vld [vmem:[%s595 + $0x88] sm:$0xff]
        %v642 = vld [vmem:[%s595 + $0x90] sm:$0xff]
        %v643 = vld [vmem:[%s595 + $0x98] sm:$0xff]
        %v644 = vld [vmem:[%s595 + $0xa0] sm:$0xff]
        %v645 = vld [vmem:[%s595 + $0xa8] sm:$0xff]
        %v646 = vld [vmem:[%s595 + $0xb0] sm:$0xff]
        %v647 = vld [vmem:[%s595 + $0xb8] sm:$0xff]
        %v648 = vld [vmem:[%s595 + $0xc0] sm:$0xff]
        %v649 = vld [vmem:[%s595 + $0xc8] sm:$0xff]
        %v650 = vld [vmem:[%s595 + $0xd0] sm:$0xff]
        %v651 = vld [vmem:[%s595 + $0xd8] sm:$0xff]
        %v652 = vld [vmem:[%s595 + $0xe0] sm:$0xff]
        %v653 = vld [vmem:[%s595 + $0xe8] sm:$0xff]
        %v654 = vld [vmem:[%s595 + $0xf0] sm:$0xff]
        %v655 = vld [vmem:[%s595 + $0xf8] sm:$0xff]
        %v656 = vld [vmem:[%s595 + $0x100] sm:$0xff]
        %v657 = vld [vmem:[%s595 + $0x108] sm:$0xff]
        %v658 = vld [vmem:[%s595 + $0x110] sm:$0xff]
        %v659 = vld [vmem:[%s595 + $0x118] sm:$0xff]
        %v660 = vld [vmem:[%s595 + $0x120] sm:$0xff]
        %v661 = vld [vmem:[%s595 + $0x128] sm:$0xff]
        %v662 = vld [vmem:[%s595 + $0x130] sm:$0xff]
        %v663 = vld [vmem:[%s595 + $0x138] sm:$0xff]
        %v664 = vld [vmem:[%s595 + $0x140] sm:$0xff]
        %v665 = vld [vmem:[%s595 + $0x148] sm:$0xff]
        %v666 = vld [vmem:[%s595 + $0x150] sm:$0xff]
        %v667 = vld [vmem:[%s595 + $0x158] sm:$0xff]
        %v668 = vld [vmem:[%s595 + $0x160] sm:$0xff]
        %v669 = vld [vmem:[%s595 + $0x168] sm:$0xff]
        %v670 = vld [vmem:[%s595 + $0x170] sm:$0xff]
        %v671 = vld [vmem:[%s595 + $0x178] sm:$0xff]
        %v672 = vld [vmem:[%s595 + $0x180] sm:$0xff]
        %v673 = vld [vmem:[%s595 + $0x188] sm:$0xff]
        %v674 = vld [vmem:[%s595 + $0x190] sm:$0xff]
        %v675 = vld [vmem:[%s595 + $0x198] sm:$0xff]
        %v676 = vld [vmem:[%s595 + $0x1a0] sm:$0xff]
        %v677 = vld [vmem:[%s595 + $0x1a8] sm:$0xff]
        %v678 = vld [vmem:[%s595 + $0x1b0] sm:$0xff]
        %v679 = vld [vmem:[%s595 + $0x1b8] sm:$0xff]
        %v680 = vld [vmem:[%s595 + $0x1c0] sm:$0xff]
        %v681 = vld [vmem:[%s595 + $0x1c8] sm:$0xff]
        %v682 = vld [vmem:[%s595 + $0x1d0] sm:$0xff]
        %v683 = vld [vmem:[%s595 + $0x1d8] sm:$0xff]
        %v684 = vld [vmem:[%s595 + $0x1e0] sm:$0xff]
        %v685 = vld [vmem:[%s595 + $0x1e8] sm:$0xff]
        %v686 = vld [vmem:[%s595 + $0x1f0] sm:$0xff]
        %v687 = vld [vmem:[%s595 + $0x1f8] sm:$0xff]
        %v688 = vld [vmem:[%s595 + $0x200] sm:$0xff]
        %v689 = vld [vmem:[%s595 + $0x208] sm:$0xff]
        %v690 = vld [vmem:[%s595 + $0x210] sm:$0xff]
        %v691 = vld [vmem:[%s595 + $0x218] sm:$0xff]
        %v692 = vld [vmem:[%s595 + $0x220] sm:$0xff]
        %v693 = vld [vmem:[%s595 + $0x228] sm:$0xff]
        %v694 = vld [vmem:[%s595 + $0x230] sm:$0xff]
        %v695 = vld [vmem:[%s595 + $0x238] sm:$0xff]
        %v696 = vld [vmem:[%s595 + $0x240] sm:$0xff]
        %v697 = vld [vmem:[%s595 + $0x248] sm:$0xff]
        %v698 = vld [vmem:[%s595 + $0x250] sm:$0xff]
        %v699 = vld [vmem:[%s595 + $0x258] sm:$0xff]
        %v700 = vld [vmem:[%s595 + $0x260] sm:$0xff]
        %v701 = vld [vmem:[%s595 + $0x268] sm:$0xff]
        %v702 = vld [vmem:[%s595 + $0x270] sm:$0xff]
        %v703 = vld [vmem:[%s595 + $0x278] sm:$0xff]
        %v704 = vld [vmem:[%s595 + $0x280] sm:$0xff]
        %v705 = vld [vmem:[%s595 + $0x288] sm:$0xff]
        %v706 = vld [vmem:[%s595 + $0x290] sm:$0xff]
        %v707 = vld [vmem:[%s595 + $0x298] sm:$0xff]
        %v708 = vld [vmem:[%s595 + $0x2a0] sm:$0xff]
        %v709 = vld [vmem:[%s595 + $0x2a8] sm:$0xff]
        %v710 = vld [vmem:[%s595 + $0x2b0] sm:$0xff]
        %v711 = vld [vmem:[%s595 + $0x2b8] sm:$0xff]
        %v712 = vld [vmem:[%s595 + $0x2c0] sm:$0xff]
        %v713 = vld [vmem:[%s595 + $0x2c8] sm:$0xff]
        %v714 = vld [vmem:[%s595 + $0x2d0] sm:$0xff]
        %v715 = vld [vmem:[%s595 + $0x2d8] sm:$0xff]
        %v716 = vld [vmem:[%s595 + $0x2e0] sm:$0xff]
        %v717 = vld [vmem:[%s595 + $0x2e8] sm:$0xff]
        %v718 = vld [vmem:[%s595 + $0x2f0] sm:$0xff]
        %v719 = vld [vmem:[%s595 + $0x2f8] sm:$0xff]
        %v720 = vld [vmem:[%s595 + $0x300] sm:$0xff]
        %v721 = vld [vmem:[%s595 + $0x308] sm:$0xff]
        %v722 = vld [vmem:[%s595 + $0x310] sm:$0xff]
        %v723 = vld [vmem:[%s595 + $0x318] sm:$0xff]
        %v724 = vld [vmem:[%s595 + $0x320] sm:$0xff]
        %v725 = vld [vmem:[%s595 + $0x328] sm:$0xff]
        %v726 = vld [vmem:[%s595 + $0x330] sm:$0xff]
        %v727 = vld [vmem:[%s595 + $0x338] sm:$0xff]
        %v728 = vld [vmem:[%s595 + $0x340] sm:$0xff]
        %v729 = vld [vmem:[%s595 + $0x348] sm:$0xff]
        %v730 = vld [vmem:[%s595 + $0x350] sm:$0xff]
        %v731 = vld [vmem:[%s595 + $0x358] sm:$0xff]
        %v732 = vld [vmem:[%s595 + $0x360] sm:$0xff]
        %v733 = vld [vmem:[%s595 + $0x368] sm:$0xff]
        %v734 = vld [vmem:[%s595 + $0x370] sm:$0xff]
        %v735 = vld [vmem:[%s595 + $0x378] sm:$0xff]
        %v736 = vld [vmem:[%s595 + $0x380] sm:$0xff]
        %v737 = vld [vmem:[%s595 + $0x388] sm:$0xff]
        %v738 = vld [vmem:[%s595 + $0x390] sm:$0xff]
        %v739 = vld [vmem:[%s595 + $0x398] sm:$0xff]
        %v740 = vld [vmem:[%s595 + $0x3a0] sm:$0xff]
        %v741 = vld [vmem:[%s595 + $0x3a8] sm:$0xff]
        %v742 = vld [vmem:[%s595 + $0x3b0] sm:$0xff]
        %v743 = vld [vmem:[%s595 + $0x3b8] sm:$0xff]
        %v744 = vld [vmem:[%s595 + $0x3c0] sm:$0xff]
        %v745 = vld [vmem:[%s595 + $0x3c8] sm:$0xff]
        %v746 = vld [vmem:[%s595 + $0x3d0] sm:$0xff]
        %v747 = vld [vmem:[%s595 + $0x3d8] sm:$0xff]
        %v748 = vld [vmem:[%s595 + $0x3e0] sm:$0xff]
        %v749 = vld [vmem:[%s595 + $0x3e8] sm:$0xff]
        %v750 = vld [vmem:[%s595 + $0x3f0] sm:$0xff]
        %v751 = vld [vmem:[%s595 + $0x3f8] sm:$0xff]
        %v752 = vld [vmem:[%s595 + $0x400] sm:$0xff]
        %v753 = vld [vmem:[%s595 + $0x408] sm:$0xff]
        %v754 = vld [vmem:[%s595 + $0x410] sm:$0xff]
        %v755 = vld [vmem:[%s595 + $0x418] sm:$0xff]
        %v756 = vld [vmem:[%s595 + $0x420] sm:$0xff]
        %v757 = vld [vmem:[%s595 + $0x428] sm:$0xff]
        %v758 = vld [vmem:[%s595 + $0x430] sm:$0xff]
        %v759 = vld [vmem:[%s595 + $0x438] sm:$0xff]
        %v760 = vld [vmem:[%s595 + $0x440] sm:$0xff]
        %v761 = vld [vmem:[%s595 + $0x448] sm:$0xff]
        %v762 = vld [vmem:[%s595 + $0x450] sm:$0xff]
        %v763 = vld [vmem:[%s595 + $0x458] sm:$0xff]
        %v764 = vld [vmem:[%s595 + $0x460] sm:$0xff]
        %v765 = vld [vmem:[%s595 + $0x468] sm:$0xff]
        %v766 = vld [vmem:[%s595 + $0x470] sm:$0xff]
        %v767 = vld [vmem:[%s595 + $0x478] sm:$0xff]
        %v768 = vld [vmem:[%s595 + $0x480] sm:$0xff]
        %v769 = vld [vmem:[%s595 + $0x488] sm:$0xff]
        %v770 = vld [vmem:[%s595 + $0x490] sm:$0xff]
        %v771 = vld [vmem:[%s595 + $0x498] sm:$0xff]
        %v772 = vld [vmem:[%s595 + $0x4a0] sm:$0xff]
        %v773 = vld [vmem:[%s595 + $0x4a8] sm:$0xff]
        %v774 = vld [vmem:[%s595 + $0x4b0] sm:$0xff]
        %v775 = vld [vmem:[%s595 + $0x4b8] sm:$0xff]
        %v776 = vld [vmem:[%s595 + $0x4c0] sm:$0xff]
        %v777 = vld [vmem:[%s595 + $0x4c8] sm:$0xff]
        %v778 = vld [vmem:[%s595 + $0x4d0] sm:$0xff]
        %v779 = vld [vmem:[%s595 + $0x4d8] sm:$0xff]
        %v780 = vld [vmem:[%s595 + $0x4e0] sm:$0xff]
        %v781 = vld [vmem:[%s595 + $0x4e8] sm:$0xff]
        %v782 = vld [vmem:[%s595 + $0x4f0] sm:$0xff]
        %v783 = vld [vmem:[%s595 + $0x4f8] sm:$0xff]
        %v784 = vld [vmem:[%s595 + $0x500] sm:$0xff]
        %v785 = vld [vmem:[%s595 + $0x508] sm:$0xff]
        %v786 = vld [vmem:[%s595 + $0x510] sm:$0xff]
        %v787 = vld [vmem:[%s595 + $0x518] sm:$0xff]
        %v788 = vld [vmem:[%s595 + $0x520] sm:$0xff]
        %v789 = vld [vmem:[%s595 + $0x528] sm:$0xff]
        %v790 = vld [vmem:[%s595 + $0x530] sm:$0xff]
        %v791 = vld [vmem:[%s595 + $0x538] sm:$0xff]
        %v792 = vld [vmem:[%s595 + $0x540] sm:$0xff]
        %v793 = vld [vmem:[%s595 + $0x548] sm:$0xff]
        %v794 = vld [vmem:[%s595 + $0x550] sm:$0xff]
        %v795 = vld [vmem:[%s595 + $0x558] sm:$0xff]
        %v796 = vld [vmem:[%s595 + $0x560] sm:$0xff]
        %v797 = vld [vmem:[%s595 + $0x568] sm:$0xff]
        %v798 = vld [vmem:[%s595 + $0x570] sm:$0xff]
        %v799 = vld [vmem:[%s595 + $0x578] sm:$0xff]
        %v800 = vld [vmem:[%s595 + $0x580] sm:$0xff]
        %v801 = vld [vmem:[%s595 + $0x588] sm:$0xff]
        %v802 = vld [vmem:[%s595 + $0x590] sm:$0xff]
        %v803 = vld [vmem:[%s595 + $0x598] sm:$0xff]
        %v804 = vld [vmem:[%s595 + $0x5a0] sm:$0xff]
        %v805 = vld [vmem:[%s595 + $0x5a8] sm:$0xff]
        %v806 = vld [vmem:[%s595 + $0x5b0] sm:$0xff]
        %v807 = vld [vmem:[%s595 + $0x5b8] sm:$0xff]
        %v808 = vld [vmem:[%s595 + $0x5c0] sm:$0xff]
        %v809 = vld [vmem:[%s595 + $0x5c8] sm:$0xff]
        %v810 = vld [vmem:[%s595 + $0x5d0] sm:$0xff]
        %v811 = vld [vmem:[%s595 + $0x5d8] sm:$0xff]
        %v812 = vld [vmem:[%s595 + $0x5e0] sm:$0xff]
        %v813 = vld [vmem:[%s595 + $0x5e8] sm:$0xff]
        %v814 = vld [vmem:[%s595 + $0x5f0] sm:$0xff]
        %v815 = vld [vmem:[%s595 + $0x5f8] sm:$0xff]
        %v816 = vld [vmem:[%s595 + $0x600] sm:$0xff]
        %v817 = vld [vmem:[%s595 + $0x608] sm:$0xff]
        %v818 = vld [vmem:[%s595 + $0x610] sm:$0xff]
        %v819 = vld [vmem:[%s595 + $0x618] sm:$0xff]
        %v820 = vld [vmem:[%s595 + $0x620] sm:$0xff]
        %v821 = vld [vmem:[%s595 + $0x628] sm:$0xff]
        %v822 = vld [vmem:[%s595 + $0x630] sm:$0xff]
        %v823 = vld [vmem:[%s595 + $0x638] sm:$0xff]
        %v824 = vld [vmem:[%s595 + $0x640] sm:$0xff]
        %v825 = vld [vmem:[%s595 + $0x648] sm:$0xff]
        %v826 = vld [vmem:[%s595 + $0x650] sm:$0xff]
        %v827 = vld [vmem:[%s595 + $0x658] sm:$0xff]
        %v828 = vld [vmem:[%s595 + $0x660] sm:$0xff]
        %v829 = vld [vmem:[%s595 + $0x668] sm:$0xff]
        %v830 = vld [vmem:[%s595 + $0x670] sm:$0xff]
        %v831 = vld [vmem:[%s595 + $0x678] sm:$0xff]
        %v832 = vld [vmem:[%s595 + $0x680] sm:$0xff]
        %v833 = vld [vmem:[%s595 + $0x688] sm:$0xff]
        %v834 = vld [vmem:[%s595 + $0x690] sm:$0xff]
        %v835 = vld [vmem:[%s595 + $0x698] sm:$0xff]
        %v836 = vld [vmem:[%s595 + $0x6a0] sm:$0xff]
        %v837 = vld [vmem:[%s595 + $0x6a8] sm:$0xff]
        %v838 = vld [vmem:[%s595 + $0x6b0] sm:$0xff]
        %v839 = vld [vmem:[%s595 + $0x6b8] sm:$0xff]
        %v840 = vld [vmem:[%s2] sm:$0xf]
        %842 = vset.pattern.permute.xlu0 0
        %843 = vperm.xlu0 %842, %v840
        %v844 = vpop.permute.xlu0 %843
        %v847 = vcombine.high %v623, %v623
        %vm848 = vcmask 719872
        %v849 = vsel %vm848, %v847, 0
        %851 = vmatprep.subr.mxu0 %v625
        %852 = vmatpush1.msra.mxu0 %v624
        %853 = vmatprep.subr.mxu0 %v633
        %854 = vmatpush1.msra.mxu0 %v632
        %855 = vmatprep.subr.mxu0 %v641
        %856 = vmatpush1.msra.mxu0 %v640
        %857 = vmatprep.subr.mxu0 %v649
        %858 = vmatpush1.msra.mxu0 %v648
        %859 = vmatprep.subr.mxu0 %v657
        %860 = vmatpush1.msra.mxu0 %v656
        %861 = vmatprep.subr.mxu0 %v665
        %862 = vmatpush1.msra.mxu0 %v664
        %863 = vmatprep.subr.mxu0 %v673
        %864 = vmatpush1.msra.mxu0 %v672
        %865 = vmatprep.subr.mxu0 %v681
        %866 = vmatpush1.msra.mxu0 %v680
        %867 = vmatprep.subr.mxu0 %v689
        %868 = vmatpush1.msra.mxu0 %v688
        %869 = vmatprep.subr.mxu0 %v697
        %870 = vmatpush1.msra.mxu0 %v696
        %871 = vmatprep.subr.mxu0 %v705
        %872 = vmatpush1.msra.mxu0 %v704
        %873 = vmatprep.subr.mxu0 %v713
        %874 = vmatpush1.msra.mxu0 %v712
        %875 = vmatprep.subr.mxu0 %v721
        %876 = vmatpush1.msra.mxu0 %v720
        %877 = vmatprep.subr.mxu0 %v729
        %878 = vmatpush1.msra.mxu0 %v728
        %879 = vmatprep.subr.mxu0 %v737
        %880 = vmatpush1.msra.mxu0 %v736
        %881 = vmatprep.subr.mxu0 %v745
        %882 = vmatpush1.msra.mxu0 %v744
        %883 = vmatprep.subr.mxu0 %v753
        %884 = vmatpush1.msra.mxu0 %v752
        %885 = vmatprep.subr.mxu0 %v761
        %886 = vmatpush1.msra.mxu0 %v760
        %887 = vmatprep.subr.mxu0 %v769
        %888 = vmatpush1.msra.mxu0 %v768
        %889 = vmatprep.subr.mxu0 %v777
        %890 = vmatpush1.msra.mxu0 %v776
        %891 = vmatprep.subr.mxu0 %v785
        %892 = vmatpush1.msra.mxu0 %v784
        %893 = vmatprep.subr.mxu0 %v793
        %894 = vmatpush1.msra.mxu0 %v792
        %895 = vmatprep.subr.mxu0 %v801
        %896 = vmatpush1.msra.mxu0 %v800
        %897 = vmatprep.subr.mxu0 %v809
        %898 = vmatpush1.msra.mxu0 %v808
        %899 = vmatprep.subr.mxu0 %v817
        %900 = vmatpush1.msra.mxu0 %v816
        %901 = vmatprep.subr.mxu0 %v825
        %902 = vmatpush1.msra.mxu0 %v824
        %903 = vmatprep.subr.mxu0 %v833
        %904 = vmatpush1.msra.mxu0 %v832
        %905 = vmatprep.subr.mxu0 0.0
        %906 = vmatpush1.msra.mxu0 0.0
        %907 = vmatprep.subr.mxu0 0.0
        %908 = vmatpush1.msra.mxu0 0.0
        %909 = vmatprep.subr.mxu0 0.0
        %910 = vmatpush1.msra.mxu0 0.0
        %911 = vmatprep.subr.mxu0 0.0
        %912 = vmatpush1.msra.mxu0 0.0
        %913 = vmatprep.subr.mxu0 0.0
        %914 = vmatpush1.msra.mxu0 0.0
        %915 = vmatprep.mubr.f32.mxu0 %v849
        %916 = vmatmul.mubr.f32.gmra.mrb[0].mxu0 %v623
        %v917 = vpop.f32.mrb[0].mxu0
        %v918 = vadd.f32 %v844, %v917
        %v919 = vpop.f32.mrb[0].mxu0
        %v920 = vadd.f32 %v844, %v919
        %921 = vdwg.mxu0
        %922 = vmatprep.subr.mxu0 %v627
        %923 = vmatpush1.msra.mxu0 %v626
        %924 = vmatprep.subr.mxu0 %v635
        %925 = vmatpush1.msra.mxu0 %v634
        %926 = vmatprep.subr.mxu0 %v643
        %927 = vmatpush1.msra.mxu0 %v642
        %928 = vmatprep.subr.mxu0 %v651
        %929 = vmatpush1.msra.mxu0 %v650
        %930 = vmatprep.subr.mxu0 %v659
        %931 = vmatpush1.msra.mxu0 %v658
        %932 = vmatprep.subr.mxu0 %v667
        %933 = vmatpush1.msra.mxu0 %v666
        %934 = vmatprep.subr.mxu0 %v675
        %935 = vmatpush1.msra.mxu0 %v674
        %936 = vmatprep.subr.mxu0 %v683
        %937 = vmatpush1.msra.mxu0 %v682
        %938 = vmatprep.subr.mxu0 %v691
        %939 = vmatpush1.msra.mxu0 %v690
        %940 = vmatprep.subr.mxu0 %v699
        %941 = vmatpush1.msra.mxu0 %v698
        %942 = vmatprep.subr.mxu0 %v707
        %943 = vmatpush1.msra.mxu0 %v706
        %944 = vmatprep.subr.mxu0 %v715
        %945 = vmatpush1.msra.mxu0 %v714
        %946 = vmatprep.subr.mxu0 %v723
        %947 = vmatpush1.msra.mxu0 %v722
        %948 = vmatprep.subr.mxu0 %v731
        %949 = vmatpush1.msra.mxu0 %v730
        %950 = vmatprep.subr.mxu0 %v739
        %951 = vmatpush1.msra.mxu0 %v738
        %952 = vmatprep.subr.mxu0 %v747
        %953 = vmatpush1.msra.mxu0 %v746
        %954 = vmatprep.subr.mxu0 %v755
        %955 = vmatpush1.msra.mxu0 %v754
        %956 = vmatprep.subr.mxu0 %v763
        %957 = vmatpush1.msra.mxu0 %v762
        %958 = vmatprep.subr.mxu0 %v771
        %959 = vmatpush1.msra.mxu0 %v770
        %960 = vmatprep.subr.mxu0 %v779
        %961 = vmatpush1.msra.mxu0 %v778
        %962 = vmatprep.subr.mxu0 %v787
        %963 = vmatpush1.msra.mxu0 %v786
        %964 = vmatprep.subr.mxu0 %v795
        %965 = vmatpush1.msra.mxu0 %v794
        %966 = vmatprep.subr.mxu0 %v803
        %967 = vmatpush1.msra.mxu0 %v802
        %968 = vmatprep.subr.mxu0 %v811
        %969 = vmatpush1.msra.mxu0 %v810
        %970 = vmatprep.subr.mxu0 %v819
        %971 = vmatpush1.msra.mxu0 %v818
        %972 = vmatprep.subr.mxu0 %v827
        %973 = vmatpush1.msra.mxu0 %v826
        %974 = vmatprep.subr.mxu0 %v835
        %975 = vmatpush1.msra.mxu0 %v834
        %976 = vmatprep.subr.mxu0 0.0
        %977 = vmatpush1.msra.mxu0 0.0
        %978 = vmatprep.subr.mxu0 0.0
        %979 = vmatpush1.msra.mxu0 0.0
        %980 = vmatprep.subr.mxu0 0.0
        %981 = vmatpush1.msra.mxu0 0.0
        %982 = vmatprep.subr.mxu0 0.0
        %983 = vmatpush1.msra.mxu0 0.0
        %984 = vmatprep.subr.mxu0 0.0
        %985 = vmatpush1.msra.mxu0 0.0
        %986 = vmatprep.mubr.f32.mxu0 %v849
        %987 = vmatmul.mubr.f32.gmra.mrb[0].mxu0 %v623
        %v988 = vpop.f32.mrb[0].mxu0
        %v989 = vadd.f32 %v844, %v988
        %v990 = vpop.f32.mrb[0].mxu0
        %v991 = vadd.f32 %v844, %v990
        %992 = vdwg.mxu0
        %993 = vmatprep.subr.mxu0 %v629
        %994 = vmatpush1.msra.mxu0 %v628
        %995 = vmatprep.subr.mxu0 %v637
        %996 = vmatpush1.msra.mxu0 %v636
        %997 = vmatprep.subr.mxu0 %v645
        %998 = vmatpush1.msra.mxu0 %v644
        %999 = vmatprep.subr.mxu0 %v653
        %1000 = vmatpush1.msra.mxu0 %v652
        %1001 = vmatprep.subr.mxu0 %v661
        %1002 = vmatpush1.msra.mxu0 %v660
        %1003 = vmatprep.subr.mxu0 %v669
        %1004 = vmatpush1.msra.mxu0 %v668
        %1005 = vmatprep.subr.mxu0 %v677
        %1006 = vmatpush1.msra.mxu0 %v676
        %1007 = vmatprep.subr.mxu0 %v685
        %1008 = vmatpush1.msra.mxu0 %v684
        %1009 = vmatprep.subr.mxu0 %v693
        %1010 = vmatpush1.msra.mxu0 %v692
        %1011 = vmatprep.subr.mxu0 %v701
        %1012 = vmatpush1.msra.mxu0 %v700
        %1013 = vmatprep.subr.mxu0 %v709
        %1014 = vmatpush1.msra.mxu0 %v708
        %1015 = vmatprep.subr.mxu0 %v717
        %1016 = vmatpush1.msra.mxu0 %v716
        %1017 = vmatprep.subr.mxu0 %v725
        %1018 = vmatpush1.msra.mxu0 %v724
        %1019 = vmatprep.subr.mxu0 %v733
        %1020 = vmatpush1.msra.mxu0 %v732
        %1021 = vmatprep.subr.mxu0 %v741
        %1022 = vmatpush1.msra.mxu0 %v740
        %1023 = vmatprep.subr.mxu0 %v749
        %1024 = vmatpush1.msra.mxu0 %v748
        %1025 = vmatprep.subr.mxu0 %v757
        %1026 = vmatpush1.msra.mxu0 %v756
        %1027 = vmatprep.subr.mxu0 %v765
        %1028 = vmatpush1.msra.mxu0 %v764
        %1029 = vmatprep.subr.mxu0 %v773
        %1030 = vmatpush1.msra.mxu0 %v772
        %1031 = vmatprep.subr.mxu0 %v781
        %1032 = vmatpush1.msra.mxu0 %v780
        %1033 = vmatprep.subr.mxu0 %v789
        %1034 = vmatpush1.msra.mxu0 %v788
        %1035 = vmatprep.subr.mxu0 %v797
        %1036 = vmatpush1.msra.mxu0 %v796
        %1037 = vmatprep.subr.mxu0 %v805
        %1038 = vmatpush1.msra.mxu0 %v804
        %1039 = vmatprep.subr.mxu0 %v813
        %1040 = vmatpush1.msra.mxu0 %v812
        %1041 = vmatprep.subr.mxu0 %v821
        %1042 = vmatpush1.msra.mxu0 %v820
        %1043 = vmatprep.subr.mxu0 %v829
        %1044 = vmatpush1.msra.mxu0 %v828
        %1045 = vmatprep.subr.mxu0 %v837
        %1046 = vmatpush1.msra.mxu0 %v836
        %1047 = vmatprep.subr.mxu0 0.0
        %1048 = vmatpush1.msra.mxu0 0.0
        %1049 = vmatprep.subr.mxu0 0.0
        %1050 = vmatpush1.msra.mxu0 0.0
        %1051 = vmatprep.subr.mxu0 0.0
        %1052 = vmatpush1.msra.mxu0 0.0
        %1053 = vmatprep.subr.mxu0 0.0
        %1054 = vmatpush1.msra.mxu0 0.0
        %1055 = vmatprep.subr.mxu0 0.0
        %1056 = vmatpush1.msra.mxu0 0.0
        %1057 = vmatprep.mubr.f32.mxu0 %v849
        %1058 = vmatmul.mubr.f32.gmra.mrb[0].mxu0 %v623
        %v1059 = vpop.f32.mrb[0].mxu0
        %v1060 = vadd.f32 %v844, %v1059
        %v1061 = vpop.f32.mrb[0].mxu0
        %v1062 = vadd.f32 %v844, %v1061
        %1063 = vdwg.mxu0
        %1064 = vmatprep.subr.mxu0 %v631
        %1065 = vmatpush1.msra.mxu0 %v630
        %1066 = vmatprep.subr.mxu0 %v639
        %1067 = vmatpush1.msra.mxu0 %v638
        %1068 = vmatprep.subr.mxu0 %v647
        %1069 = vmatpush1.msra.mxu0 %v646
        %1070 = vmatprep.subr.mxu0 %v655
        %1071 = vmatpush1.msra.mxu0 %v654
        %1072 = vmatprep.subr.mxu0 %v663
        %1073 = vmatpush1.msra.mxu0 %v662
        %1074 = vmatprep.subr.mxu0 %v671
        %1075 = vmatpush1.msra.mxu0 %v670
        %1076 = vmatprep.subr.mxu0 %v679
        %1077 = vmatpush1.msra.mxu0 %v678
        %1078 = vmatprep.subr.mxu0 %v687
        %1079 = vmatpush1.msra.mxu0 %v686
        %1080 = vmatprep.subr.mxu0 %v695
        %1081 = vmatpush1.msra.mxu0 %v694
        %1082 = vmatprep.subr.mxu0 %v703
        %1083 = vmatpush1.msra.mxu0 %v702
        %1084 = vmatprep.subr.mxu0 %v711
        %1085 = vmatpush1.msra.mxu0 %v710
        %1086 = vmatprep.subr.mxu0 %v719
        %1087 = vmatpush1.msra.mxu0 %v718
        %1088 = vmatprep.subr.mxu0 %v727
        %1089 = vmatpush1.msra.mxu0 %v726
        %1090 = vmatprep.subr.mxu0 %v735
        %1091 = vmatpush1.msra.mxu0 %v734
        %1092 = vmatprep.subr.mxu0 %v743
        %1093 = vmatpush1.msra.mxu0 %v742
        %1094 = vmatprep.subr.mxu0 %v751
        %1095 = vmatpush1.msra.mxu0 %v750
        %1096 = vmatprep.subr.mxu0 %v759
        %1097 = vmatpush1.msra.mxu0 %v758
        %1098 = vmatprep.subr.mxu0 %v767
        %1099 = vmatpush1.msra.mxu0 %v766
        %1100 = vmatprep.subr.mxu0 %v775
        %1101 = vmatpush1.msra.mxu0 %v774
        %1102 = vmatprep.subr.mxu0 %v783
        %1103 = vmatpush1.msra.mxu0 %v782
        %1104 = vmatprep.subr.mxu0 %v791
        %1105 = vmatpush1.msra.mxu0 %v790
        %1106 = vmatprep.subr.mxu0 %v799
        %1107 = vmatpush1.msra.mxu0 %v798
        %1108 = vmatprep.subr.mxu0 %v807
        %1109 = vmatpush1.msra.mxu0 %v806
        %1110 = vmatprep.subr.mxu0 %v815
        %1111 = vmatpush1.msra.mxu0 %v814
        %1112 = vmatprep.subr.mxu0 %v823
        %1113 = vmatpush1.msra.mxu0 %v822
        %1114 = vmatprep.subr.mxu0 %v831
        %1115 = vmatpush1.msra.mxu0 %v830
        %1116 = vmatprep.subr.mxu0 %v839
        %1117 = vmatpush1.msra.mxu0 %v838
        %1118 = vmatprep.subr.mxu0 0.0
        %1119 = vmatpush1.msra.mxu0 0.0
        %1120 = vmatprep.subr.mxu0 0.0
        %1121 = vmatpush1.msra.mxu0 0.0
        %1122 = vmatprep.subr.mxu0 0.0
        %1123 = vmatpush1.msra.mxu0 0.0
        %1124 = vmatprep.subr.mxu0 0.0
        %1125 = vmatpush1.msra.mxu0 0.0
        %1126 = vmatprep.subr.mxu0 0.0
        %1127 = vmatpush1.msra.mxu0 0.0
        %1128 = vmatprep.mubr.f32.mxu0 %v849
        %1129 = vmatmul.mubr.f32.gmra.mrb[0].mxu0 %v623
        %v1130 = vpop.f32.mrb[0].mxu0
        %v1131 = vadd.f32 %v844, %v1130
        %v1132 = vpop.f32.mrb[0].mxu0
        %v1133 = vadd.f32 %v844, %v1132
        %1134 = vdwg.mxu0
        %v1143 = vcombine.low %v918, %v920
        %v1144 = vcombine.low %v989, %v991
        %v1145 = vcombine.low %v1060, %v1062
        %v1146 = vcombine.low %v1131, %v1133
        %1151 = vst [vmem:[%s621] sm:$0xff] %v1143
        %1152 = vst [vmem:[%s621 + $0x8] sm:$0xff] %v1144
        %1153 = vst [vmem:[%s621 + $0x10] sm:$0xff] %v1145
        %1154 = vst [vmem:[%s621 + $0x18] sm:$0xff] %v1146
        %s1155 = smul.u32 8, %s14
        %p1156 = scmp.lt.s32.totalorder %s1155, 63
        %s1157 = scalar_select %p1156, %s1155, 63
        %s1158 = smul.addr %s1157, 4
        %s1159 = scalar_lea.vmem %s3, %s1158
        // Predicated region
        $region56: #{hourglass_forward.11} parent=50 // pred_check
          %p1160 = pneg %p100
        $region57: #{hourglass_forward.11} parent=50 // pred_check_branch
          %1162 = sbr.rel (%p1160) target = $region59
        $region58: #{hourglass_forward.11} parent=50 // pred_region
          %s1163 = smul.u32 8, %s14
        $region59: #{hourglass_forward.11} parent=50 // pred_fallthru
          _
      $region51: #{hourglass_forward.11} parent=5 // pred_fallthru
        _
      %p1164 = scmp.le.s32.totalorder 2, %s9
      // Predicated region
      $region60: #{hourglass_forward.11} parent=5 // pred_check
        %p1165 = pneg %p1164
      $region61: #{hourglass_forward.11} parent=5 // pred_check_branch
        %1167 = sbr.rel (%p1165) target = $region63
      $region62: #{hourglass_forward.11} parent=5 // pred_region
        %s1168 = ssub.s32 %s9, 2
        // Predicated region
        $region64: #{hourglass_forward.11} parent=62 // pred_check
          %p1169 = pneg %p106
        $region65: #{hourglass_forward.11} parent=62 // pred_check_branch
          %1171 = sbr.rel (%p1169) target = $region67
        $region66: #{hourglass_forward.11} parent=62 // pred_region
          %s1172 = smul.u32 8, %s15
          %p1173 = scmp.lt.s32.totalorder %s1172, 63
          %s1174 = scalar_select %p1173, %s1172, 63
          %s1175 = smul.addr %s1174, 4
          %s1176 = scalar_lea.vmem %s3, %s1175
        $region67: #{hourglass_forward.11} parent=62 // pred_fallthru
          _
      $region63: #{hourglass_forward.11} parent=5 // pred_fallthru
        _
    $region6: #{hourglass_forward.11} parent=1 // loop_footer
      %s13 = sadd.s32 1, %s9
    $region7: #{hourglass_forward.11} parent=1 // loop_footer_branch
      %8 = sbr.rel target = $region3
    $region8: #{hourglass_forward.11} parent=1 // loop_exit
      _

</llo_original>
